<compile_context>
chip_gen: v7x
topology: tpu7x:2x2x1
jax: 0.10.0
libtpu: 0.0.40
codegen_flags: <defaults>
</compile_context>

<pallas_src>
import functools

import jax
import jax.numpy as jnp
from jax.experimental import pallas as pl
from jax.experimental.pallas import tpu as pltpu

BN_EPS = 1e-5
SOFTPLUS_THRESH = 20.0                 # PyTorch nn.Softplus default threshold
VMEM_LIMIT = 32 * 1024 * 1024          # sized for v7x (64 MiB/TC); fine on v5e/v6e
TILE_BUDGET = 18 * 1024 * 1024         # live-VMEM budget used when picking the L tile


def _softplus(z):
    sp = jnp.log1p(jnp.exp(jnp.minimum(z, SOFTPLUS_THRESH)))
    return jnp.where(z > SOFTPLUS_THRESH, z, sp)


def _sigmoid(z):
    return 1.0 / (1.0 + jnp.exp(-z))


# --------------------------------------------------------------------------
# Kernels
# --------------------------------------------------------------------------
def stats1_kernel(x_ref, gram_ref, sum_ref):
    """Per-batch Gram matrix G += x x^T and column-sum s += sum_l x.

    Layer-6 BN statistics are derived from (G, s) in the wrapper:
      sum(W x) = W s,   sumsq(W x) = rowsum((W G) * W)
    -> half the MXU MACs of forming z6 = [W6; W6N] @ x, and no (2C, tL)
    intermediate / square / reduce in-kernel.
    """
    @pl.when(pl.program_id(1) == 0)
    def _():
        gram_ref[...] = jnp.zeros_like(gram_ref)
        sum_ref[...] = jnp.zeros_like(sum_ref)

    x = x_ref[0]                                                    # (C, tL)
    gram_ref[0] += jax.lax.dot_general(
        x, x, (((1,), (1,)), ((), ())), preferred_element_type=jnp.float32)
    sum_ref[0] += jnp.sum(x, axis=1, keepdims=True)


def stats2_kernel(x_ref, w1_ref, w2_ref, sh1_ref, s_ref):
    """Layer 6 (scale folded into w1, + shift) + softplus per tower, then
    accumulate per-batch layer-7 pre-activation sum / sum-sq per tower."""
    @pl.when(pl.program_id(1) == 0)
    def _():
        s_ref[...] = jnp.zeros_like(s_ref)

    x = x_ref[0]                                                    # (C, tL)
    h1a = _softplus(jnp.dot(w1_ref[0], x, preferred_element_type=jnp.float32)
                    + sh1_ref[0])
    h1b = _softplus(jnp.dot(w1_ref[1], x, preferred_element_type=jnp.float32)
                    + sh1_ref[1])
    z7a = jnp.dot(w2_ref[0], h1a, preferred_element_type=jnp.float32)
    z7b = jnp.dot(w2_ref[1], h1b, preferred_element_type=jnp.float32)
    s_ref[0, 0] += jnp.concatenate(
        [jnp.sum(z7a, axis=1, keepdims=True),
         jnp.sum(z7a * z7a, axis=1, keepdims=True)], axis=1)
    s_ref[0, 1] += jnp.concatenate(
        [jnp.sum(z7b, axis=1, keepdims=True),
         jnp.sum(z7b * z7b, axis=1, keepdims=True)], axis=1)


def apply_kernel(x_ref, w1_ref, w2_ref, sh_ref, wh_ref, bh_ref, out_ref):
    """Full towers with both BNs folded (scaled weights + shift adds), padded
    head matmuls, sigmoid gating, and one aligned (14, tL) full-block store."""
    x = x_ref[0]                                                    # (C, tL)
    h1a = _softplus(jnp.dot(w1_ref[0], x, preferred_element_type=jnp.float32)
                    + sh_ref[0, :, 0:1])
    h1b = _softplus(jnp.dot(w1_ref[1], x, preferred_element_type=jnp.float32)
                    + sh_ref[1, :, 0:1])
    h2a = _softplus(jnp.dot(w2_ref[0], h1a, preferred_element_type=jnp.float32)
                    + sh_ref[0, :, 1:2])
    h2b = _softplus(jnp.dot(w2_ref[1], h1b, preferred_element_type=jnp.float32)
                    + sh_ref[1, :, 1:2])
    # wh_ref[0] = [W8; 0] (14, C), wh_ref[1] = [0; W8N] (14, C): the sum forms
    # the full 14-row head directly -> no (2C, tL) concat and no misaligned
    # 3-row / 11-row split stores.
    y = (jnp.dot(wh_ref[0], h2a, preferred_element_type=jnp.float32)
         + jnp.dot(wh_ref[1], h2b, preferred_element_type=jnp.float32)
         + bh_ref[...])                                             # (14, tL)
    # rows 0:3 = x8 (linear), 3:7 = rotations (linear), 7:14 = sigmoid outputs.
    row = jax.lax.broadcasted_iota(jnp.int32, y.shape, 0)
    out_ref[0] = jnp.where(row >= 7, _sigmoid(y), y)


# --------------------------------------------------------------------------
# Wrapper
# --------------------------------------------------------------------------
def _pick_l_tile(L, C):
    # Rough live VMEM bytes per column in the apply pass: x double-buffered
    # (2C) + tower intermediates (~10C) + out double-buffered (2*14), f32.
    bytes_per_col = (2 * C + 10 * C + 2 * 14) * 4
    max_t = max(128, TILE_BUDGET // bytes_per_col)
    for t in (2048, 1024, 512, 256, 128):
        if t <= max_t and L % t == 0:
            return t
    # TODO(synk): cdiv grid + in-kernel column masking for L not divisible by 128.
    return L


def _fold_bn(s, sq, gamma, beta, m):
    """(sum, sumsq, gamma, beta) -> (scale, shift) so BN(y) = y*scale + shift."""
    mean = s / m
    # TODO(synk): sumsq/M - mean^2 in f32 can cancel for very large N*L; switch
    # to per-tile centered (Chan) combination if tolerance drifts at scale.
    var = jnp.maximum(sq / m - mean * mean, 0.0)   # biased variance (train-mode BN)
    scale = gamma * jax.lax.rsqrt(var + BN_EPS)
    shift = beta - scale * mean
    return scale, shift


def _const_spec(shape):
    nd = len(shape)
    return pl.BlockSpec(shape, lambda n, l, _nd=nd: (0,) * _nd)


@functools.partial(jax.jit, static_argnames=("hsize",))
def activate_forward(x5, params, hsize):
    """x5: (N, hsize, L) float32 -> (x8, rotations, scales, opacitys, shs) in NCL."""
    N, C, L = x5.shape
    assert C == hsize
    tL = _pick_l_tile(L, C)
    nL = L // tL
    M = N * L

    # ---- consolidated parameters (conv biases before BN cancel -> dropped) ----
    w6, w6n = params["w6"], params["w6N"]
    w7, w7n = params["w7"], params["w7N"]
    w1_full = jnp.concatenate([w6, w6n], axis=0)                    # (2C, C) (fold only)
    g1 = jnp.concatenate([params["g6"], params["g6N"]], axis=0)     # (2C, 1)
    be1 = jnp.concatenate([params["be6"], params["be6N"]], axis=0)
    g2 = jnp.stack([params["g7"], params["g7N"]], axis=0)           # (2, C, 1)
    be2 = jnp.stack([params["be7"], params["be7N"]], axis=0)
    whead = jnp.stack(
        [jnp.concatenate([params["w8"], jnp.zeros((11, C), jnp.float32)], axis=0),
         jnp.concatenate([jnp.zeros((3, C), jnp.float32), params["w8N"]], axis=0)],
        axis=0)                                                      # (2, 14, C)
    bhead = jnp.concatenate([params["b8"], params["b8N"]], axis=0)   # (14, 1)

    grid = (N, nL)
    x_spec = pl.BlockSpec((1, C, tL), lambda n, l: (n, 0, l))
    cp_stats = pltpu.CompilerParams(
        dimension_semantics=("parallel", "arbitrary"),   # N megacore-shardable (v7x)
        vmem_limit_bytes=VMEM_LIMIT)
    cp_apply = pltpu.CompilerParams(
        dimension_semantics=("parallel", "parallel"),
        vmem_limit_bytes=VMEM_LIMIT)

    # ---- pass 1: input Gram / sum (per-batch partials, summed in XLA) ----
    gram_p, sum_p = pl.pallas_call(
        stats1_kernel,
        grid=grid,
        in_specs=[x_spec],
        out_specs=(pl.BlockSpec((1, C, C), lambda n, l: (n, 0, 0)),
                   pl.BlockSpec((1, C, 1), lambda n, l: (n, 0, 0))),
        out_shape=(jax.ShapeDtypeStruct((N, C, C), jnp.float32),
                   jax.ShapeDtypeStruct((N, C, 1), jnp.float32)),
        compiler_params=cp_stats,
    )(x5)
    gram = jnp.sum(gram_p, axis=0)                                   # (C, C)
    sx = jnp.sum(sum_p, axis=0)                                      # (C, 1)

    # layer-6 BN fold derived from (gram, sx); tiny XLA-side matmuls.
    sum6 = w1_full @ sx                                              # (2C, 1)
    sumsq6 = jnp.sum((w1_full @ gram) * w1_full, axis=1, keepdims=True)
    scale1, shift1 = _fold_bn(sum6, sumsq6, g1, be1, M)
    w1s = jnp.stack([scale1[:C] * w6, scale1[C:] * w6n], axis=0)     # (2, C, C)
    sh1 = jnp.stack([shift1[:C], shift1[C:]], axis=0)                # (2, C, 1)

    # ---- pass 2: layer-7 BN statistics (per-batch partials) ----
    w2_raw = jnp.stack([w7, w7n], axis=0)                            # (2, C, C)
    st2_p = pl.pallas_call(
        stats2_kernel,
        grid=grid,
        in_specs=[x_spec, _const_spec((2, C, C)), _const_spec((2, C, C)),
                  _const_spec((2, C, 1))],
        out_specs=pl.BlockSpec((1, 2, C, 2), lambda n, l: (n, 0, 0, 0)),
        out_shape=jax.ShapeDtypeStruct((N, 2, C, 2), jnp.float32),
        compiler_params=cp_stats,
    )(x5, w1s, w2_raw, sh1)
    st2 = jnp.sum(st2_p, axis=0)                                     # (2, C, 2)
    scale2, shift2 = _fold_bn(st2[..., 0:1], st2[..., 1:2], g2, be2, M)
    w2s = scale2 * w2_raw                                            # (2, C, C)
    shifts = jnp.concatenate([sh1, shift2], axis=2)                  # (2, C, 2)

    # ---- pass 3: apply (one lane-dense (N, 14, L) slab, split below) ----
    out = pl.pallas_call(
        apply_kernel,
        grid=grid,
        in_specs=[x_spec, _const_spec((2, C, C)), _const_spec((2, C, C)),
                  _const_spec((2, C, 2)), _const_spec((2, 14, C)),
                  _const_spec((14, 1))],
        out_specs=pl.BlockSpec((1, 14, tL), lambda n, l: (n, 0, l)),
        out_shape=jax.ShapeDtypeStruct((N, 14, L), jnp.float32),
        compiler_params=cp_apply,
    )(x5, w1s, w2s, shifts, whead, bhead)

    x8 = out[:, 0:3, :]
    rotations = out[:, 3:7, :]
    scales = out[:, 7:10, :]
    opacitys = out[:, 10:11, :]
    shs = out[:, 11:14, :]
    return x8, rotations, scales, opacitys, shs


# --------------------------------------------------------------------------
# Synthetic parameters + pure-JAX reference
# --------------------------------------------------------------------------
def make_params(key, hsize):
    """Deterministic synthetic parameters (shapes match the PyTorch module)."""
    ks = jax.random.split(key, 12)
    scale = 1.0 / jnp.sqrt(hsize)

    def conv(k, c_out, c_in):
        kw, kb = jax.random.split(k)
        w = jax.random.uniform(kw, (c_out, c_in), jnp.float32, -scale, scale)
        b = jax.random.uniform(kb, (c_out, 1), jnp.float32, -scale, scale)
        return w, b

    def bn(k, c):
        kg, kb = jax.random.split(k)
        g = 1.0 + 0.1 * jax.random.normal(kg, (c, 1), jnp.float32)
        be = 0.1 * jax.random.normal(kb, (c, 1), jnp.float32)
        return g, be

    p = {}
    p["w6"], p["b6"] = conv(ks[0], hsize, hsize)
    p["w7"], p["b7"] = conv(ks[1], hsize, hsize)
    p["w8"], p["b8"] = conv(ks[2], 3, hsize)
    p["w6N"], p["b6N"] = conv(ks[3], hsize, hsize)
    p["w7N"], p["b7N"] = conv(ks[4], hsize, hsize)
    p["w8N"], p["b8N"] = conv(ks[5], 11, hsize)
    p["g6"], p["be6"] = bn(ks[6], hsize)
    p["g7"], p["be7"] = bn(ks[7], hsize)
    p["g6N"], p["be6N"] = bn(ks[8], hsize)
    p["g7N"], p["be7N"] = bn(ks[9], hsize)
    return p


def reference_forward(x5_ncl, params):
    """Pure-JAX reference (same math as the PyTorch module in train mode)."""
    N, C, L = x5_ncl.shape
    x2d = jnp.transpose(x5_ncl, (1, 0, 2)).reshape(C, N * L)

    def bn_sp(y, g, b):
        m = jnp.mean(y, axis=1, keepdims=True)
        v = jnp.mean((y - m) ** 2, axis=1, keepdims=True)
        z = g * ((y - m) / jnp.sqrt(v + BN_EPS)) + b
        return jnp.where(z > SOFTPLUS_THRESH, z,
                         jnp.log1p(jnp.exp(jnp.minimum(z, SOFTPLUS_THRESH))))

    x6 = bn_sp(params["w6"] @ x2d + params["b6"], params["g6"], params["be6"])
    x7 = bn_sp(params["w7"] @ x6 + params["b7"], params["g7"], params["be7"])
    x8 = params["w8"] @ x7 + params["b8"]
    xn6 = bn_sp(params["w6N"] @ x2d + params["b6N"], params["g6N"], params["be6N"])
    xn7 = bn_sp(params["w7N"] @ xn6 + params["b7N"], params["g7N"], params["be7N"])
    xn8 = params["w8N"] @ xn7 + params["b8N"]
    sig = jax.nn.sigmoid
    outs = (x8, xn8[0:4], sig(xn8[4:7]), sig(xn8[7:8]), sig(xn8[8:11]))
    return tuple(
        jnp.transpose(o.reshape(o.shape[0], N, L), (1, 0, 2)) for o in outs
    )


if __name__ == "__main__":
    HSIZE = 32     # module's `hsize` (default 256; small synthetic size here)
    N, L = 2, 384  # L multiple of 128 -> lane-dense tiles, grid (2, 3)

    key = jax.random.PRNGKey(0)
    k_x, k_p = jax.random.split(key)
    x5 = jax.random.normal(k_x, (N, HSIZE, L), jnp.float32)   # (N, C, L), NCL
    params = make_params(k_p, HSIZE)

    outs = activate_forward(x5, params, HSIZE)
    outs = jax.block_until_ready(outs)

    refs = reference_forward(x5, params)
    names = ("x8", "rotations", "scales", "opacitys", "shs")
    for name, o, r in zip(names, outs, refs):
        assert o.shape == r.shape, (name, o.shape, r.shape)
        err = float(jnp.max(jnp.abs(o - r)))
        assert err < 1e-4, (name, err)

    print("KERNEL_OK")
</pallas_src>

<mosaic_0001>
module attributes {stable_mosaic.version = 11 : i64} {
  func.func @stats1_kernel(%arg0: i32, %arg1: i32, %arg2: memref<1x32x128xf32, #tpu.memory_space<vmem>>, %arg3: memref<1x32x32xf32, #tpu.memory_space<vmem>>, %arg4: memref<1x32x1xf32, #tpu.memory_space<vmem>>) attributes {dimension_semantics = [#tpu.dimension_semantics<parallel>, #tpu.dimension_semantics<arbitrary>], iteration_bounds = array<i64: 2, 3>, scalar_prefetch = 0 : i64, scratch_operands = 0 : i64, tpu.core_type = #tpu.core_type<tc>, window_params = [{transform_indices = @transform_0, window_bounds = array<i64: 1, 32, 128>}, {transform_indices = @transform_1, window_bounds = array<i64: 1, 32, 32>}, {transform_indices = @transform_2, window_bounds = array<i64: 1, 32, 1>}]} {
    %c0_i32 = arith.constant 0 : i32
    %0 = arith.cmpi eq, %arg1, %c0_i32 : i32
    %1 = arith.extui %0 : i1 to i32
    %c0_i32_0 = arith.constant 0 : i32
    %2 = arith.cmpi ne, %1, %c0_i32_0 : i32
    scf.if %2 {
      %cst_16 = arith.constant 0.000000e+00 : f32
      %20 = vector.broadcast %cst_16 : f32 to vector<1x32x32xf32>
      %c0_17 = arith.constant 0 : index
      %c0_18 = arith.constant 0 : index
      %c0_19 = arith.constant 0 : index
      %21 = vector.load %arg3[%c0_17, %c0_18, %c0_19] : memref<1x32x32xf32, #tpu.memory_space<vmem>>, vector<1x32x32xf32>
      tpu.vector_store %arg3[%c0_17, %c0_18, %c0_19], %20 {strides = array<i32>} : memref<1x32x32xf32, #tpu.memory_space<vmem>>, vector<1x32x32xf32>,
      %cst_20 = arith.constant 0.000000e+00 : f32
      %22 = vector.broadcast %cst_20 : f32 to vector<1x32x1xf32>
      %c0_21 = arith.constant 0 : index
      %c0_22 = arith.constant 0 : index
      %c0_23 = arith.constant 0 : index
      %23 = vector.load %arg4[%c0_21, %c0_22, %c0_23] : memref<1x32x1xf32, #tpu.memory_space<vmem>>, vector<1x32x1xf32>
      tpu.vector_store %arg4[%c0_21, %c0_22, %c0_23], %22 {strides = array<i32>} : memref<1x32x1xf32, #tpu.memory_space<vmem>>, vector<1x32x1xf32>,
    } else {
    }
    %c0 = arith.constant 0 : index
    %c0_1 = arith.constant 0 : index
    %c0_2 = arith.constant 0 : index
    %3 = vector.load %arg2[%c0, %c0_1, %c0_2] : memref<1x32x128xf32, #tpu.memory_space<vmem>>, vector<1x32x128xf32>
    %4 = vector.shape_cast %3 : vector<1x32x128xf32> to vector<32x128xf32>
    %c0_3 = arith.constant 0 : index
    %c0_4 = arith.constant 0 : index
    %c0_5 = arith.constant 0 : index
    %5 = vector.load %arg3[%c0_3, %c0_4, %c0_5] : memref<1x32x32xf32, #tpu.memory_space<vmem>>, vector<1x32x32xf32>
    %6 = vector.shape_cast %5 : vector<1x32x32xf32> to vector<32x32xf32>
    %cst = arith.constant dense<0.000000e+00> : vector<32x32xf32>
    %7 = tpu.matmul %4, %4, %cst {dimension_numbers = #tpu.dot_dimension_numbers<[1], [1], [0], [0], [0, 0, 1, 0], [], []>} : vector<32x128xf32>, vector<32x128xf32>, vector<32x32xf32> -> vector<32x32xf32>
    %8 = arith.addf %6, %7 : vector<32x32xf32>
    %c0_6 = arith.constant 0 : index
    %c0_7 = arith.constant 0 : index
    %c0_8 = arith.constant 0 : index
    %9 = vector.load %arg3[%c0_6, %c0_7, %c0_8] : memref<1x32x32xf32, #tpu.memory_space<vmem>>, vector<1x32x32xf32>
    %10 = vector.shape_cast %9 : vector<1x32x32xf32> to vector<32x32xf32>
    %11 = vector.shape_cast %8 : vector<32x32xf32> to vector<1x32x32xf32>
    tpu.vector_store %arg3[%c0_6, %c0_7, %c0_8], %11 {strides = array<i32>} : memref<1x32x32xf32, #tpu.memory_space<vmem>>, vector<1x32x32xf32>,
    %c0_9 = arith.constant 0 : index
    %c0_10 = arith.constant 0 : index
    %c0_11 = arith.constant 0 : index
    %12 = vector.load %arg4[%c0_9, %c0_10, %c0_11] : memref<1x32x1xf32, #tpu.memory_space<vmem>>, vector<1x32x1xf32>
    %13 = vector.shape_cast %12 : vector<1x32x1xf32> to vector<32x1xf32>
    %cst_12 = arith.constant dense<0.000000e+00> : vector<32xf32>
    %14 = vector.multi_reduction <add>, %4, %cst_12 [1] : vector<32x128xf32> to vector<32xf32>
    %15 = vector.shape_cast %14 : vector<32xf32> to vector<32x1xf32>
    %16 = arith.addf %13, %15 : vector<32x1xf32>
    %c0_13 = arith.constant 0 : index
    %c0_14 = arith.constant 0 : index
    %c0_15 = arith.constant 0 : index
    %17 = vector.load %arg4[%c0_13, %c0_14, %c0_15] : memref<1x32x1xf32, #tpu.memory_space<vmem>>, vector<1x32x1xf32>
    %18 = vector.shape_cast %17 : vector<1x32x1xf32> to vector<32x1xf32>
    %19 = vector.shape_cast %16 : vector<32x1xf32> to vector<1x32x1xf32>
    tpu.vector_store %arg4[%c0_13, %c0_14, %c0_15], %19 {strides = array<i32>} : memref<1x32x1xf32, #tpu.memory_space<vmem>>, vector<1x32x1xf32>,
    return
  }
  func.func @transform_0(%arg0: i32, %arg1: i32) -> (i32, i32, i32) {
    %c0_i32 = arith.constant 0 : i32
    %c0_i32_0 = arith.constant 0 : i32
    return %arg0, %c0_i32, %arg1 : i32, i32, i32
  }
  func.func @transform_1(%arg0: i32, %arg1: i32) -> (i32, i32, i32) {
    %c0_i32 = arith.constant 0 : i32
    %c0_i32_0 = arith.constant 0 : i32
    %c0_i32_1 = arith.constant 0 : i32
    return %arg0, %c0_i32, %c0_i32_0 : i32, i32, i32
  }
  func.func @transform_2(%arg0: i32, %arg1: i32) -> (i32, i32, i32) {
    %c0_i32 = arith.constant 0 : i32
    %c0_i32_0 = arith.constant 0 : i32
    %c0_i32_1 = arith.constant 0 : i32
    return %arg0, %c0_i32, %c0_i32_0 : i32, i32, i32
  }
}

module attributes {stable_mosaic.version = 11 : i64} {
  func.func @stats2_kernel(%arg0: i32, %arg1: i32, %arg2: memref<1x32x128xf32, #tpu.memory_space<vmem>>, %arg3: memref<2x32x32xf32, #tpu.memory_space<vmem>>, %arg4: memref<2x32x32xf32, #tpu.memory_space<vmem>>, %arg5: memref<2x32x1xf32, #tpu.memory_space<vmem>>, %arg6: memref<1x2x32x2xf32, #tpu.memory_space<vmem>>) attributes {dimension_semantics = [#tpu.dimension_semantics<parallel>, #tpu.dimension_semantics<arbitrary>], iteration_bounds = array<i64: 2, 3>, scalar_prefetch = 0 : i64, scratch_operands = 0 : i64, tpu.core_type = #tpu.core_type<tc>, window_params = [{transform_indices = @transform_0, window_bounds = array<i64: 1, 32, 128>}, {pipeline_mode = #tpu.pipeline_mode<synchronous>, transform_indices = @transform_1, window_bounds = array<i64: 2, 32, 32>}, {pipeline_mode = #tpu.pipeline_mode<synchronous>, transform_indices = @transform_2, window_bounds = array<i64: 2, 32, 32>}, {pipeline_mode = #tpu.pipeline_mode<synchronous>, transform_indices = @transform_3, window_bounds = array<i64: 2, 32, 1>}, {transform_indices = @transform_4, window_bounds = array<i64: 1, 2, 32, 2>}]} {
    %c0_i32 = arith.constant 0 : i32
    %0 = arith.cmpi eq, %arg1, %c0_i32 : i32
    %1 = arith.extui %0 : i1 to i32
    %c0_i32_0 = arith.constant 0 : i32
    %2 = arith.cmpi ne, %1, %c0_i32_0 : i32
    scf.if %2 {
      %cst_47 = arith.constant 0.000000e+00 : f32
      %63 = vector.broadcast %cst_47 : f32 to vector<1x2x32x2xf32>
      %c0_48 = arith.constant 0 : index
      %c0_49 = arith.constant 0 : index
      %c0_50 = arith.constant 0 : index
      %c0_51 = arith.constant 0 : index
      %64 = vector.load %arg6[%c0_48, %c0_49, %c0_50, %c0_51] : memref<1x2x32x2xf32, #tpu.memory_space<vmem>>, vector<1x2x32x2xf32>
      tpu.vector_store %arg6[%c0_48, %c0_49, %c0_50, %c0_51], %63 {strides = array<i32>} : memref<1x2x32x2xf32, #tpu.memory_space<vmem>>, vector<1x2x32x2xf32>,
    } else {
    }
    %c0 = arith.constant 0 : index
    %c0_1 = arith.constant 0 : index
    %c0_2 = arith.constant 0 : index
    %3 = vector.load %arg2[%c0, %c0_1, %c0_2] : memref<1x32x128xf32, #tpu.memory_space<vmem>>, vector<1x32x128xf32>
    %4 = vector.shape_cast %3 : vector<1x32x128xf32> to vector<32x128xf32>
    %c0_3 = arith.constant 0 : index
    %c0_4 = arith.constant 0 : index
    %c0_5 = arith.constant 0 : index
    %5 = vector.load %arg3[%c0_3, %c0_4, %c0_5] : memref<2x32x32xf32, #tpu.memory_space<vmem>>, vector<1x32x32xf32>
    %6 = vector.shape_cast %5 : vector<1x32x32xf32> to vector<32x32xf32>
    %cst = arith.constant dense<0.000000e+00> : vector<32x128xf32>
    %7 = tpu.matmul %6, %4, %cst {dimension_numbers = #tpu.dot_dimension_numbers<[1], [0], [0], [1], [0, 0, 1, 1], [], []>} : vector<32x32xf32>, vector<32x128xf32>, vector<32x128xf32> -> vector<32x128xf32>
    %c0_6 = arith.constant 0 : index
    %c0_7 = arith.constant 0 : index
    %c0_8 = arith.constant 0 : index
    %8 = vector.load %arg5[%c0_6, %c0_7, %c0_8] : memref<2x32x1xf32, #tpu.memory_space<vmem>>, vector<1x32x1xf32>
    %9 = vector.shape_cast %8 : vector<1x32x1xf32> to vector<32x1xf32>
    %10 = vector.broadcast %9 : vector<32x1xf32> to vector<32x128xf32>
    %11 = arith.addf %7, %10 : vector<32x128xf32>
    %cst_9 = arith.constant 2.000000e+01 : f32
    %12 = vector.broadcast %cst_9 : f32 to vector<32x128xf32>
    %13 = arith.minimumf %11, %12 : vector<32x128xf32>
    %14 = math.exp %13 : vector<32x128xf32>
    %15 = math.log1p %14 : vector<32x128xf32>
    %cst_10 = arith.constant 2.000000e+01 : f32
    %16 = vector.broadcast %cst_10 : f32 to vector<32x128xf32>
    %17 = arith.cmpf ogt, %11, %16 : vector<32x128xf32>
    %18 = arith.select %17, %11, %15 : vector<32x128xi1>, vector<32x128xf32>
    %c1 = arith.constant 1 : index
    %c0_11 = arith.constant 0 : index
    %c0_12 = arith.constant 0 : index
    %19 = vector.load %arg3[%c1, %c0_11, %c0_12] : memref<2x32x32xf32, #tpu.memory_space<vmem>>, vector<1x32x32xf32>
    %20 = vector.shape_cast %19 : vector<1x32x32xf32> to vector<32x32xf32>
    %cst_13 = arith.constant dense<0.000000e+00> : vector<32x128xf32>
    %21 = tpu.matmul %20, %4, %cst_13 {dimension_numbers = #tpu.dot_dimension_numbers<[1], [0], [0], [1], [0, 0, 1, 1], [], []>} : vector<32x32xf32>, vector<32x128xf32>, vector<32x128xf32> -> vector<32x128xf32>
    %c1_14 = arith.constant 1 : index
    %c0_15 = arith.constant 0 : index
    %c0_16 = arith.constant 0 : index
    %22 = vector.load %arg5[%c1_14, %c0_15, %c0_16] : memref<2x32x1xf32, #tpu.memory_space<vmem>>, vector<1x32x1xf32>
    %23 = vector.shape_cast %22 : vector<1x32x1xf32> to vector<32x1xf32>
    %24 = vector.broadcast %23 : vector<32x1xf32> to vector<32x128xf32>
    %25 = arith.addf %21, %24 : vector<32x128xf32>
    %cst_17 = arith.constant 2.000000e+01 : f32
    %26 = vector.broadcast %cst_17 : f32 to vector<32x128xf32>
    %27 = arith.minimumf %25, %26 : vector<32x128xf32>
    %28 = math.exp %27 : vector<32x128xf32>
    %29 = math.log1p %28 : vector<32x128xf32>
    %cst_18 = arith.constant 2.000000e+01 : f32
    %30 = vector.broadcast %cst_18 : f32 to vector<32x128xf32>
    %31 = arith.cmpf ogt, %25, %30 : vector<32x128xf32>
    %32 = arith.select %31, %25, %29 : vector<32x128xi1>, vector<32x128xf32>
    %c0_19 = arith.constant 0 : index
    %c0_20 = arith.constant 0 : index
    %c0_21 = arith.constant 0 : index
    %33 = vector.load %arg4[%c0_19, %c0_20, %c0_21] : memref<2x32x32xf32, #tpu.memory_space<vmem>>, vector<1x32x32xf32>
    %34 = vector.shape_cast %33 : vector<1x32x32xf32> to vector<32x32xf32>
    %cst_22 = arith.constant dense<0.000000e+00> : vector<32x128xf32>
    %35 = tpu.matmul %34, %18, %cst_22 {dimension_numbers = #tpu.dot_dimension_numbers<[1], [0], [0], [1], [0, 0, 1, 1], [], []>} : vector<32x32xf32>, vector<32x128xf32>, vector<32x128xf32> -> vector<32x128xf32>
    %c1_23 = arith.constant 1 : index
    %c0_24 = arith.constant 0 : index
    %c0_25 = arith.constant 0 : index
    %36 = vector.load %arg4[%c1_23, %c0_24, %c0_25] : memref<2x32x32xf32, #tpu.memory_space<vmem>>, vector<1x32x32xf32>
    %37 = vector.shape_cast %36 : vector<1x32x32xf32> to vector<32x32xf32>
    %cst_26 = arith.constant dense<0.000000e+00> : vector<32x128xf32>
    %38 = tpu.matmul %37, %32, %cst_26 {dimension_numbers = #tpu.dot_dimension_numbers<[1], [0], [0], [1], [0, 0, 1, 1], [], []>} : vector<32x32xf32>, vector<32x128xf32>, vector<32x128xf32> -> vector<32x128xf32>
    %c0_27 = arith.constant 0 : index
    %c0_28 = arith.constant 0 : index
    %c0_29 = arith.constant 0 : index
    %c0_30 = arith.constant 0 : index
    %39 = vector.load %arg6[%c0_27, %c0_28, %c0_29, %c0_30] : memref<1x2x32x2xf32, #tpu.memory_space<vmem>>, vector<1x1x32x2xf32>
    %40 = vector.shape_cast %39 : vector<1x1x32x2xf32> to vector<32x2xf32>
    %cst_31 = arith.constant dense<0.000000e+00> : vector<32xf32>
    %41 = vector.multi_reduction <add>, %35, %cst_31 [1] : vector<32x128xf32> to vector<32xf32>
    %42 = vector.shape_cast %41 : vector<32xf32> to vector<32x1xf32>
    %43 = arith.mulf %35, %35 : vector<32x128xf32>
    %cst_32 = arith.constant dense<0.000000e+00> : vector<32xf32>
    %44 = vector.multi_reduction <add>, %43, %cst_32 [1] : vector<32x128xf32> to vector<32xf32>
    %45 = vector.shape_cast %44 : vector<32xf32> to vector<32x1xf32>
    %46 = tpu.concatenate %42, %45 in 1 : vector<32x1xf32>, vector<32x1xf32> -> vector<32x2xf32>
    %47 = arith.addf %40, %46 : vector<32x2xf32>
    %c0_33 = arith.constant 0 : index
    %c0_34 = arith.constant 0 : index
    %c0_35 = arith.constant 0 : index
    %c0_36 = arith.constant 0 : index
    %48 = vector.load %arg6[%c0_33, %c0_34, %c0_35, %c0_36] : memref<1x2x32x2xf32, #tpu.memory_space<vmem>>, vector<1x1x32x2xf32>
    %49 = vector.shape_cast %48 : vector<1x1x32x2xf32> to vector<32x2xf32>
    %50 = vector.shape_cast %47 : vector<32x2xf32> to vector<1x1x32x2xf32>
    tpu.vector_store %arg6[%c0_33, %c0_34, %c0_35, %c0_36], %50 {strides = array<i32>} : memref<1x2x32x2xf32, #tpu.memory_space<vmem>>, vector<1x1x32x2xf32>,
    %c0_37 = arith.constant 0 : index
    %c1_38 = arith.constant 1 : index
    %c0_39 = arith.constant 0 : index
    %c0_40 = arith.constant 0 : index
    %51 = vector.load %arg6[%c0_37, %c1_38, %c0_39, %c0_40] : memref<1x2x32x2xf32, #tpu.memory_space<vmem>>, vector<1x1x32x2xf32>
    %52 = vector.shape_cast %51 : vector<1x1x32x2xf32> to vector<32x2xf32>
    %cst_41 = arith.constant dense<0.000000e+00> : vector<32xf32>
    %53 = vector.multi_reduction <add>, %38, %cst_41 [1] : vector<32x128xf32> to vector<32xf32>
    %54 = vector.shape_cast %53 : vector<32xf32> to vector<32x1xf32>
    %55 = arith.mulf %38, %38 : vector<32x128xf32>
    %cst_42 = arith.constant dense<0.000000e+00> : vector<32xf32>
    %56 = vector.multi_reduction <add>, %55, %cst_42 [1] : vector<32x128xf32> to vector<32xf32>
    %57 = vector.shape_cast %56 : vector<32xf32> to vector<32x1xf32>
    %58 = tpu.concatenate %54, %57 in 1 : vector<32x1xf32>, vector<32x1xf32> -> vector<32x2xf32>
    %59 = arith.addf %52, %58 : vector<32x2xf32>
    %c0_43 = arith.constant 0 : index
    %c1_44 = arith.constant 1 : index
    %c0_45 = arith.constant 0 : index
    %c0_46 = arith.constant 0 : index
    %60 = vector.load %arg6[%c0_43, %c1_44, %c0_45, %c0_46] : memref<1x2x32x2xf32, #tpu.memory_space<vmem>>, vector<1x1x32x2xf32>
    %61 = vector.shape_cast %60 : vector<1x1x32x2xf32> to vector<32x2xf32>
    %62 = vector.shape_cast %59 : vector<32x2xf32> to vector<1x1x32x2xf32>
    tpu.vector_store %arg6[%c0_43, %c1_44, %c0_45, %c0_46], %62 {strides = array<i32>} : memref<1x2x32x2xf32, #tpu.memory_space<vmem>>, vector<1x1x32x2xf32>,
    return
  }
  func.func @transform_0(%arg0: i32, %arg1: i32) -> (i32, i32, i32) {
    %c0_i32 = arith.constant 0 : i32
    %c0_i32_0 = arith.constant 0 : i32
    return %arg0, %c0_i32, %arg1 : i32, i32, i32
  }
  func.func @transform_1(%arg0: i32, %arg1: i32) -> (i32, i32, i32) {
    %c0_i32 = arith.constant 0 : i32
    %c0_i32_0 = arith.constant 0 : i32
    %c0_i32_1 = arith.constant 0 : i32
    %c0_i32_2 = arith.constant 0 : i32
    return %c0_i32, %c0_i32_0, %c0_i32_1 : i32, i32, i32
  }
  func.func @transform_2(%arg0: i32, %arg1: i32) -> (i32, i32, i32) {
    %c0_i32 = arith.constant 0 : i32
    %c0_i32_0 = arith.constant 0 : i32
    %c0_i32_1 = arith.constant 0 : i32
    %c0_i32_2 = arith.constant 0 : i32
    return %c0_i32, %c0_i32_0, %c0_i32_1 : i32, i32, i32
  }
  func.func @transform_3(%arg0: i32, %arg1: i32) -> (i32, i32, i32) {
    %c0_i32 = arith.constant 0 : i32
    %c0_i32_0 = arith.constant 0 : i32
    %c0_i32_1 = arith.constant 0 : i32
    %c0_i32_2 = arith.constant 0 : i32
    return %c0_i32, %c0_i32_0, %c0_i32_1 : i32, i32, i32
  }
  func.func @transform_4(%arg0: i32, %arg1: i32) -> (i32, i32, i32, i32) {
    %c0_i32 = arith.constant 0 : i32
    %c0_i32_0 = arith.constant 0 : i32
    %c0_i32_1 = arith.constant 0 : i32
    %c0_i32_2 = arith.constant 0 : i32
    return %arg0, %c0_i32, %c0_i32_0, %c0_i32_1 : i32, i32, i32, i32
  }
}

module attributes {stable_mosaic.version = 11 : i64} {
  func.func @apply_kernel(%arg0: i32, %arg1: i32, %arg2: memref<1x32x128xf32, #tpu.memory_space<vmem>>, %arg3: memref<2x32x32xf32, #tpu.memory_space<vmem>>, %arg4: memref<2x32x32xf32, #tpu.memory_space<vmem>>, %arg5: memref<2x32x2xf32, #tpu.memory_space<vmem>>, %arg6: memref<2x14x32xf32, #tpu.memory_space<vmem>>, %arg7: memref<14x1xf32, #tpu.memory_space<vmem>>, %arg8: memref<1x14x128xf32, #tpu.memory_space<vmem>>) attributes {dimension_semantics = [#tpu.dimension_semantics<parallel>, #tpu.dimension_semantics<parallel>], iteration_bounds = array<i64: 2, 3>, scalar_prefetch = 0 : i64, scratch_operands = 0 : i64, tpu.core_type = #tpu.core_type<tc>, window_params = [{transform_indices = @transform_0, window_bounds = array<i64: 1, 32, 128>}, {pipeline_mode = #tpu.pipeline_mode<synchronous>, transform_indices = @transform_1, window_bounds = array<i64: 2, 32, 32>}, {pipeline_mode = #tpu.pipeline_mode<synchronous>, transform_indices = @transform_2, window_bounds = array<i64: 2, 32, 32>}, {pipeline_mode = #tpu.pipeline_mode<synchronous>, transform_indices = @transform_3, window_bounds = array<i64: 2, 32, 2>}, {pipeline_mode = #tpu.pipeline_mode<synchronous>, transform_indices = @transform_4, window_bounds = array<i64: 2, 14, 32>}, {pipeline_mode = #tpu.pipeline_mode<synchronous>, transform_indices = @transform_5, window_bounds = array<i64: 14, 1>}, {transform_indices = @transform_6, window_bounds = array<i64: 1, 14, 128>}]} {
    %c0 = arith.constant 0 : index
    %c0_0 = arith.constant 0 : index
    %c0_1 = arith.constant 0 : index
    %0 = vector.load %arg2[%c0, %c0_0, %c0_1] : memref<1x32x128xf32, #tpu.memory_space<vmem>>, vector<1x32x128xf32>
    %1 = vector.shape_cast %0 : vector<1x32x128xf32> to vector<32x128xf32>
    %c0_2 = arith.constant 0 : index
    %c0_3 = arith.constant 0 : index
    %c0_4 = arith.constant 0 : index
    %2 = vector.load %arg3[%c0_2, %c0_3, %c0_4] : memref<2x32x32xf32, #tpu.memory_space<vmem>>, vector<1x32x32xf32>
    %3 = vector.shape_cast %2 : vector<1x32x32xf32> to vector<32x32xf32>
    %cst = arith.constant dense<0.000000e+00> : vector<32x128xf32>
    %4 = tpu.matmul %3, %1, %cst {dimension_numbers = #tpu.dot_dimension_numbers<[1], [0], [0], [1], [0, 0, 1, 1], [], []>} : vector<32x32xf32>, vector<32x128xf32>, vector<32x128xf32> -> vector<32x128xf32>
    %c0_5 = arith.constant 0 : index
    %c0_6 = arith.constant 0 : index
    %c0_7 = arith.constant 0 : index
    %5 = vector.load %arg5[%c0_5, %c0_6, %c0_7] : memref<2x32x2xf32, #tpu.memory_space<vmem>>, vector<1x32x1xf32>
    %6 = vector.shape_cast %5 : vector<1x32x1xf32> to vector<32x1xf32>
    %7 = vector.broadcast %6 : vector<32x1xf32> to vector<32x128xf32>
    %8 = arith.addf %4, %7 : vector<32x128xf32>
    %cst_8 = arith.constant 2.000000e+01 : f32
    %9 = vector.broadcast %cst_8 : f32 to vector<32x128xf32>
    %10 = arith.minimumf %8, %9 : vector<32x128xf32>
    %11 = math.exp %10 : vector<32x128xf32>
    %12 = math.log1p %11 : vector<32x128xf32>
    %cst_9 = arith.constant 2.000000e+01 : f32
    %13 = vector.broadcast %cst_9 : f32 to vector<32x128xf32>
    %14 = arith.cmpf ogt, %8, %13 : vector<32x128xf32>
    %15 = arith.select %14, %8, %12 : vector<32x128xi1>, vector<32x128xf32>
    %c1 = arith.constant 1 : index
    %c0_10 = arith.constant 0 : index
    %c0_11 = arith.constant 0 : index
    %16 = vector.load %arg3[%c1, %c0_10, %c0_11] : memref<2x32x32xf32, #tpu.memory_space<vmem>>, vector<1x32x32xf32>
    %17 = vector.shape_cast %16 : vector<1x32x32xf32> to vector<32x32xf32>
    %cst_12 = arith.constant dense<0.000000e+00> : vector<32x128xf32>
    %18 = tpu.matmul %17, %1, %cst_12 {dimension_numbers = #tpu.dot_dimension_numbers<[1], [0], [0], [1], [0, 0, 1, 1], [], []>} : vector<32x32xf32>, vector<32x128xf32>, vector<32x128xf32> -> vector<32x128xf32>
    %c1_13 = arith.constant 1 : index
    %c0_14 = arith.constant 0 : index
    %c0_15 = arith.constant 0 : index
    %19 = vector.load %arg5[%c1_13, %c0_14, %c0_15] : memref<2x32x2xf32, #tpu.memory_space<vmem>>, vector<1x32x1xf32>
    %20 = vector.shape_cast %19 : vector<1x32x1xf32> to vector<32x1xf32>
    %21 = vector.broadcast %20 : vector<32x1xf32> to vector<32x128xf32>
    %22 = arith.addf %18, %21 : vector<32x128xf32>
    %cst_16 = arith.constant 2.000000e+01 : f32
    %23 = vector.broadcast %cst_16 : f32 to vector<32x128xf32>
    %24 = arith.minimumf %22, %23 : vector<32x128xf32>
    %25 = math.exp %24 : vector<32x128xf32>
    %26 = math.log1p %25 : vector<32x128xf32>
    %cst_17 = arith.constant 2.000000e+01 : f32
    %27 = vector.broadcast %cst_17 : f32 to vector<32x128xf32>
    %28 = arith.cmpf ogt, %22, %27 : vector<32x128xf32>
    %29 = arith.select %28, %22, %26 : vector<32x128xi1>, vector<32x128xf32>
    %c0_18 = arith.constant 0 : index
    %c0_19 = arith.constant 0 : index
    %c0_20 = arith.constant 0 : index
    %30 = vector.load %arg4[%c0_18, %c0_19, %c0_20] : memref<2x32x32xf32, #tpu.memory_space<vmem>>, vector<1x32x32xf32>
    %31 = vector.shape_cast %30 : vector<1x32x32xf32> to vector<32x32xf32>
    %cst_21 = arith.constant dense<0.000000e+00> : vector<32x128xf32>
    %32 = tpu.matmul %31, %15, %cst_21 {dimension_numbers = #tpu.dot_dimension_numbers<[1], [0], [0], [1], [0, 0, 1, 1], [], []>} : vector<32x32xf32>, vector<32x128xf32>, vector<32x128xf32> -> vector<32x128xf32>
    %c0_22 = arith.constant 0 : index
    %c0_23 = arith.constant 0 : index
    %c1_24 = arith.constant 1 : index
    %33 = vector.load %arg5[%c0_22, %c0_23, %c1_24] : memref<2x32x2xf32, #tpu.memory_space<vmem>>, vector<1x32x1xf32>
    %34 = vector.shape_cast %33 : vector<1x32x1xf32> to vector<32x1xf32>
    %35 = vector.broadcast %34 : vector<32x1xf32> to vector<32x128xf32>
    %36 = arith.addf %32, %35 : vector<32x128xf32>
    %cst_25 = arith.constant 2.000000e+01 : f32
    %37 = vector.broadcast %cst_25 : f32 to vector<32x128xf32>
    %38 = arith.minimumf %36, %37 : vector<32x128xf32>
    %39 = math.exp %38 : vector<32x128xf32>
    %40 = math.log1p %39 : vector<32x128xf32>
    %cst_26 = arith.constant 2.000000e+01 : f32
    %41 = vector.broadcast %cst_26 : f32 to vector<32x128xf32>
    %42 = arith.cmpf ogt, %36, %41 : vector<32x128xf32>
    %43 = arith.select %42, %36, %40 : vector<32x128xi1>, vector<32x128xf32>
    %c1_27 = arith.constant 1 : index
    %c0_28 = arith.constant 0 : index
    %c0_29 = arith.constant 0 : index
    %44 = vector.load %arg4[%c1_27, %c0_28, %c0_29] : memref<2x32x32xf32, #tpu.memory_space<vmem>>, vector<1x32x32xf32>
    %45 = vector.shape_cast %44 : vector<1x32x32xf32> to vector<32x32xf32>
    %cst_30 = arith.constant dense<0.000000e+00> : vector<32x128xf32>
    %46 = tpu.matmul %45, %29, %cst_30 {dimension_numbers = #tpu.dot_dimension_numbers<[1], [0], [0], [1], [0, 0, 1, 1], [], []>} : vector<32x32xf32>, vector<32x128xf32>, vector<32x128xf32> -> vector<32x128xf32>
    %c1_31 = arith.constant 1 : index
    %c0_32 = arith.constant 0 : index
    %c1_33 = arith.constant 1 : index
    %47 = vector.load %arg5[%c1_31, %c0_32, %c1_33] : memref<2x32x2xf32, #tpu.memory_space<vmem>>, vector<1x32x1xf32>
    %48 = vector.shape_cast %47 : vector<1x32x1xf32> to vector<32x1xf32>
    %49 = vector.broadcast %48 : vector<32x1xf32> to vector<32x128xf32>
    %50 = arith.addf %46, %49 : vector<32x128xf32>
    %cst_34 = arith.constant 2.000000e+01 : f32
    %51 = vector.broadcast %cst_34 : f32 to vector<32x128xf32>
    %52 = arith.minimumf %50, %51 : vector<32x128xf32>
    %53 = math.exp %52 : vector<32x128xf32>
    %54 = math.log1p %53 : vector<32x128xf32>
    %cst_35 = arith.constant 2.000000e+01 : f32
    %55 = vector.broadcast %cst_35 : f32 to vector<32x128xf32>
    %56 = arith.cmpf ogt, %50, %55 : vector<32x128xf32>
    %57 = arith.select %56, %50, %54 : vector<32x128xi1>, vector<32x128xf32>
    %c0_36 = arith.constant 0 : index
    %c0_37 = arith.constant 0 : index
    %c0_38 = arith.constant 0 : index
    %58 = vector.load %arg6[%c0_36, %c0_37, %c0_38] : memref<2x14x32xf32, #tpu.memory_space<vmem>>, vector<1x14x32xf32>
    %59 = vector.shape_cast %58 : vector<1x14x32xf32> to vector<14x32xf32>
    %cst_39 = arith.constant dense<0.000000e+00> : vector<14x128xf32>
    %60 = tpu.matmul %59, %43, %cst_39 {dimension_numbers = #tpu.dot_dimension_numbers<[1], [0], [0], [1], [0, 0, 1, 1], [], []>} : vector<14x32xf32>, vector<32x128xf32>, vector<14x128xf32> -> vector<14x128xf32>
    %c1_40 = arith.constant 1 : index
    %c0_41 = arith.constant 0 : index
    %c0_42 = arith.constant 0 : index
    %61 = vector.load %arg6[%c1_40, %c0_41, %c0_42] : memref<2x14x32xf32, #tpu.memory_space<vmem>>, vector<1x14x32xf32>
    %62 = vector.shape_cast %61 : vector<1x14x32xf32> to vector<14x32xf32>
    %cst_43 = arith.constant dense<0.000000e+00> : vector<14x128xf32>
    %63 = tpu.matmul %62, %57, %cst_43 {dimension_numbers = #tpu.dot_dimension_numbers<[1], [0], [0], [1], [0, 0, 1, 1], [], []>} : vector<14x32xf32>, vector<32x128xf32>, vector<14x128xf32> -> vector<14x128xf32>
    %64 = arith.addf %60, %63 : vector<14x128xf32>
    %c0_44 = arith.constant 0 : index
    %c0_45 = arith.constant 0 : index
    %65 = vector.load %arg7[%c0_44, %c0_45] : memref<14x1xf32, #tpu.memory_space<vmem>>, vector<14x1xf32>
    %66 = vector.broadcast %65 : vector<14x1xf32> to vector<14x128xf32>
    %67 = arith.addf %64, %66 : vector<14x128xf32>
    %68 = tpu.iota {dimensions = array<i32: 0>} : vector<14x128xi32>
    %c7_i32 = arith.constant 7 : i32
    %69 = vector.broadcast %c7_i32 : i32 to vector<14x128xi32>
    %70 = arith.cmpi sge, %68, %69 : vector<14x128xi32>
    %cst_46 = arith.constant 0.000000e+00 : f32
    %71 = vector.broadcast %cst_46 : f32 to vector<14x128xf32>
    %72 = arith.subf %71, %67 : vector<14x128xf32>
    %73 = math.exp %72 : vector<14x128xf32>
    %cst_47 = arith.constant 1.000000e+00 : f32
    %74 = vector.broadcast %cst_47 : f32 to vector<14x128xf32>
    %75 = arith.addf %74, %73 : vector<14x128xf32>
    %cst_48 = arith.constant 1.000000e+00 : f32
    %76 = vector.broadcast %cst_48 : f32 to vector<14x128xf32>
    %77 = arith.divf %76, %75 : vector<14x128xf32>
    %78 = arith.select %70, %77, %67 : vector<14x128xi1>, vector<14x128xf32>
    %c0_49 = arith.constant 0 : index
    %c0_50 = arith.constant 0 : index
    %c0_51 = arith.constant 0 : index
    %79 = vector.load %arg8[%c0_49, %c0_50, %c0_51] : memref<1x14x128xf32, #tpu.memory_space<vmem>>, vector<1x14x128xf32>
    %80 = vector.shape_cast %79 : vector<1x14x128xf32> to vector<14x128xf32>
    %81 = vector.shape_cast %78 : vector<14x128xf32> to vector<1x14x128xf32>
    tpu.vector_store %arg8[%c0_49, %c0_50, %c0_51], %81 {strides = array<i32>} : memref<1x14x128xf32, #tpu.memory_space<vmem>>, vector<1x14x128xf32>,
    return
  }
  func.func @transform_0(%arg0: i32, %arg1: i32) -> (i32, i32, i32) {
    %c0_i32 = arith.constant 0 : i32
    %c0_i32_0 = arith.constant 0 : i32
    return %arg0, %c0_i32, %arg1 : i32, i32, i32
  }
  func.func @transform_1(%arg0: i32, %arg1: i32) -> (i32, i32, i32) {
    %c0_i32 = arith.constant 0 : i32
    %c0_i32_0 = arith.constant 0 : i32
    %c0_i32_1 = arith.constant 0 : i32
    %c0_i32_2 = arith.constant 0 : i32
    return %c0_i32, %c0_i32_0, %c0_i32_1 : i32, i32, i32
  }
  func.func @transform_2(%arg0: i32, %arg1: i32) -> (i32, i32, i32) {
    %c0_i32 = arith.constant 0 : i32
    %c0_i32_0 = arith.constant 0 : i32
    %c0_i32_1 = arith.constant 0 : i32
    %c0_i32_2 = arith.constant 0 : i32
    return %c0_i32, %c0_i32_0, %c0_i32_1 : i32, i32, i32
  }
  func.func @transform_3(%arg0: i32, %arg1: i32) -> (i32, i32, i32) {
    %c0_i32 = arith.constant 0 : i32
    %c0_i32_0 = arith.constant 0 : i32
    %c0_i32_1 = arith.constant 0 : i32
    %c0_i32_2 = arith.constant 0 : i32
    return %c0_i32, %c0_i32_0, %c0_i32_1 : i32, i32, i32
  }
  func.func @transform_4(%arg0: i32, %arg1: i32) -> (i32, i32, i32) {
    %c0_i32 = arith.constant 0 : i32
    %c0_i32_0 = arith.constant 0 : i32
    %c0_i32_1 = arith.constant 0 : i32
    %c0_i32_2 = arith.constant 0 : i32
    return %c0_i32, %c0_i32_0, %c0_i32_1 : i32, i32, i32
  }
  func.func @transform_5(%arg0: i32, %arg1: i32) -> (i32, i32) {
    %c0_i32 = arith.constant 0 : i32
    %c0_i32_0 = arith.constant 0 : i32
    %c0_i32_1 = arith.constant 0 : i32
    return %c0_i32, %c0_i32_0 : i32, i32
  }
  func.func @transform_6(%arg0: i32, %arg1: i32) -> (i32, i32, i32) {
    %c0_i32 = arith.constant 0 : i32
    %c0_i32_0 = arith.constant 0 : i32
    return %arg0, %c0_i32, %arg1 : i32, i32, i32
  }
}

</mosaic_0001>

<llo_original>
// kernel: activate_forward.3
$region0: #{activate_forward.3}
  #allocation0 [shape = 'u32[]', space=smem, size = 0x4, offset = 0x4, fixed_abs, tag = 'smem constant byte address 0x4 - core index']
  #allocation1 [shape = 'u32[144,128]{1,0:T(1,128)}', space=vmem, size = 0x12000, scoped, tag = 'internal scratch']
  %s0 = inlined_call_operand.hbm [shape: f32[2,32,384], index: 0, kind: input, shape index: {}]
  %s1 = inlined_call_operand.vmem [shape: f32[2,32,32], index: 1, kind: output, shape index: {0}]
  %s2 = inlined_call_operand.vmem [shape: f32[2,32,1], index: 2, kind: output, shape index: {1}]
  %3 = xla_tuple %s1, %s2
  %s4 = sld [smem:[#allocation0]]
  $region53: #{activate_forward.3} parent=0
    _
  %s6 = ssub.s32 1, %s4
  %s7 = scalar_select 0, %s6, %s4
  $region1: #{activate_forward.3} parent=0
    #allocation2 [shape = 'u8[32768]{0}', space=vmem, size = 0x8000, scoped, tag = 'input window, operand 0']
    #allocation3 [shape = 's32[2]{0}', space=sflag, size = 0x8, scoped, tag = 'scoped memory for activate_forward.3']
    %8 = vsyncpa [#allocation3], 0
    %s9 = scalar_lea.sflag [#allocation3], 1
    %10 = vsyncpa %s9, 0
    loop: start=0, step=1, limit=8
    $region2: #{activate_forward.3} parent=1 // loop_pre_header
      _
    $region3: #{activate_forward.3} parent=1 // loop_header
      %s12 = sphi 0, %s16
      %p13 = scmp.ge.s32.totalorder %s12, 8
      %s19 = sphi 0, %s31
      %s20 = sphi 0, %s27
      %s21 = sphi 0, %s19
      %s22 = sphi 0, %s20
      %s23 = sphi 0, %s21
      %s24 = sphi 0, %s22
      %s36 = sphi 0, %s38
      %s39 = sphi 0, %s36
      %s40 = sphi 0, %s39
      %s56 = sphi 0, %s40
      %s62 = sphi 0, %s64
      %s65 = sphi 0, %s62
      %s66 = sphi 0, %s65
      %s82 = sphi 0, %s66
      %s88 = sphi 0, %s90
      %s91 = sphi 0, %s88
      %s92 = sphi 0, %s91
      %s108 = sphi 0, %s92
    $region4: #{activate_forward.3} parent=1 // loop_header_branch
      %15 = sbr.rel (%p13) target = $region8
    $region5: #{activate_forward.3} parent=1 // loop_body
      %s17 = ssub.s32 %s12, 1
      %s18 = ssub.s32 %s12, 2
      %s25 = sadd.s32 1, %s20
      %p26 = scmp.ge.s32.totalorder %s25, 3
      %s27 = scalar_select %p26, 0, %s25
      %s28 = sadd.s32 1, %s19
      %s29 = scalar_select %p26, %s28, %s19
      %p30 = scmp.ge.s32.totalorder %s29, 2
      %s31 = scalar_select %p30, 0, %s29
      %s32 = ssub.s32 %s19, %s31
      %s33 = ssub.s32 %s20, %s27
      %s34 = sor.u32 %s32, %s33
      %p35 = scmp.eq.s32.totalorder %s34, 0
      %s37 = sadd.s32 %s36, 1
      %s38 = scalar_select %p35, %s36, %s37
      %p41 = pneg %p35
      %p42 = scmp.eq.s32.totalorder %s12, 5
      %p43 = por %p41, %p42
      %p44 = scmp.ne.s32.totalorder %s36, %s39
      %p45 = scmp.eq.s32.totalorder %s12, 0
      %p46 = por %p44, %p45
      %p47 = scmp.ne.s32.totalorder %s36, %s39
      %p48 = scmp.eq.s32.totalorder %s17, 5
      %p49 = por %p47, %p48
      %p50 = scmp.ne.s32.totalorder %s39, %s40
      %p51 = scmp.eq.s32.totalorder %s17, 0
      %p52 = por %p50, %p51
      %p53 = scmp.ne.s32.totalorder %s39, %s40
      %p54 = scmp.eq.s32.totalorder %s18, 5
      %p55 = por %p53, %p54
      %p57 = scmp.ne.s32.totalorder %s40, %s56
      %p58 = scmp.eq.s32.totalorder %s18, 0
      %p59 = por %p57, %p58
      %s60 = ssub.s32 %s19, %s31
      %p61 = scmp.eq.s32.totalorder %s60, 0
      %s63 = sadd.s32 %s62, 1
      %s64 = scalar_select %p61, %s62, %s63
      %p67 = pneg %p61
      %p68 = scmp.eq.s32.totalorder %s12, 5
      %p69 = por %p67, %p68
      %p70 = scmp.ne.s32.totalorder %s62, %s65
      %p71 = scmp.eq.s32.totalorder %s12, 0
      %p72 = por %p70, %p71
      %p73 = scmp.ne.s32.totalorder %s62, %s65
      %p74 = scmp.eq.s32.totalorder %s17, 5
      %p75 = por %p73, %p74
      %p76 = scmp.ne.s32.totalorder %s65, %s66
      %p77 = scmp.eq.s32.totalorder %s17, 0
      %p78 = por %p76, %p77
      %p79 = scmp.ne.s32.totalorder %s65, %s66
      %p80 = scmp.eq.s32.totalorder %s18, 5
      %p81 = por %p79, %p80
      %p83 = scmp.ne.s32.totalorder %s66, %s82
      %p84 = scmp.eq.s32.totalorder %s18, 0
      %p85 = por %p83, %p84
      %s86 = ssub.s32 %s19, %s31
      %p87 = scmp.eq.s32.totalorder %s86, 0
      %s89 = sadd.s32 %s88, 1
      %s90 = scalar_select %p87, %s88, %s89
      %p93 = pneg %p87
      %p94 = scmp.eq.s32.totalorder %s12, 5
      %p95 = por %p93, %p94
      %p96 = scmp.ne.s32.totalorder %s88, %s91
      %p97 = scmp.eq.s32.totalorder %s12, 0
      %p98 = por %p96, %p97
      %p99 = scmp.ne.s32.totalorder %s88, %s91
      %p100 = scmp.eq.s32.totalorder %s17, 5
      %p101 = por %p99, %p100
      %p102 = scmp.ne.s32.totalorder %s91, %s92
      %p103 = scmp.eq.s32.totalorder %s17, 0
      %p104 = por %p102, %p103
      %p105 = scmp.ne.s32.totalorder %s91, %s92
      %p106 = scmp.eq.s32.totalorder %s18, 5
      %p107 = por %p105, %p106
      %p109 = scmp.ne.s32.totalorder %s92, %s108
      %p110 = scmp.eq.s32.totalorder %s18, 0
      %p111 = por %p109, %p110
      %p112 = scmp.le.s32.totalorder 1, %s12
      %p113 = scmp.lt.s32.totalorder %s12, 7
      %p114 = pnand %p112, %p113
      %p115 = pneg %p114
      // Predicated region
      $region9: #{activate_forward.3} parent=5 // pred_check
        _
      $region10: #{activate_forward.3} parent=5 // pred_check_branch
        %117 = sbr.rel (%p114) target = $region12
      $region11: #{activate_forward.3} parent=5 // pred_region
        %s118 = ssub.s32 %s12, 1
      $region12: #{activate_forward.3} parent=5 // pred_fallthru
        _
      %p119 = scmp.lt.s32.totalorder %s12, 6
      // Predicated region
      $region13: #{activate_forward.3} parent=5 // pred_check
        %p120 = pneg %p119
      $region14: #{activate_forward.3} parent=5 // pred_check_branch
        %122 = sbr.rel (%p120) target = $region16
      $region15: #{activate_forward.3} parent=5 // pred_region
        // Predicated region
        $region17: #{activate_forward.3} parent=15 // pred_check
          %p123 = pneg %p46
        $region18: #{activate_forward.3} parent=15 // pred_check_branch
          %125 = sbr.rel (%p123) target = $region20
        $region19: #{activate_forward.3} parent=15 // pred_region
          %s126 = sand.u32 %s36, 1
          %s127 = scalar_lea.sflag [#allocation3], %s126
          %s128 = sand.u32 %s36, 1
          %s129 = smul.addr %s128, 32
          %s130 = scalar_lea.vmem [#allocation2], %s129
          %s132 = ssub.s32 512, 512
          %133 = vsyncadd %s127, %s132
          %s134 = smul.addr %s19, 12
          %s135 = sadd.s32 %s20, %s134
          %s136 = smul.addr %s135, 128
          %s137 = scalar_lea.hbm %s0, %s136
          %s138 = sshll.u32 %s130, 4
          %s139 = int_to_ptr.vmem [resolvable:$true] %s138
          %144 = dma.hbm_to_vmem [thread:$0]  %s137, 512, %s139, %s127, 384, 128, 8
        $region20: #{activate_forward.3} parent=15 // pred_fallthru
          _
      $region16: #{activate_forward.3} parent=5 // pred_fallthru
        _
      %p145 = scmp.le.s32.totalorder 1, %s12
      %p146 = scmp.lt.s32.totalorder %s12, 7
      %p147 = pnand %p145, %p146
      %p148 = pneg %p147
      // Predicated region
      $region21: #{activate_forward.3} parent=5 // pred_check
        _
      $region22: #{activate_forward.3} parent=5 // pred_check_branch
        %150 = sbr.rel (%p147) target = $region24
      $region23: #{activate_forward.3} parent=5 // pred_region
        %s151 = ssub.s32 %s12, 1
        %s152 = sand.u32 %s39, 1
        %s153 = scalar_lea.sflag [#allocation3], %s152
        %s154 = sand.u32 %s39, 1
        %s155 = smul.addr %s154, 32
        %s156 = scalar_lea.vmem [#allocation2], %s155
        // Predicated region
        $region25: #{activate_forward.3} parent=23 // pred_check
          %p157 = pneg %p52
        $region26: #{activate_forward.3} parent=23 // pred_check_branch
          %159 = sbr.rel (%p157) target = $region28
        $region27: #{activate_forward.3} parent=23 // pred_region
          %160 = dma.done %s153, 512
        $region28: #{activate_forward.3} parent=23 // pred_fallthru
          _
        %s161 = sand.u32 %s39, 1
        %s162 = scalar_lea.sflag [#allocation3], %s161
        %s163 = sand.u32 %s39, 1
        %s164 = smul.addr %s163, 32
        %s165 = scalar_lea.vmem [#allocation2], %s164
        %p166 = pneg %p52
        %p167 = pneg %p49
        %p168 = pneg %p78
        %p169 = pneg %p75
        %p170 = scmp.lt.s32.totalorder %s21, 1
        %s171 = scalar_select %p170, %s21, 1
        %s172 = smul.addr %s171, 4
        %s173 = smul.addr %s172, 8
        %s174 = scalar_lea.vmem %s1, %s173
        %p175 = pneg %p104
        %p176 = pneg %p101
        %p177 = scmp.lt.s32.totalorder %s21, 1
        %s178 = scalar_select %p177, %s21, 1
        %s179 = smul.addr %s178, 4
        %s180 = smul.addr %s179, 8
        %s181 = scalar_lea.vmem %s2, %s180
        %p182 = scmp.lt.s32.totalorder %s21, 1
        %s183 = scalar_select %p182, %s21, 1
        %s184 = smul.addr %s183, 4
        %s185 = smul.addr %s184, 8
        %s186 = scalar_lea.vmem %s1, %s185
        %p187 = scmp.lt.s32.totalorder %s21, 1
        %s188 = scalar_select %p187, %s21, 1
        %s189 = smul.addr %s188, 4
        %s190 = smul.addr %s189, 8
        %s191 = scalar_lea.vmem %s2, %s190
        %p192 = scmp.eq.s32.totalorder %s22, 0
        // Predicated region
        $region29: #{activate_forward.3} parent=23 // pred_check
          %p193 = pneg %p192
        $region30: #{activate_forward.3} parent=23 // pred_check_branch
          %195 = sbr.rel (%p193) target = $region32
        $region31: #{activate_forward.3} parent=23 // pred_region
          %vm196 = vcmask 261120
          %197 = vst.msk [vmem:[%s186] sm:$0xff] %vm196, 0.0
          %198 = vst.msk [vmem:[%s186 + $0x8] sm:$0xff] %vm196, 0.0
          %199 = vst.msk [vmem:[%s186 + $0x10] sm:$0xff] %vm196, 0.0
          %200 = vst.msk [vmem:[%s186 + $0x18] sm:$0xff] %vm196, 0.0
          %vm201 = vcmask 7168
          %202 = vst.msk [vmem:[%s191] sm:$0xff] %vm201, 0.0
          %203 = vst.msk [vmem:[%s191 + $0x8] sm:$0xff] %vm201, 0.0
          %204 = vst.msk [vmem:[%s191 + $0x10] sm:$0xff] %vm201, 0.0
          %205 = vst.msk [vmem:[%s191 + $0x18] sm:$0xff] %vm201, 0.0
        $region32: #{activate_forward.3} parent=23 // pred_fallthru
          _
        %v206 = vld [vmem:[%s156] sm:$0xff]
        %v207 = vld [vmem:[%s156 + $0x8] sm:$0xff]
        %v208 = vld [vmem:[%s156 + $0x10] sm:$0xff]
        %v209 = vld [vmem:[%s156 + $0x18] sm:$0xff]
        %v210 = vld [vmem:[%s186] sm:$0xff]
        %v211 = vld [vmem:[%s186 + $0x8] sm:$0xff]
        %v212 = vld [vmem:[%s186 + $0x10] sm:$0xff]
        %v213 = vld [vmem:[%s186 + $0x18] sm:$0xff]
        %214 = vmatprep.subr.mxu0 0.0
        %215 = vmatpush1.xpose.msra.mxu0 %v206
        %216 = vmatprep.subr.mxu0 0.0
        %217 = vmatpush1.xpose.msra.mxu0 %v207
        %218 = vmatprep.subr.mxu0 0.0
        %219 = vmatpush1.xpose.msra.mxu0 %v208
        %220 = vmatprep.subr.mxu0 0.0
        %221 = vmatpush1.xpose.msra.mxu0 %v209
        %222 = vmatprep.subr.mxu0 0.0
        %223 = vmatpush1.xpose.msra.mxu0 0.0
        %224 = vmatprep.subr.mxu0 0.0
        %225 = vmatpush1.xpose.msra.mxu0 0.0
        %226 = vmatprep.subr.mxu0 0.0
        %227 = vmatpush1.xpose.msra.mxu0 0.0
        %228 = vmatprep.subr.mxu0 0.0
        %229 = vmatpush1.xpose.msra.mxu0 0.0
        %230 = vmatprep.subr.mxu0 0.0
        %231 = vmatpush1.xpose.msra.mxu0 0.0
        %232 = vmatprep.subr.mxu0 0.0
        %233 = vmatpush1.xpose.msra.mxu0 0.0
        %234 = vmatprep.subr.mxu0 0.0
        %235 = vmatpush1.xpose.msra.mxu0 0.0
        %236 = vmatprep.subr.mxu0 0.0
        %237 = vmatpush1.xpose.msra.mxu0 0.0
        %238 = vmatprep.subr.mxu0 0.0
        %239 = vmatpush1.xpose.msra.mxu0 0.0
        %240 = vmatprep.subr.mxu0 0.0
        %241 = vmatpush1.xpose.msra.mxu0 0.0
        %242 = vmatprep.subr.mxu0 0.0
        %243 = vmatpush1.xpose.msra.mxu0 0.0
        %244 = vmatprep.subr.mxu0 0.0
        %245 = vmatpush1.xpose.msra.mxu0 0.0
        %246 = vmatprep.subr.mxu0 0.0
        %247 = vmatpush1.xpose.msra.mxu0 0.0
        %248 = vmatprep.subr.mxu0 0.0
        %249 = vmatpush1.xpose.msra.mxu0 0.0
        %250 = vmatprep.subr.mxu0 0.0
        %251 = vmatpush1.xpose.msra.mxu0 0.0
        %252 = vmatprep.subr.mxu0 0.0
        %253 = vmatpush1.xpose.msra.mxu0 0.0
        %254 = vmatprep.subr.mxu0 0.0
        %255 = vmatpush1.xpose.msra.mxu0 0.0
        %256 = vmatprep.subr.mxu0 0.0
        %257 = vmatpush1.xpose.msra.mxu0 0.0
        %258 = vmatprep.subr.mxu0 0.0
        %259 = vmatpush1.xpose.msra.mxu0 0.0
        %260 = vmatprep.subr.mxu0 0.0
        %261 = vmatpush1.xpose.msra.mxu0 0.0
        %262 = vmatprep.subr.mxu0 0.0
        %263 = vmatpush1.xpose.msra.mxu0 0.0
        %264 = vmatprep.subr.mxu0 0.0
        %265 = vmatpush1.xpose.msra.mxu0 0.0
        %266 = vmatprep.subr.mxu0 0.0
        %267 = vmatpush1.xpose.msra.mxu0 0.0
        %268 = vmatprep.subr.mxu0 0.0
        %269 = vmatpush1.xpose.msra.mxu0 0.0
        %270 = vmatprep.subr.mxu0 0.0
        %271 = vmatpush1.xpose.msra.mxu0 0.0
        %272 = vmatprep.subr.mxu0 0.0
        %273 = vmatpush1.xpose.msra.mxu0 0.0
        %274 = vmatprep.subr.mxu0 0.0
        %275 = vmatpush1.xpose.msra.mxu0 0.0
        %276 = vmatprep.subr.mxu0 0.0
        %277 = vmatpush1.xpose.msra.mxu0 0.0
        %278 = vmatprep.mubr.f32.mxu0 0.0
        %279 = vmatmul.mubr.f32.gmra.mrb[0].mxu0 %v206
        %v280 = vpop.f32.mrb[0].mxu0
        %v281 = vadd.f32 0.0, %v280
        %v282 = vpop.f32.mrb[0].mxu0
        %283 = vmatprep.mubr.f32.mxu0 0.0
        %284 = vmatmul.mubr.f32.gmra.mrb[0].mxu0 %v207
        %v285 = vpop.f32.mrb[0].mxu0
        %v286 = vadd.f32 0.0, %v285
        %v287 = vpop.f32.mrb[0].mxu0
        %288 = vmatprep.mubr.f32.mxu0 0.0
        %289 = vmatmul.mubr.f32.gmra.mrb[0].mxu0 %v208
        %v290 = vpop.f32.mrb[0].mxu0
        %v291 = vadd.f32 0.0, %v290
        %v292 = vpop.f32.mrb[0].mxu0
        %293 = vmatprep.mubr.f32.mxu0 0.0
        %294 = vmatmul.mubr.f32.gmra.mrb[0].mxu0 %v209
        %v295 = vpop.f32.mrb[0].mxu0
        %v296 = vadd.f32 0.0, %v295
        %v297 = vpop.f32.mrb[0].mxu0
        %298 = vdwg.mxu0
        %v299 = vadd.f32 %v210, %v281
        %v300 = vadd.f32 %v211, %v286
        %v301 = vadd.f32 %v212, %v291
        %v302 = vadd.f32 %v213, %v296
        %vm303 = vcmask 261120
        %304 = vst.msk [vmem:[%s186] sm:$0xff] %vm303, %v299
        %305 = vst.msk [vmem:[%s186 + $0x8] sm:$0xff] %vm303, %v300
        %306 = vst.msk [vmem:[%s186 + $0x10] sm:$0xff] %vm303, %v301
        %307 = vst.msk [vmem:[%s186 + $0x18] sm:$0xff] %vm303, %v302
        %v308 = vld [vmem:[%s191] sm:$0xff]
        %v309 = vld [vmem:[%s191 + $0x8] sm:$0xff]
        %v310 = vld [vmem:[%s191 + $0x10] sm:$0xff]
        %v311 = vld [vmem:[%s191 + $0x18] sm:$0xff]
        %312 = vadd.xlane.f32.xlu0 %v206
        %v313 = vpop.xlane.xlu0 %312
        %314 = vadd.xlane.f32.xlu0 %v207
        %v315 = vpop.xlane.xlu0 %314
        %316 = vadd.xlane.f32.xlu0 %v208
        %v317 = vpop.xlane.xlu0 %316
        %318 = vadd.xlane.f32.xlu0 %v209
        %v319 = vpop.xlane.xlu0 %318
        %v320 = vadd.f32 %v308, %v313
        %v321 = vadd.f32 %v309, %v315
        %v322 = vadd.f32 %v310, %v317
        %v323 = vadd.f32 %v311, %v319
        %vm324 = vcmask 7168
        %325 = vst.msk [vmem:[%s191] sm:$0xff] %vm324, %v320
        %326 = vst.msk [vmem:[%s191 + $0x8] sm:$0xff] %vm324, %v321
        %327 = vst.msk [vmem:[%s191 + $0x10] sm:$0xff] %vm324, %v322
        %328 = vst.msk [vmem:[%s191 + $0x18] sm:$0xff] %vm324, %v323
        %p329 = scmp.lt.s32.totalorder %s21, 1
        %s330 = scalar_select %p329, %s21, 1
        %s331 = smul.addr %s330, 4
        %s332 = smul.addr %s331, 8
        %s333 = scalar_lea.vmem %s1, %s332
        %p334 = scmp.lt.s32.totalorder %s21, 1
        %s335 = scalar_select %p334, %s21, 1
        %s336 = smul.addr %s335, 4
        %s337 = smul.addr %s336, 8
        %s338 = scalar_lea.vmem %s2, %s337
        // Predicated region
        $region33: #{activate_forward.3} parent=23 // pred_check
          %p339 = pneg %p75
        $region34: #{activate_forward.3} parent=23 // pred_check_branch
          %341 = sbr.rel (%p339) target = $region36
        $region35: #{activate_forward.3} parent=23 // pred_region
          _
        $region36: #{activate_forward.3} parent=23 // pred_fallthru
          _
        // Predicated region
        $region37: #{activate_forward.3} parent=23 // pred_check
          %p342 = pneg %p101
        $region38: #{activate_forward.3} parent=23 // pred_check_branch
          %344 = sbr.rel (%p342) target = $region40
        $region39: #{activate_forward.3} parent=23 // pred_region
          _
        $region40: #{activate_forward.3} parent=23 // pred_fallthru
          _
      $region24: #{activate_forward.3} parent=5 // pred_fallthru
        _
      %p345 = scmp.le.s32.totalorder 2, %s12
      // Predicated region
      $region41: #{activate_forward.3} parent=5 // pred_check
        %p346 = pneg %p345
      $region42: #{activate_forward.3} parent=5 // pred_check_branch
        %348 = sbr.rel (%p346) target = $region44
      $region43: #{activate_forward.3} parent=5 // pred_region
        %s349 = ssub.s32 %s12, 2
        // Predicated region
        $region45: #{activate_forward.3} parent=43 // pred_check
          %p350 = pneg %p81
        $region46: #{activate_forward.3} parent=43 // pred_check_branch
          %352 = sbr.rel (%p350) target = $region48
        $region47: #{activate_forward.3} parent=43 // pred_region
          %p353 = scmp.lt.s32.totalorder %s23, 1
          %s354 = scalar_select %p353, %s23, 1
          %s355 = smul.addr %s354, 4
          %s356 = smul.addr %s355, 8
          %s357 = scalar_lea.vmem %s1, %s356
        $region48: #{activate_forward.3} parent=43 // pred_fallthru
          _
        // Predicated region
        $region49: #{activate_forward.3} parent=43 // pred_check
          %p358 = pneg %p107
        $region50: #{activate_forward.3} parent=43 // pred_check_branch
          %360 = sbr.rel (%p358) target = $region52
        $region51: #{activate_forward.3} parent=43 // pred_region
          %p361 = scmp.lt.s32.totalorder %s23, 1
          %s362 = scalar_select %p361, %s23, 1
          %s363 = smul.addr %s362, 4
          %s364 = smul.addr %s363, 8
          %s365 = scalar_lea.vmem %s2, %s364
        $region52: #{activate_forward.3} parent=43 // pred_fallthru
          _
      $region44: #{activate_forward.3} parent=5 // pred_fallthru
        _
    $region6: #{activate_forward.3} parent=1 // loop_footer
      %s16 = sadd.s32 1, %s12
    $region7: #{activate_forward.3} parent=1 // loop_footer_branch
      %11 = sbr.rel target = $region3
    $region8: #{activate_forward.3} parent=1 // loop_exit
      _
    %366 = vsyncpa [#allocation3], 1
    %s367 = scalar_lea.sflag [#allocation3], 1
    %368 = vsyncpa %s367, 1

// kernel: activate_forward.4
$region0: #{activate_forward.4}
  #allocation0 [shape = 'u32[]', space=smem, size = 0x4, offset = 0x4, fixed_abs, tag = 'smem constant byte address 0x4 - core index']
  #allocation1 [shape = 'u32[144,128]{1,0:T(1,128)}', space=vmem, size = 0x12000, scoped, tag = 'internal scratch']
  %s0 = inlined_call_operand.vmem [shape: f32[2,32,384], index: 0, kind: input, shape index: {}]
  %s1 = inlined_call_operand.vmem [shape: f32[2,32,32], index: 1, kind: input, shape index: {}]
  %s2 = inlined_call_operand.vmem [shape: f32[2,32,32], index: 2, kind: input, shape index: {}]
  %s3 = inlined_call_operand.vmem [shape: f32[2,32,1], index: 3, kind: input, shape index: {}]
  %s4 = inlined_call_operand.vmem [shape: f32[2,2,32,2], index: 4, kind: output, shape index: {}]
  %s5 = sld [smem:[#allocation0]]
  $region91: #{activate_forward.4} parent=0
    _
  %s7 = ssub.s32 1, %s5
  %s8 = scalar_select 0, %s7, %s5
  $region1: #{activate_forward.4} parent=0
    #allocation2 [shape = 'u8[32768]{0}', space=vmem, size = 0x8000, scoped, tag = 'input window, operand 0']
    loop: start=0, step=1, limit=8
    $region2: #{activate_forward.4} parent=1 // loop_pre_header
      _
    $region3: #{activate_forward.4} parent=1 // loop_header
      %s10 = sphi 0, %s14
      %p11 = scmp.ge.s32.totalorder %s10, 8
      %s17 = sphi 0, %s29
      %s18 = sphi 0, %s25
      %s19 = sphi 0, %s17
      %s20 = sphi 0, %s18
      %s21 = sphi 0, %s19
      %s22 = sphi 0, %s20
      %s34 = sphi 0, %s36
      %s37 = sphi 0, %s34
      %s38 = sphi 0, %s37
      %s54 = sphi 0, %s38
      %s58 = sphi 0, %s58
      %s60 = sphi 0, %s58
      %s61 = sphi 0, %s60
      %s75 = sphi 0, %s61
      %s79 = sphi 0, %s79
      %s81 = sphi 0, %s79
      %s82 = sphi 0, %s81
      %s96 = sphi 0, %s82
      %s100 = sphi 0, %s100
      %s102 = sphi 0, %s100
      %s103 = sphi 0, %s102
      %s117 = sphi 0, %s103
      %s123 = sphi 0, %s125
      %s126 = sphi 0, %s123
      %s127 = sphi 0, %s126
      %s143 = sphi 0, %s127
    $region4: #{activate_forward.4} parent=1 // loop_header_branch
      %13 = sbr.rel (%p11) target = $region8
    $region5: #{activate_forward.4} parent=1 // loop_body
      %s15 = ssub.s32 %s10, 1
      %s16 = ssub.s32 %s10, 2
      %s23 = sadd.s32 1, %s18
      %p24 = scmp.ge.s32.totalorder %s23, 3
      %s25 = scalar_select %p24, 0, %s23
      %s26 = sadd.s32 1, %s17
      %s27 = scalar_select %p24, %s26, %s17
      %p28 = scmp.ge.s32.totalorder %s27, 2
      %s29 = scalar_select %p28, 0, %s27
      %s30 = ssub.s32 %s17, %s29
      %s31 = ssub.s32 %s18, %s25
      %s32 = sor.u32 %s30, %s31
      %p33 = scmp.eq.s32.totalorder %s32, 0
      %s35 = sadd.s32 %s34, 1
      %s36 = scalar_select %p33, %s34, %s35
      %p39 = pneg %p33
      %p40 = scmp.eq.s32.totalorder %s10, 5
      %p41 = por %p39, %p40
      %p42 = scmp.ne.s32.totalorder %s34, %s37
      %p43 = scmp.eq.s32.totalorder %s10, 0
      %p44 = por %p42, %p43
      %p45 = scmp.ne.s32.totalorder %s34, %s37
      %p46 = scmp.eq.s32.totalorder %s15, 5
      %p47 = por %p45, %p46
      %p48 = scmp.ne.s32.totalorder %s37, %s38
      %p49 = scmp.eq.s32.totalorder %s15, 0
      %p50 = por %p48, %p49
      %p51 = scmp.ne.s32.totalorder %s37, %s38
      %p52 = scmp.eq.s32.totalorder %s16, 5
      %p53 = por %p51, %p52
      %p55 = scmp.ne.s32.totalorder %s38, %s54
      %p56 = scmp.eq.s32.totalorder %s16, 0
      %p57 = por %p55, %p56
      %s59 = sadd.s32 %s58, 1
      %p62 = scmp.eq.s32.totalorder %s10, 5
      %p63 = scmp.ne.s32.totalorder %s58, %s60
      %p64 = scmp.eq.s32.totalorder %s10, 0
      %p65 = por %p63, %p64
      %p66 = scmp.ne.s32.totalorder %s58, %s60
      %p67 = scmp.eq.s32.totalorder %s15, 5
      %p68 = por %p66, %p67
      %p69 = scmp.ne.s32.totalorder %s60, %s61
      %p70 = scmp.eq.s32.totalorder %s15, 0
      %p71 = por %p69, %p70
      %p72 = scmp.ne.s32.totalorder %s60, %s61
      %p73 = scmp.eq.s32.totalorder %s16, 5
      %p74 = por %p72, %p73
      %p76 = scmp.ne.s32.totalorder %s61, %s75
      %p77 = scmp.eq.s32.totalorder %s16, 0
      %p78 = por %p76, %p77
      %s80 = sadd.s32 %s79, 1
      %p83 = scmp.eq.s32.totalorder %s10, 5
      %p84 = scmp.ne.s32.totalorder %s79, %s81
      %p85 = scmp.eq.s32.totalorder %s10, 0
      %p86 = por %p84, %p85
      %p87 = scmp.ne.s32.totalorder %s79, %s81
      %p88 = scmp.eq.s32.totalorder %s15, 5
      %p89 = por %p87, %p88
      %p90 = scmp.ne.s32.totalorder %s81, %s82
      %p91 = scmp.eq.s32.totalorder %s15, 0
      %p92 = por %p90, %p91
      %p93 = scmp.ne.s32.totalorder %s81, %s82
      %p94 = scmp.eq.s32.totalorder %s16, 5
      %p95 = por %p93, %p94
      %p97 = scmp.ne.s32.totalorder %s82, %s96
      %p98 = scmp.eq.s32.totalorder %s16, 0
      %p99 = por %p97, %p98
      %s101 = sadd.s32 %s100, 1
      %p104 = scmp.eq.s32.totalorder %s10, 5
      %p105 = scmp.ne.s32.totalorder %s100, %s102
      %p106 = scmp.eq.s32.totalorder %s10, 0
      %p107 = por %p105, %p106
      %p108 = scmp.ne.s32.totalorder %s100, %s102
      %p109 = scmp.eq.s32.totalorder %s15, 5
      %p110 = por %p108, %p109
      %p111 = scmp.ne.s32.totalorder %s102, %s103
      %p112 = scmp.eq.s32.totalorder %s15, 0
      %p113 = por %p111, %p112
      %p114 = scmp.ne.s32.totalorder %s102, %s103
      %p115 = scmp.eq.s32.totalorder %s16, 5
      %p116 = por %p114, %p115
      %p118 = scmp.ne.s32.totalorder %s103, %s117
      %p119 = scmp.eq.s32.totalorder %s16, 0
      %p120 = por %p118, %p119
      %s121 = ssub.s32 %s17, %s29
      %p122 = scmp.eq.s32.totalorder %s121, 0
      %s124 = sadd.s32 %s123, 1
      %s125 = scalar_select %p122, %s123, %s124
      %p128 = pneg %p122
      %p129 = scmp.eq.s32.totalorder %s10, 5
      %p130 = por %p128, %p129
      %p131 = scmp.ne.s32.totalorder %s123, %s126
      %p132 = scmp.eq.s32.totalorder %s10, 0
      %p133 = por %p131, %p132
      %p134 = scmp.ne.s32.totalorder %s123, %s126
      %p135 = scmp.eq.s32.totalorder %s15, 5
      %p136 = por %p134, %p135
      %p137 = scmp.ne.s32.totalorder %s126, %s127
      %p138 = scmp.eq.s32.totalorder %s15, 0
      %p139 = por %p137, %p138
      %p140 = scmp.ne.s32.totalorder %s126, %s127
      %p141 = scmp.eq.s32.totalorder %s16, 5
      %p142 = por %p140, %p141
      %p144 = scmp.ne.s32.totalorder %s127, %s143
      %p145 = scmp.eq.s32.totalorder %s16, 0
      %p146 = por %p144, %p145
      %p147 = scmp.le.s32.totalorder 1, %s10
      %p148 = scmp.lt.s32.totalorder %s10, 7
      %p149 = pnand %p147, %p148
      %p150 = pneg %p149
      // Predicated region
      $region9: #{activate_forward.4} parent=5 // pred_check
        _
      $region10: #{activate_forward.4} parent=5 // pred_check_branch
        %152 = sbr.rel (%p149) target = $region12
      $region11: #{activate_forward.4} parent=5 // pred_region
        %s153 = ssub.s32 %s10, 1
        // Predicated region
        $region13: #{activate_forward.4} parent=11 // pred_check
          %p154 = pneg %p71
        $region14: #{activate_forward.4} parent=11 // pred_check_branch
          %156 = sbr.rel (%p154) target = $region16
        $region15: #{activate_forward.4} parent=11 // pred_region
          _
        $region16: #{activate_forward.4} parent=11 // pred_fallthru
          _
        // Predicated region
        $region17: #{activate_forward.4} parent=11 // pred_check
          %p157 = pneg %p92
        $region18: #{activate_forward.4} parent=11 // pred_check_branch
          %159 = sbr.rel (%p157) target = $region20
        $region19: #{activate_forward.4} parent=11 // pred_region
          _
        $region20: #{activate_forward.4} parent=11 // pred_fallthru
          _
        // Predicated region
        $region21: #{activate_forward.4} parent=11 // pred_check
          %p160 = pneg %p113
        $region22: #{activate_forward.4} parent=11 // pred_check_branch
          %162 = sbr.rel (%p160) target = $region24
        $region23: #{activate_forward.4} parent=11 // pred_region
          _
        $region24: #{activate_forward.4} parent=11 // pred_fallthru
          _
      $region12: #{activate_forward.4} parent=5 // pred_fallthru
        _
      %p163 = scmp.lt.s32.totalorder %s10, 6
      // Predicated region
      $region25: #{activate_forward.4} parent=5 // pred_check
        %p164 = pneg %p163
      $region26: #{activate_forward.4} parent=5 // pred_check_branch
        %166 = sbr.rel (%p164) target = $region28
      $region27: #{activate_forward.4} parent=5 // pred_region
        // Predicated region
        $region29: #{activate_forward.4} parent=27 // pred_check
          %p167 = pneg %p44
        $region30: #{activate_forward.4} parent=27 // pred_check_branch
          %169 = sbr.rel (%p167) target = $region32
        $region31: #{activate_forward.4} parent=27 // pred_region
          %s170 = sand.u32 %s34, 1
          %s171 = sand.u32 %s34, 1
          %s172 = smul.addr %s171, 32
          %s173 = scalar_lea.vmem [#allocation2], %s172
          %s174 = smul.addr %s17, 12
          %s175 = sadd.s32 %s18, %s174
          %s176 = smul.addr %s175, 8
          %s177 = scalar_lea.vmem %s0, %s176
          // Predicated region
          $region33: #{activate_forward.4} parent=31 // pred_check
            _
          $region34: #{activate_forward.4} parent=31 // pred_check_branch
            %179 = sbr.rel (0) target = $region36
          $region35: #{activate_forward.4} parent=31 // pred_region
            // Predicated region
            $region37: #{activate_forward.4} parent=35 // pred_check
              _
            $region38: #{activate_forward.4} parent=35 // pred_check_branch
              %181 = sbr.rel (0) target = $region40
            $region39: #{activate_forward.4} parent=35 // pred_region
              // Predicated region
              $region52: #{activate_forward.4} parent=39 // pred_check
                _
              $region53: #{activate_forward.4} parent=39 // pred_check_branch
                %202 = sbr.rel (0) target = $region55
              $region54: #{activate_forward.4} parent=39 // pred_region
                loop: start=0, step=1, limit=1
                $region56: #{activate_forward.4} parent=54 // loop_pre_header
                  _
                $region57: #{activate_forward.4} parent=54 // loop_header
                  %s204 = sphi 0, %s208
                  %p205 = scmp.ge.s32.totalorder %s204, 1
                  %s209 = sphi %s177, %s177
                  %s210 = sphi %s173, %s173
                $region58: #{activate_forward.4} parent=54 // loop_header_branch
                  %207 = sbr.rel (%p205) target = $region62
                $region59: #{activate_forward.4} parent=54 // loop_body
                  %v211 = vld [vmem:[%s209] sm:$0xff]
                  %212 = vst [vmem:[%s210] sm:$0xff] %v211
                  %v213 = vld [vmem:[%s209 + $0x18] sm:$0xff]
                  %214 = vst [vmem:[%s210 + $0x8] sm:$0xff] %v213
                  %v215 = vld [vmem:[%s209 + $0x30] sm:$0xff]
                  %216 = vst [vmem:[%s210 + $0x10] sm:$0xff] %v215
                  %v217 = vld [vmem:[%s209 + $0x48] sm:$0xff]
                  %218 = vst [vmem:[%s210 + $0x18] sm:$0xff] %v217
                $region60: #{activate_forward.4} parent=54 // loop_footer
                  %s208 = sadd.s32 1, %s204
                $region61: #{activate_forward.4} parent=54 // loop_footer_branch
                  %203 = sbr.rel target = $region57
                $region62: #{activate_forward.4} parent=54 // loop_exit
                  _
              $region55: #{activate_forward.4} parent=39 // pred_fallthru
                _
              // Predicated region
              $region63: #{activate_forward.4} parent=39 // pred_check
                _
              $region64: #{activate_forward.4} parent=39 // pred_check_branch
                %220 = sbr.rel target = $region66
              $region65: #{activate_forward.4} parent=39 // pred_region
                _
              $region66: #{activate_forward.4} parent=39 // pred_fallthru
                _
            $region40: #{activate_forward.4} parent=35 // pred_fallthru
              _
            // Predicated region
            $region41: #{activate_forward.4} parent=35 // pred_check
              _
            $region42: #{activate_forward.4} parent=35 // pred_check_branch
              %183 = sbr.rel target = $region44
            $region43: #{activate_forward.4} parent=35 // pred_region
              loop: start=0, step=1, limit=1
              $region45: #{activate_forward.4} parent=43 // loop_pre_header
                _
              $region46: #{activate_forward.4} parent=43 // loop_header
                %s186 = sphi 0, %s190
                %p187 = scmp.ge.s32.totalorder %s186, 1
                %s191 = sphi %s177, %s177
                %s192 = sphi %s173, %s173
              $region47: #{activate_forward.4} parent=43 // loop_header_branch
                %189 = sbr.rel (%p187) target = $region51
              $region48: #{activate_forward.4} parent=43 // loop_body
                %v193 = vld [vmem:[%s191] sm:$0xff]
                %194 = vst [vmem:[%s192] sm:$0xff] %v193
                %v195 = vld [vmem:[%s191 + $0x18] sm:$0xff]
                %196 = vst [vmem:[%s192 + $0x8] sm:$0xff] %v195
                %v197 = vld [vmem:[%s191 + $0x30] sm:$0xff]
                %198 = vst [vmem:[%s192 + $0x10] sm:$0xff] %v197
                %v199 = vld [vmem:[%s191 + $0x48] sm:$0xff]
                %200 = vst [vmem:[%s192 + $0x18] sm:$0xff] %v199
              $region49: #{activate_forward.4} parent=43 // loop_footer
                %s190 = sadd.s32 1, %s186
              $region50: #{activate_forward.4} parent=43 // loop_footer_branch
                %185 = sbr.rel target = $region46
              $region51: #{activate_forward.4} parent=43 // loop_exit
                _
            $region44: #{activate_forward.4} parent=35 // pred_fallthru
              _
          $region36: #{activate_forward.4} parent=31 // pred_fallthru
            _
          %221 = vnop
        $region32: #{activate_forward.4} parent=27 // pred_fallthru
          _
      $region28: #{activate_forward.4} parent=5 // pred_fallthru
        _
      %p222 = scmp.le.s32.totalorder 1, %s10
      %p223 = scmp.lt.s32.totalorder %s10, 7
      %p224 = pnand %p222, %p223
      %p225 = pneg %p224
      // Predicated region
      $region67: #{activate_forward.4} parent=5 // pred_check
        _
      $region68: #{activate_forward.4} parent=5 // pred_check_branch
        %227 = sbr.rel (%p224) target = $region70
      $region69: #{activate_forward.4} parent=5 // pred_region
        %s228 = ssub.s32 %s10, 1
        %s229 = sand.u32 %s37, 1
        %s230 = sand.u32 %s37, 1
        %s231 = smul.addr %s230, 32
        %s232 = scalar_lea.vmem [#allocation2], %s231
        // Predicated region
        $region71: #{activate_forward.4} parent=69 // pred_check
          %p233 = pneg %p50
        $region72: #{activate_forward.4} parent=69 // pred_check_branch
          %235 = sbr.rel (%p233) target = $region74
        $region73: #{activate_forward.4} parent=69 // pred_region
          _
        $region74: #{activate_forward.4} parent=69 // pred_fallthru
          _
        %s236 = sand.u32 %s37, 1
        %s237 = sand.u32 %s37, 1
        %s238 = smul.addr %s237, 32
        %s239 = scalar_lea.vmem [#allocation2], %s238
        %p240 = pneg %p50
        %p241 = pneg %p47
        %p242 = pneg %p71
        %p243 = pneg %p68
        %p244 = pneg %p92
        %p245 = pneg %p89
        %p246 = pneg %p113
        %p247 = pneg %p110
        %p248 = pneg %p139
        %p249 = pneg %p136
        %p250 = scmp.lt.s32.totalorder %s19, 1
        %s251 = scalar_select %p250, %s19, 1
        %s252 = smul.addr %s251, 8
        %s253 = smul.addr %s252, 8
        %s254 = scalar_lea.vmem %s4, %s253
        %p255 = scmp.lt.s32.totalorder %s19, 1
        %s256 = scalar_select %p255, %s19, 1
        %s257 = smul.addr %s256, 8
        %s258 = smul.addr %s257, 8
        %s259 = scalar_lea.vmem %s4, %s258
        %p260 = scmp.eq.s32.totalorder %s20, 0
        // Predicated region
        $region75: #{activate_forward.4} parent=69 // pred_check
          %p261 = pneg %p260
        $region76: #{activate_forward.4} parent=69 // pred_check_branch
          %263 = sbr.rel (%p261) target = $region78
        $region77: #{activate_forward.4} parent=69 // pred_region
          %vm264 = vcmask 15360
          %265 = vst.msk [vmem:[%s259] sm:$0xff] %vm264, 0.0
          %266 = vst.msk [vmem:[%s259 + $0x8] sm:$0xff] %vm264, 0.0
          %267 = vst.msk [vmem:[%s259 + $0x10] sm:$0xff] %vm264, 0.0
          %268 = vst.msk [vmem:[%s259 + $0x18] sm:$0xff] %vm264, 0.0
          %269 = vst.msk [vmem:[%s259 + $0x20] sm:$0xff] %vm264, 0.0
          %270 = vst.msk [vmem:[%s259 + $0x28] sm:$0xff] %vm264, 0.0
          %271 = vst.msk [vmem:[%s259 + $0x30] sm:$0xff] %vm264, 0.0
          %272 = vst.msk [vmem:[%s259 + $0x38] sm:$0xff] %vm264, 0.0
        $region78: #{activate_forward.4} parent=69 // pred_fallthru
          _
        %v273 = vld [vmem:[%s232] sm:$0xff]
        %v274 = vld [vmem:[%s232 + $0x8] sm:$0xff]
        %v275 = vld [vmem:[%s232 + $0x10] sm:$0xff]
        %v276 = vld [vmem:[%s232 + $0x18] sm:$0xff]
        %v277 = vld [vmem:[%s1] sm:$0xff]
        %v278 = vld [vmem:[%s1 + $0x8] sm:$0xff]
        %v279 = vld [vmem:[%s1 + $0x10] sm:$0xff]
        %v280 = vld [vmem:[%s1 + $0x18] sm:$0xff]
        %v281 = vld [vmem:[%s3] sm:$0xff]
        %v282 = vld [vmem:[%s3 + $0x8] sm:$0xff]
        %v283 = vld [vmem:[%s3 + $0x10] sm:$0xff]
        %v284 = vld [vmem:[%s3 + $0x18] sm:$0xff]
        %286 = vset.pattern.permute.xlu0 0
        %287 = vperm.xlu0 %286, %v281
        %v288 = vpop.permute.xlu0 %287
        %291 = vset.pattern.permute.xlu0 0
        %292 = vperm.xlu0 %291, %v282
        %v293 = vpop.permute.xlu0 %292
        %296 = vset.pattern.permute.xlu0 0
        %297 = vperm.xlu0 %296, %v283
        %v298 = vpop.permute.xlu0 %297
        %301 = vset.pattern.permute.xlu0 0
        %302 = vperm.xlu0 %301, %v284
        %v303 = vpop.permute.xlu0 %302
        %vm305 = vcmask 261120
        %v307 = vsel %vm305, %v277, 0
        %v310 = vsel %vm305, %v278, 0
        %v313 = vsel %vm305, %v279, 0
        %v316 = vsel %vm305, %v280, 0
        %318 = vmatprep.subr.mxu0 0.0
        %319 = vmatpush1.msra.mxu0 %v273
        %320 = vmatprep.subr.mxu0 0.0
        %321 = vmatpush1.msra.mxu0 %v274
        %322 = vmatprep.subr.mxu0 0.0
        %323 = vmatpush1.msra.mxu0 %v275
        %324 = vmatprep.subr.mxu0 0.0
        %325 = vmatpush1.msra.mxu0 %v276
        %326 = vmatprep.subr.mxu0 0.0
        %327 = vmatpush1.msra.mxu0 0.0
        %328 = vmatprep.subr.mxu0 0.0
        %329 = vmatpush1.msra.mxu0 0.0
        %330 = vmatprep.subr.mxu0 0.0
        %331 = vmatpush1.msra.mxu0 0.0
        %332 = vmatprep.subr.mxu0 0.0
        %333 = vmatpush1.msra.mxu0 0.0
        %334 = vmatprep.subr.mxu0 0.0
        %335 = vmatpush1.msra.mxu0 0.0
        %336 = vmatprep.subr.mxu0 0.0
        %337 = vmatpush1.msra.mxu0 0.0
        %338 = vmatprep.subr.mxu0 0.0
        %339 = vmatpush1.msra.mxu0 0.0
        %340 = vmatprep.subr.mxu0 0.0
        %341 = vmatpush1.msra.mxu0 0.0
        %342 = vmatprep.subr.mxu0 0.0
        %343 = vmatpush1.msra.mxu0 0.0
        %344 = vmatprep.subr.mxu0 0.0
        %345 = vmatpush1.msra.mxu0 0.0
        %346 = vmatprep.subr.mxu0 0.0
        %347 = vmatpush1.msra.mxu0 0.0
        %348 = vmatprep.subr.mxu0 0.0
        %349 = vmatpush1.msra.mxu0 0.0
        %350 = vmatprep.subr.mxu0 0.0
        %351 = vmatpush1.msra.mxu0 0.0
        %352 = vmatprep.subr.mxu0 0.0
        %353 = vmatpush1.msra.mxu0 0.0
        %354 = vmatprep.subr.mxu0 0.0
        %355 = vmatpush1.msra.mxu0 0.0
        %356 = vmatprep.subr.mxu0 0.0
        %357 = vmatpush1.msra.mxu0 0.0
        %358 = vmatprep.subr.mxu0 0.0
        %359 = vmatpush1.msra.mxu0 0.0
        %360 = vmatprep.subr.mxu0 0.0
        %361 = vmatpush1.msra.mxu0 0.0
        %362 = vmatprep.subr.mxu0 0.0
        %363 = vmatpush1.msra.mxu0 0.0
        %364 = vmatprep.subr.mxu0 0.0
        %365 = vmatpush1.msra.mxu0 0.0
        %366 = vmatprep.subr.mxu0 0.0
        %367 = vmatpush1.msra.mxu0 0.0
        %368 = vmatprep.subr.mxu0 0.0
        %369 = vmatpush1.msra.mxu0 0.0
        %370 = vmatprep.subr.mxu0 0.0
        %371 = vmatpush1.msra.mxu0 0.0
        %372 = vmatprep.subr.mxu0 0.0
        %373 = vmatpush1.msra.mxu0 0.0
        %374 = vmatprep.subr.mxu0 0.0
        %375 = vmatpush1.msra.mxu0 0.0
        %376 = vmatprep.subr.mxu0 0.0
        %377 = vmatpush1.msra.mxu0 0.0
        %378 = vmatprep.subr.mxu0 0.0
        %379 = vmatpush1.msra.mxu0 0.0
        %380 = vmatprep.subr.mxu0 0.0
        %381 = vmatpush1.msra.mxu0 0.0
        %382 = vmatprep.mubr.f32.mxu0 0.0
        %383 = vmatmul.mubr.f32.gmra.mrb[0].mxu0 %v307
        %v384 = vpop.f32.mrb[0].mxu0
        %v385 = vadd.f32 %v288, %v384
        %v386 = vpop.f32.mrb[0].mxu0
        %387 = vmatprep.mubr.f32.mxu0 0.0
        %388 = vmatmul.mubr.f32.gmra.mrb[0].mxu0 %v310
        %v389 = vpop.f32.mrb[0].mxu0
        %v390 = vadd.f32 %v293, %v389
        %v391 = vpop.f32.mrb[0].mxu0
        %392 = vmatprep.mubr.f32.mxu0 0.0
        %393 = vmatmul.mubr.f32.gmra.mrb[0].mxu0 %v313
        %v394 = vpop.f32.mrb[0].mxu0
        %v395 = vadd.f32 %v298, %v394
        %v396 = vpop.f32.mrb[0].mxu0
        %397 = vmatprep.mubr.f32.mxu0 0.0
        %398 = vmatmul.mubr.f32.gmra.mrb[0].mxu0 %v316
        %v399 = vpop.f32.mrb[0].mxu0
        %v400 = vadd.f32 %v303, %v399
        %v401 = vpop.f32.mrb[0].mxu0
        %402 = vdwg.mxu0
        %v403 = vmin.f32 %v385, 20.0
        %v404 = vmin.f32 %v390, 20.0
        %v405 = vmin.f32 %v395, 20.0
        %v406 = vmin.f32 %v400, 20.0
        %v407 = vmul.f32 %v403, 1.442695
        %v408 = vpow.pop %v407
        %v409 = vmul.f32 %v404, 1.442695
        %v410 = vpow.pop %v409
        %v411 = vmul.f32 %v405, 1.442695
        %v412 = vpow.pop %v411
        %v413 = vmul.f32 %v406, 1.442695
        %v414 = vpow.pop %v413
        %v415 = vadd.f32 %v408, 1.0
        %v416 = vlog2.pop %v415
        %v417 = vmul.f32 %v416, 0.6931472
        %v418 = vmul.f32 -0.5, %v408
        %v419 = vadd.f32 %v418, 1.0
        %v420 = vmul.f32 %v419, %v408
        %v421 = vand.u32 2147483647, %v408
        %vm422 = vcmp.lt.f32.partialorder %v421, 0.0004427343
        %v423 = vsel %vm422, %v420, %v417
        %v424 = vadd.f32 %v410, 1.0
        %v425 = vlog2.pop %v424
        %v426 = vmul.f32 %v425, 0.6931472
        %v427 = vmul.f32 -0.5, %v410
        %v428 = vadd.f32 %v427, 1.0
        %v429 = vmul.f32 %v428, %v410
        %v430 = vand.u32 2147483647, %v410
        %vm431 = vcmp.lt.f32.partialorder %v430, 0.0004427343
        %v432 = vsel %vm431, %v429, %v426
        %v433 = vadd.f32 %v412, 1.0
        %v434 = vlog2.pop %v433
        %v435 = vmul.f32 %v434, 0.6931472
        %v436 = vmul.f32 -0.5, %v412
        %v437 = vadd.f32 %v436, 1.0
        %v438 = vmul.f32 %v437, %v412
        %v439 = vand.u32 2147483647, %v412
        %vm440 = vcmp.lt.f32.partialorder %v439, 0.0004427343
        %v441 = vsel %vm440, %v438, %v435
        %v442 = vadd.f32 %v414, 1.0
        %v443 = vlog2.pop %v442
        %v444 = vmul.f32 %v443, 0.6931472
        %v445 = vmul.f32 -0.5, %v414
        %v446 = vadd.f32 %v445, 1.0
        %v447 = vmul.f32 %v446, %v414
        %v448 = vand.u32 2147483647, %v414
        %vm449 = vcmp.lt.f32.partialorder %v448, 0.0004427343
        %v450 = vsel %vm449, %v447, %v444
        %vm451 = vcmp.gt.f32.partialorder %v385, 20.0
        %vm452 = vcmp.gt.f32.partialorder %v390, 20.0
        %vm453 = vcmp.gt.f32.partialorder %v395, 20.0
        %vm454 = vcmp.gt.f32.partialorder %v400, 20.0
        %v455 = vsel %vm451, %v385, %v423
        %v456 = vsel %vm452, %v390, %v432
        %v457 = vsel %vm453, %v395, %v441
        %v458 = vsel %vm454, %v400, %v450
        %s459 = scalar_lea.vmem %s1, 32
        %v460 = vld [vmem:[%s459] sm:$0xff]
        %v461 = vld [vmem:[%s459 + $0x8] sm:$0xff]
        %v462 = vld [vmem:[%s459 + $0x10] sm:$0xff]
        %v463 = vld [vmem:[%s459 + $0x18] sm:$0xff]
        %s464 = scalar_lea.vmem %s3, 32
        %v465 = vld [vmem:[%s464] sm:$0xff]
        %v466 = vld [vmem:[%s464 + $0x8] sm:$0xff]
        %v467 = vld [vmem:[%s464 + $0x10] sm:$0xff]
        %v468 = vld [vmem:[%s464 + $0x18] sm:$0xff]
        %470 = vset.pattern.permute.xlu0 0
        %471 = vperm.xlu0 %470, %v465
        %v472 = vpop.permute.xlu0 %471
        %475 = vset.pattern.permute.xlu0 0
        %476 = vperm.xlu0 %475, %v466
        %v477 = vpop.permute.xlu0 %476
        %480 = vset.pattern.permute.xlu0 0
        %481 = vperm.xlu0 %480, %v467
        %v482 = vpop.permute.xlu0 %481
        %485 = vset.pattern.permute.xlu0 0
        %486 = vperm.xlu0 %485, %v468
        %v487 = vpop.permute.xlu0 %486
        %v490 = vsel %vm305, %v460, 0
        %v493 = vsel %vm305, %v461, 0
        %v496 = vsel %vm305, %v462, 0
        %v499 = vsel %vm305, %v463, 0
        %501 = vmatprep.subr.mxu0 0.0
        %502 = vmatpush1.msra.mxu0 %v273
        %503 = vmatprep.subr.mxu0 0.0
        %504 = vmatpush1.msra.mxu0 %v274
        %505 = vmatprep.subr.mxu0 0.0
        %506 = vmatpush1.msra.mxu0 %v275
        %507 = vmatprep.subr.mxu0 0.0
        %508 = vmatpush1.msra.mxu0 %v276
        %509 = vmatprep.subr.mxu0 0.0
        %510 = vmatpush1.msra.mxu0 0.0
        %511 = vmatprep.subr.mxu0 0.0
        %512 = vmatpush1.msra.mxu0 0.0
        %513 = vmatprep.subr.mxu0 0.0
        %514 = vmatpush1.msra.mxu0 0.0
        %515 = vmatprep.subr.mxu0 0.0
        %516 = vmatpush1.msra.mxu0 0.0
        %517 = vmatprep.subr.mxu0 0.0
        %518 = vmatpush1.msra.mxu0 0.0
        %519 = vmatprep.subr.mxu0 0.0
        %520 = vmatpush1.msra.mxu0 0.0
        %521 = vmatprep.subr.mxu0 0.0
        %522 = vmatpush1.msra.mxu0 0.0
        %523 = vmatprep.subr.mxu0 0.0
        %524 = vmatpush1.msra.mxu0 0.0
        %525 = vmatprep.subr.mxu0 0.0
        %526 = vmatpush1.msra.mxu0 0.0
        %527 = vmatprep.subr.mxu0 0.0
        %528 = vmatpush1.msra.mxu0 0.0
        %529 = vmatprep.subr.mxu0 0.0
        %530 = vmatpush1.msra.mxu0 0.0
        %531 = vmatprep.subr.mxu0 0.0
        %532 = vmatpush1.msra.mxu0 0.0
        %533 = vmatprep.subr.mxu0 0.0
        %534 = vmatpush1.msra.mxu0 0.0
        %535 = vmatprep.subr.mxu0 0.0
        %536 = vmatpush1.msra.mxu0 0.0
        %537 = vmatprep.subr.mxu0 0.0
        %538 = vmatpush1.msra.mxu0 0.0
        %539 = vmatprep.subr.mxu0 0.0
        %540 = vmatpush1.msra.mxu0 0.0
        %541 = vmatprep.subr.mxu0 0.0
        %542 = vmatpush1.msra.mxu0 0.0
        %543 = vmatprep.subr.mxu0 0.0
        %544 = vmatpush1.msra.mxu0 0.0
        %545 = vmatprep.subr.mxu0 0.0
        %546 = vmatpush1.msra.mxu0 0.0
        %547 = vmatprep.subr.mxu0 0.0
        %548 = vmatpush1.msra.mxu0 0.0
        %549 = vmatprep.subr.mxu0 0.0
        %550 = vmatpush1.msra.mxu0 0.0
        %551 = vmatprep.subr.mxu0 0.0
        %552 = vmatpush1.msra.mxu0 0.0
        %553 = vmatprep.subr.mxu0 0.0
        %554 = vmatpush1.msra.mxu0 0.0
        %555 = vmatprep.subr.mxu0 0.0
        %556 = vmatpush1.msra.mxu0 0.0
        %557 = vmatprep.subr.mxu0 0.0
        %558 = vmatpush1.msra.mxu0 0.0
        %559 = vmatprep.subr.mxu0 0.0
        %560 = vmatpush1.msra.mxu0 0.0
        %561 = vmatprep.subr.mxu0 0.0
        %562 = vmatpush1.msra.mxu0 0.0
        %563 = vmatprep.subr.mxu0 0.0
        %564 = vmatpush1.msra.mxu0 0.0
        %565 = vmatprep.mubr.f32.mxu0 0.0
        %566 = vmatmul.mubr.f32.gmra.mrb[0].mxu0 %v490
        %v567 = vpop.f32.mrb[0].mxu0
        %v568 = vadd.f32 %v472, %v567
        %v569 = vpop.f32.mrb[0].mxu0
        %570 = vmatprep.mubr.f32.mxu0 0.0
        %571 = vmatmul.mubr.f32.gmra.mrb[0].mxu0 %v493
        %v572 = vpop.f32.mrb[0].mxu0
        %v573 = vadd.f32 %v477, %v572
        %v574 = vpop.f32.mrb[0].mxu0
        %575 = vmatprep.mubr.f32.mxu0 0.0
        %576 = vmatmul.mubr.f32.gmra.mrb[0].mxu0 %v496
        %v577 = vpop.f32.mrb[0].mxu0
        %v578 = vadd.f32 %v482, %v577
        %v579 = vpop.f32.mrb[0].mxu0
        %580 = vmatprep.mubr.f32.mxu0 0.0
        %581 = vmatmul.mubr.f32.gmra.mrb[0].mxu0 %v499
        %v582 = vpop.f32.mrb[0].mxu0
        %v583 = vadd.f32 %v487, %v582
        %v584 = vpop.f32.mrb[0].mxu0
        %585 = vdwg.mxu0
        %v586 = vmin.f32 %v568, 20.0
        %v587 = vmin.f32 %v573, 20.0
        %v588 = vmin.f32 %v578, 20.0
        %v589 = vmin.f32 %v583, 20.0
        %v590 = vmul.f32 %v586, 1.442695
        %v591 = vpow.pop %v590
        %v592 = vmul.f32 %v587, 1.442695
        %v593 = vpow.pop %v592
        %v594 = vmul.f32 %v588, 1.442695
        %v595 = vpow.pop %v594
        %v596 = vmul.f32 %v589, 1.442695
        %v597 = vpow.pop %v596
        %v598 = vadd.f32 %v591, 1.0
        %v599 = vlog2.pop %v598
        %v600 = vmul.f32 %v599, 0.6931472
        %v601 = vmul.f32 -0.5, %v591
        %v602 = vadd.f32 %v601, 1.0
        %v603 = vmul.f32 %v602, %v591
        %v604 = vand.u32 2147483647, %v591
        %vm605 = vcmp.lt.f32.partialorder %v604, 0.0004427343
        %v606 = vsel %vm605, %v603, %v600
        %v607 = vadd.f32 %v593, 1.0
        %v608 = vlog2.pop %v607
        %v609 = vmul.f32 %v608, 0.6931472
        %v610 = vmul.f32 -0.5, %v593
        %v611 = vadd.f32 %v610, 1.0
        %v612 = vmul.f32 %v611, %v593
        %v613 = vand.u32 2147483647, %v593
        %vm614 = vcmp.lt.f32.partialorder %v613, 0.0004427343
        %v615 = vsel %vm614, %v612, %v609
        %v616 = vadd.f32 %v595, 1.0
        %v617 = vlog2.pop %v616
        %v618 = vmul.f32 %v617, 0.6931472
        %v619 = vmul.f32 -0.5, %v595
        %v620 = vadd.f32 %v619, 1.0
        %v621 = vmul.f32 %v620, %v595
        %v622 = vand.u32 2147483647, %v595
        %vm623 = vcmp.lt.f32.partialorder %v622, 0.0004427343
        %v624 = vsel %vm623, %v621, %v618
        %v625 = vadd.f32 %v597, 1.0
        %v626 = vlog2.pop %v625
        %v627 = vmul.f32 %v626, 0.6931472
        %v628 = vmul.f32 -0.5, %v597
        %v629 = vadd.f32 %v628, 1.0
        %v630 = vmul.f32 %v629, %v597
        %v631 = vand.u32 2147483647, %v597
        %vm632 = vcmp.lt.f32.partialorder %v631, 0.0004427343
        %v633 = vsel %vm632, %v630, %v627
        %vm634 = vcmp.gt.f32.partialorder %v568, 20.0
        %vm635 = vcmp.gt.f32.partialorder %v573, 20.0
        %vm636 = vcmp.gt.f32.partialorder %v578, 20.0
        %vm637 = vcmp.gt.f32.partialorder %v583, 20.0
        %v638 = vsel %vm634, %v568, %v606
        %v639 = vsel %vm635, %v573, %v615
        %v640 = vsel %vm636, %v578, %v624
        %v641 = vsel %vm637, %v583, %v633
        %v642 = vld [vmem:[%s2] sm:$0xff]
        %v643 = vld [vmem:[%s2 + $0x8] sm:$0xff]
        %v644 = vld [vmem:[%s2 + $0x10] sm:$0xff]
        %v645 = vld [vmem:[%s2 + $0x18] sm:$0xff]
        %v647 = vsel %vm305, %v642, 0
        %v650 = vsel %vm305, %v643, 0
        %v653 = vsel %vm305, %v644, 0
        %v656 = vsel %vm305, %v645, 0
        %658 = vmatprep.subr.mxu0 0.0
        %659 = vmatpush1.msra.mxu0 %v455
        %660 = vmatprep.subr.mxu0 0.0
        %661 = vmatpush1.msra.mxu0 %v456
        %662 = vmatprep.subr.mxu0 0.0
        %663 = vmatpush1.msra.mxu0 %v457
        %664 = vmatprep.subr.mxu0 0.0
        %665 = vmatpush1.msra.mxu0 %v458
        %666 = vmatprep.subr.mxu0 0.0
        %667 = vmatpush1.msra.mxu0 0.0
        %668 = vmatprep.subr.mxu0 0.0
        %669 = vmatpush1.msra.mxu0 0.0
        %670 = vmatprep.subr.mxu0 0.0
        %671 = vmatpush1.msra.mxu0 0.0
        %672 = vmatprep.subr.mxu0 0.0
        %673 = vmatpush1.msra.mxu0 0.0
        %674 = vmatprep.subr.mxu0 0.0
        %675 = vmatpush1.msra.mxu0 0.0
        %676 = vmatprep.subr.mxu0 0.0
        %677 = vmatpush1.msra.mxu0 0.0
        %678 = vmatprep.subr.mxu0 0.0
        %679 = vmatpush1.msra.mxu0 0.0
        %680 = vmatprep.subr.mxu0 0.0
        %681 = vmatpush1.msra.mxu0 0.0
        %682 = vmatprep.subr.mxu0 0.0
        %683 = vmatpush1.msra.mxu0 0.0
        %684 = vmatprep.subr.mxu0 0.0
        %685 = vmatpush1.msra.mxu0 0.0
        %686 = vmatprep.subr.mxu0 0.0
        %687 = vmatpush1.msra.mxu0 0.0
        %688 = vmatprep.subr.mxu0 0.0
        %689 = vmatpush1.msra.mxu0 0.0
        %690 = vmatprep.subr.mxu0 0.0
        %691 = vmatpush1.msra.mxu0 0.0
        %692 = vmatprep.subr.mxu0 0.0
        %693 = vmatpush1.msra.mxu0 0.0
        %694 = vmatprep.subr.mxu0 0.0
        %695 = vmatpush1.msra.mxu0 0.0
        %696 = vmatprep.subr.mxu0 0.0
        %697 = vmatpush1.msra.mxu0 0.0
        %698 = vmatprep.subr.mxu0 0.0
        %699 = vmatpush1.msra.mxu0 0.0
        %700 = vmatprep.subr.mxu0 0.0
        %701 = vmatpush1.msra.mxu0 0.0
        %702 = vmatprep.subr.mxu0 0.0
        %703 = vmatpush1.msra.mxu0 0.0
        %704 = vmatprep.subr.mxu0 0.0
        %705 = vmatpush1.msra.mxu0 0.0
        %706 = vmatprep.subr.mxu0 0.0
        %707 = vmatpush1.msra.mxu0 0.0
        %708 = vmatprep.subr.mxu0 0.0
        %709 = vmatpush1.msra.mxu0 0.0
        %710 = vmatprep.subr.mxu0 0.0
        %711 = vmatpush1.msra.mxu0 0.0
        %712 = vmatprep.subr.mxu0 0.0
        %713 = vmatpush1.msra.mxu0 0.0
        %714 = vmatprep.subr.mxu0 0.0
        %715 = vmatpush1.msra.mxu0 0.0
        %716 = vmatprep.subr.mxu0 0.0
        %717 = vmatpush1.msra.mxu0 0.0
        %718 = vmatprep.subr.mxu0 0.0
        %719 = vmatpush1.msra.mxu0 0.0
        %720 = vmatprep.subr.mxu0 0.0
        %721 = vmatpush1.msra.mxu0 0.0
        %722 = vmatprep.mubr.f32.mxu0 0.0
        %723 = vmatmul.mubr.f32.gmra.mrb[0].mxu0 %v647
        %v724 = vpop.f32.mrb[0].mxu0
        %v725 = vadd.f32 0.0, %v724
        %v726 = vpop.f32.mrb[0].mxu0
        %727 = vmatprep.mubr.f32.mxu0 0.0
        %728 = vmatmul.mubr.f32.gmra.mrb[0].mxu0 %v650
        %v729 = vpop.f32.mrb[0].mxu0
        %v730 = vadd.f32 0.0, %v729
        %v731 = vpop.f32.mrb[0].mxu0
        %732 = vmatprep.mubr.f32.mxu0 0.0
        %733 = vmatmul.mubr.f32.gmra.mrb[0].mxu0 %v653
        %v734 = vpop.f32.mrb[0].mxu0
        %v735 = vadd.f32 0.0, %v734
        %v736 = vpop.f32.mrb[0].mxu0
        %737 = vmatprep.mubr.f32.mxu0 0.0
        %738 = vmatmul.mubr.f32.gmra.mrb[0].mxu0 %v656
        %v739 = vpop.f32.mrb[0].mxu0
        %v740 = vadd.f32 0.0, %v739
        %v741 = vpop.f32.mrb[0].mxu0
        %742 = vdwg.mxu0
        %s743 = scalar_lea.vmem %s2, 32
        %v744 = vld [vmem:[%s743] sm:$0xff]
        %v745 = vld [vmem:[%s743 + $0x8] sm:$0xff]
        %v746 = vld [vmem:[%s743 + $0x10] sm:$0xff]
        %v747 = vld [vmem:[%s743 + $0x18] sm:$0xff]
        %v749 = vsel %vm305, %v744, 0
        %v752 = vsel %vm305, %v745, 0
        %v755 = vsel %vm305, %v746, 0
        %v758 = vsel %vm305, %v747, 0
        %760 = vmatprep.subr.mxu0 0.0
        %761 = vmatpush1.msra.mxu0 %v638
        %762 = vmatprep.subr.mxu0 0.0
        %763 = vmatpush1.msra.mxu0 %v639
        %764 = vmatprep.subr.mxu0 0.0
        %765 = vmatpush1.msra.mxu0 %v640
        %766 = vmatprep.subr.mxu0 0.0
        %767 = vmatpush1.msra.mxu0 %v641
        %768 = vmatprep.subr.mxu0 0.0
        %769 = vmatpush1.msra.mxu0 0.0
        %770 = vmatprep.subr.mxu0 0.0
        %771 = vmatpush1.msra.mxu0 0.0
        %772 = vmatprep.subr.mxu0 0.0
        %773 = vmatpush1.msra.mxu0 0.0
        %774 = vmatprep.subr.mxu0 0.0
        %775 = vmatpush1.msra.mxu0 0.0
        %776 = vmatprep.subr.mxu0 0.0
        %777 = vmatpush1.msra.mxu0 0.0
        %778 = vmatprep.subr.mxu0 0.0
        %779 = vmatpush1.msra.mxu0 0.0
        %780 = vmatprep.subr.mxu0 0.0
        %781 = vmatpush1.msra.mxu0 0.0
        %782 = vmatprep.subr.mxu0 0.0
        %783 = vmatpush1.msra.mxu0 0.0
        %784 = vmatprep.subr.mxu0 0.0
        %785 = vmatpush1.msra.mxu0 0.0
        %786 = vmatprep.subr.mxu0 0.0
        %787 = vmatpush1.msra.mxu0 0.0
        %788 = vmatprep.subr.mxu0 0.0
        %789 = vmatpush1.msra.mxu0 0.0
        %790 = vmatprep.subr.mxu0 0.0
        %791 = vmatpush1.msra.mxu0 0.0
        %792 = vmatprep.subr.mxu0 0.0
        %793 = vmatpush1.msra.mxu0 0.0
        %794 = vmatprep.subr.mxu0 0.0
        %795 = vmatpush1.msra.mxu0 0.0
        %796 = vmatprep.subr.mxu0 0.0
        %797 = vmatpush1.msra.mxu0 0.0
        %798 = vmatprep.subr.mxu0 0.0
        %799 = vmatpush1.msra.mxu0 0.0
        %800 = vmatprep.subr.mxu0 0.0
        %801 = vmatpush1.msra.mxu0 0.0
        %802 = vmatprep.subr.mxu0 0.0
        %803 = vmatpush1.msra.mxu0 0.0
        %804 = vmatprep.subr.mxu0 0.0
        %805 = vmatpush1.msra.mxu0 0.0
        %806 = vmatprep.subr.mxu0 0.0
        %807 = vmatpush1.msra.mxu0 0.0
        %808 = vmatprep.subr.mxu0 0.0
        %809 = vmatpush1.msra.mxu0 0.0
        %810 = vmatprep.subr.mxu0 0.0
        %811 = vmatpush1.msra.mxu0 0.0
        %812 = vmatprep.subr.mxu0 0.0
        %813 = vmatpush1.msra.mxu0 0.0
        %814 = vmatprep.subr.mxu0 0.0
        %815 = vmatpush1.msra.mxu0 0.0
        %816 = vmatprep.subr.mxu0 0.0
        %817 = vmatpush1.msra.mxu0 0.0
        %818 = vmatprep.subr.mxu0 0.0
        %819 = vmatpush1.msra.mxu0 0.0
        %820 = vmatprep.subr.mxu0 0.0
        %821 = vmatpush1.msra.mxu0 0.0
        %822 = vmatprep.subr.mxu0 0.0
        %823 = vmatpush1.msra.mxu0 0.0
        %824 = vmatprep.mubr.f32.mxu0 0.0
        %825 = vmatmul.mubr.f32.gmra.mrb[0].mxu0 %v749
        %v826 = vpop.f32.mrb[0].mxu0
        %v827 = vadd.f32 0.0, %v826
        %v828 = vpop.f32.mrb[0].mxu0
        %829 = vmatprep.mubr.f32.mxu0 0.0
        %830 = vmatmul.mubr.f32.gmra.mrb[0].mxu0 %v752
        %v831 = vpop.f32.mrb[0].mxu0
        %v832 = vadd.f32 0.0, %v831
        %v833 = vpop.f32.mrb[0].mxu0
        %834 = vmatprep.mubr.f32.mxu0 0.0
        %835 = vmatmul.mubr.f32.gmra.mrb[0].mxu0 %v755
        %v836 = vpop.f32.mrb[0].mxu0
        %v837 = vadd.f32 0.0, %v836
        %v838 = vpop.f32.mrb[0].mxu0
        %839 = vmatprep.mubr.f32.mxu0 0.0
        %840 = vmatmul.mubr.f32.gmra.mrb[0].mxu0 %v758
        %v841 = vpop.f32.mrb[0].mxu0
        %v842 = vadd.f32 0.0, %v841
        %v843 = vpop.f32.mrb[0].mxu0
        %844 = vdwg.mxu0
        %v845 = vld [vmem:[%s259] sm:$0xff]
        %v846 = vld [vmem:[%s259 + $0x8] sm:$0xff]
        %v847 = vld [vmem:[%s259 + $0x10] sm:$0xff]
        %v848 = vld [vmem:[%s259 + $0x18] sm:$0xff]
        %849 = vadd.xlane.f32.xlu0 %v725
        %v850 = vpop.xlane.xlu0 %849
        %851 = vadd.xlane.f32.xlu0 %v730
        %v852 = vpop.xlane.xlu0 %851
        %853 = vadd.xlane.f32.xlu0 %v735
        %v854 = vpop.xlane.xlu0 %853
        %855 = vadd.xlane.f32.xlu0 %v740
        %v856 = vpop.xlane.xlu0 %855
        %v857 = vmul.f32 %v725, %v725
        %v858 = vmul.f32 %v730, %v730
        %v859 = vmul.f32 %v735, %v735
        %v860 = vmul.f32 %v740, %v740
        %861 = vadd.xlane.f32.xlu0 %v857
        %v862 = vpop.xlane.xlu0 %861
        %863 = vadd.xlane.f32.xlu0 %v858
        %v864 = vpop.xlane.xlu0 %863
        %865 = vadd.xlane.f32.xlu0 %v859
        %v866 = vpop.xlane.xlu0 %865
        %867 = vadd.xlane.f32.xlu0 %v860
        %v868 = vpop.xlane.xlu0 %867
        %vm869 = vcmask 7168
        %v870 = vsel %vm869, %v850, %v862
        %v871 = vsel %vm869, %v852, %v864
        %v872 = vsel %vm869, %v854, %v866
        %v873 = vsel %vm869, %v856, %v868
        %v874 = vadd.f32 %v845, %v870
        %v875 = vadd.f32 %v846, %v871
        %v876 = vadd.f32 %v847, %v872
        %v877 = vadd.f32 %v848, %v873
        %vm878 = vcmask 15360
        %879 = vst.msk [vmem:[%s259] sm:$0xff] %vm878, %v874
        %880 = vst.msk [vmem:[%s259 + $0x8] sm:$0xff] %vm878, %v875
        %881 = vst.msk [vmem:[%s259 + $0x10] sm:$0xff] %vm878, %v876
        %882 = vst.msk [vmem:[%s259 + $0x18] sm:$0xff] %vm878, %v877
        %s883 = scalar_lea.vmem %s259, 32
        %v884 = vld [vmem:[%s883] sm:$0xff]
        %v885 = vld [vmem:[%s883 + $0x8] sm:$0xff]
        %v886 = vld [vmem:[%s883 + $0x10] sm:$0xff]
        %v887 = vld [vmem:[%s883 + $0x18] sm:$0xff]
        %888 = vadd.xlane.f32.xlu0 %v827
        %v889 = vpop.xlane.xlu0 %888
        %890 = vadd.xlane.f32.xlu0 %v832
        %v891 = vpop.xlane.xlu0 %890
        %892 = vadd.xlane.f32.xlu0 %v837
        %v893 = vpop.xlane.xlu0 %892
        %894 = vadd.xlane.f32.xlu0 %v842
        %v895 = vpop.xlane.xlu0 %894
        %v896 = vmul.f32 %v827, %v827
        %v897 = vmul.f32 %v832, %v832
        %v898 = vmul.f32 %v837, %v837
        %v899 = vmul.f32 %v842, %v842
        %900 = vadd.xlane.f32.xlu0 %v896
        %v901 = vpop.xlane.xlu0 %900
        %902 = vadd.xlane.f32.xlu0 %v897
        %v903 = vpop.xlane.xlu0 %902
        %904 = vadd.xlane.f32.xlu0 %v898
        %v905 = vpop.xlane.xlu0 %904
        %906 = vadd.xlane.f32.xlu0 %v899
        %v907 = vpop.xlane.xlu0 %906
        %v908 = vsel %vm869, %v889, %v901
        %v909 = vsel %vm869, %v891, %v903
        %v910 = vsel %vm869, %v893, %v905
        %v911 = vsel %vm869, %v895, %v907
        %v912 = vadd.f32 %v884, %v908
        %v913 = vadd.f32 %v885, %v909
        %v914 = vadd.f32 %v886, %v910
        %v915 = vadd.f32 %v887, %v911
        %916 = vst.msk [vmem:[%s883] sm:$0xff] %vm878, %v912
        %917 = vst.msk [vmem:[%s883 + $0x8] sm:$0xff] %vm878, %v913
        %918 = vst.msk [vmem:[%s883 + $0x10] sm:$0xff] %vm878, %v914
        %919 = vst.msk [vmem:[%s883 + $0x18] sm:$0xff] %vm878, %v915
        %p920 = scmp.lt.s32.totalorder %s19, 1
        %s921 = scalar_select %p920, %s19, 1
        %s922 = smul.addr %s921, 8
        %s923 = smul.addr %s922, 8
        %s924 = scalar_lea.vmem %s4, %s923
        // Predicated region
        $region79: #{activate_forward.4} parent=69 // pred_check
          %p925 = pneg %p136
        $region80: #{activate_forward.4} parent=69 // pred_check_branch
          %927 = sbr.rel (%p925) target = $region82
        $region81: #{activate_forward.4} parent=69 // pred_region
          _
        $region82: #{activate_forward.4} parent=69 // pred_fallthru
          _
      $region70: #{activate_forward.4} parent=5 // pred_fallthru
        _
      %p928 = scmp.le.s32.totalorder 2, %s10
      // Predicated region
      $region83: #{activate_forward.4} parent=5 // pred_check
        %p929 = pneg %p928
      $region84: #{activate_forward.4} parent=5 // pred_check_branch
        %931 = sbr.rel (%p929) target = $region86
      $region85: #{activate_forward.4} parent=5 // pred_region
        %s932 = ssub.s32 %s10, 2
        // Predicated region
        $region87: #{activate_forward.4} parent=85 // pred_check
          %p933 = pneg %p142
        $region88: #{activate_forward.4} parent=85 // pred_check_branch
          %935 = sbr.rel (%p933) target = $region90
        $region89: #{activate_forward.4} parent=85 // pred_region
          %p936 = scmp.lt.s32.totalorder %s21, 1
          %s937 = scalar_select %p936, %s21, 1
          %s938 = smul.addr %s937, 8
          %s939 = smul.addr %s938, 8
          %s940 = scalar_lea.vmem %s4, %s939
        $region90: #{activate_forward.4} parent=85 // pred_fallthru
          _
      $region86: #{activate_forward.4} parent=5 // pred_fallthru
        _
    $region6: #{activate_forward.4} parent=1 // loop_footer
      %s14 = sadd.s32 1, %s10
    $region7: #{activate_forward.4} parent=1 // loop_footer_branch
      %9 = sbr.rel target = $region3
    $region8: #{activate_forward.4} parent=1 // loop_exit
      _

// kernel: activate_forward.5
$region0: #{activate_forward.5}
  #allocation0 [shape = 'u32[]', space=smem, size = 0x4, offset = 0x4, fixed_abs, tag = 'smem constant byte address 0x4 - core index']
  #allocation1 [shape = 'u32[144,128]{1,0:T(1,128)}', space=vmem, size = 0x12000, scoped, tag = 'internal scratch']
  %s0 = inlined_call_operand.vmem [shape: f32[2,32,384], index: 0, kind: input, shape index: {}]
  %s1 = inlined_call_operand.vmem [shape: f32[2,32,32], index: 1, kind: input, shape index: {}]
  %s2 = inlined_call_operand.vmem [shape: f32[2,32,32], index: 2, kind: input, shape index: {}]
  %s3 = inlined_call_operand.vmem [shape: f32[2,32,2], index: 3, kind: input, shape index: {}]
  %s4 = inlined_call_operand.vmem [shape: f32[2,14,32], index: 4, kind: input, shape index: {}]
  %s5 = inlined_call_operand.vmem [shape: f32[14,1], index: 5, kind: input, shape index: {}]
  %s6 = inlined_call_operand.vmem [shape: f32[2,14,384], index: 6, kind: output, shape index: {}]
  %s7 = sld [smem:[#allocation0]]
  $region129: #{activate_forward.5} parent=0
    _
  %s9 = ssub.s32 1, %s7
  %s10 = scalar_select 0, %s9, %s7
  $region1: #{activate_forward.5} parent=0
    #allocation2 [shape = 'u8[32768]{0}', space=vmem, size = 0x8000, scoped, tag = 'input window, operand 0']
    #allocation3 [shape = 'u8[16384]{0}', space=vmem, size = 0x4000, scoped, tag = 'output window, operand 0']
    loop: start=0, step=1, limit=8
    $region2: #{activate_forward.5} parent=1 // loop_pre_header
      _
    $region3: #{activate_forward.5} parent=1 // loop_header
      %s12 = sphi 0, %s16
      %p13 = scmp.ge.s32.totalorder %s12, 8
      %s19 = sphi 0, %s31
      %s20 = sphi 0, %s27
      %s21 = sphi 0, %s19
      %s22 = sphi 0, %s20
      %s23 = sphi 0, %s21
      %s24 = sphi 0, %s22
      %s36 = sphi 0, %s38
      %s39 = sphi 0, %s36
      %s40 = sphi 0, %s39
      %s56 = sphi 0, %s40
      %s60 = sphi 0, %s60
      %s62 = sphi 0, %s60
      %s63 = sphi 0, %s62
      %s77 = sphi 0, %s63
      %s81 = sphi 0, %s81
      %s83 = sphi 0, %s81
      %s84 = sphi 0, %s83
      %s98 = sphi 0, %s84
      %s102 = sphi 0, %s102
      %s104 = sphi 0, %s102
      %s105 = sphi 0, %s104
      %s119 = sphi 0, %s105
      %s123 = sphi 0, %s123
      %s125 = sphi 0, %s123
      %s126 = sphi 0, %s125
      %s140 = sphi 0, %s126
      %s144 = sphi 0, %s144
      %s146 = sphi 0, %s144
      %s147 = sphi 0, %s146
      %s161 = sphi 0, %s147
      %s169 = sphi 0, %s171
      %s172 = sphi 0, %s169
      %s173 = sphi 0, %s172
      %s189 = sphi 0, %s173
    $region4: #{activate_forward.5} parent=1 // loop_header_branch
      %15 = sbr.rel (%p13) target = $region8
    $region5: #{activate_forward.5} parent=1 // loop_body
      %s17 = ssub.s32 %s12, 1
      %s18 = ssub.s32 %s12, 2
      %s25 = sadd.s32 1, %s20
      %p26 = scmp.ge.s32.totalorder %s25, 3
      %s27 = scalar_select %p26, 0, %s25
      %s28 = sadd.s32 1, %s19
      %s29 = scalar_select %p26, %s28, %s19
      %p30 = scmp.ge.s32.totalorder %s29, 2
      %s31 = scalar_select %p30, 0, %s29
      %s32 = ssub.s32 %s19, %s31
      %s33 = ssub.s32 %s20, %s27
      %s34 = sor.u32 %s32, %s33
      %p35 = scmp.eq.s32.totalorder %s34, 0
      %s37 = sadd.s32 %s36, 1
      %s38 = scalar_select %p35, %s36, %s37
      %p41 = pneg %p35
      %p42 = scmp.eq.s32.totalorder %s12, 5
      %p43 = por %p41, %p42
      %p44 = scmp.ne.s32.totalorder %s36, %s39
      %p45 = scmp.eq.s32.totalorder %s12, 0
      %p46 = por %p44, %p45
      %p47 = scmp.ne.s32.totalorder %s36, %s39
      %p48 = scmp.eq.s32.totalorder %s17, 5
      %p49 = por %p47, %p48
      %p50 = scmp.ne.s32.totalorder %s39, %s40
      %p51 = scmp.eq.s32.totalorder %s17, 0
      %p52 = por %p50, %p51
      %p53 = scmp.ne.s32.totalorder %s39, %s40
      %p54 = scmp.eq.s32.totalorder %s18, 5
      %p55 = por %p53, %p54
      %p57 = scmp.ne.s32.totalorder %s40, %s56
      %p58 = scmp.eq.s32.totalorder %s18, 0
      %p59 = por %p57, %p58
      %s61 = sadd.s32 %s60, 1
      %p64 = scmp.eq.s32.totalorder %s12, 5
      %p65 = scmp.ne.s32.totalorder %s60, %s62
      %p66 = scmp.eq.s32.totalorder %s12, 0
      %p67 = por %p65, %p66
      %p68 = scmp.ne.s32.totalorder %s60, %s62
      %p69 = scmp.eq.s32.totalorder %s17, 5
      %p70 = por %p68, %p69
      %p71 = scmp.ne.s32.totalorder %s62, %s63
      %p72 = scmp.eq.s32.totalorder %s17, 0
      %p73 = por %p71, %p72
      %p74 = scmp.ne.s32.totalorder %s62, %s63
      %p75 = scmp.eq.s32.totalorder %s18, 5
      %p76 = por %p74, %p75
      %p78 = scmp.ne.s32.totalorder %s63, %s77
      %p79 = scmp.eq.s32.totalorder %s18, 0
      %p80 = por %p78, %p79
      %s82 = sadd.s32 %s81, 1
      %p85 = scmp.eq.s32.totalorder %s12, 5
      %p86 = scmp.ne.s32.totalorder %s81, %s83
      %p87 = scmp.eq.s32.totalorder %s12, 0
      %p88 = por %p86, %p87
      %p89 = scmp.ne.s32.totalorder %s81, %s83
      %p90 = scmp.eq.s32.totalorder %s17, 5
      %p91 = por %p89, %p90
      %p92 = scmp.ne.s32.totalorder %s83, %s84
      %p93 = scmp.eq.s32.totalorder %s17, 0
      %p94 = por %p92, %p93
      %p95 = scmp.ne.s32.totalorder %s83, %s84
      %p96 = scmp.eq.s32.totalorder %s18, 5
      %p97 = por %p95, %p96
      %p99 = scmp.ne.s32.totalorder %s84, %s98
      %p100 = scmp.eq.s32.totalorder %s18, 0
      %p101 = por %p99, %p100
      %s103 = sadd.s32 %s102, 1
      %p106 = scmp.eq.s32.totalorder %s12, 5
      %p107 = scmp.ne.s32.totalorder %s102, %s104
      %p108 = scmp.eq.s32.totalorder %s12, 0
      %p109 = por %p107, %p108
      %p110 = scmp.ne.s32.totalorder %s102, %s104
      %p111 = scmp.eq.s32.totalorder %s17, 5
      %p112 = por %p110, %p111
      %p113 = scmp.ne.s32.totalorder %s104, %s105
      %p114 = scmp.eq.s32.totalorder %s17, 0
      %p115 = por %p113, %p114
      %p116 = scmp.ne.s32.totalorder %s104, %s105
      %p117 = scmp.eq.s32.totalorder %s18, 5
      %p118 = por %p116, %p117
      %p120 = scmp.ne.s32.totalorder %s105, %s119
      %p121 = scmp.eq.s32.totalorder %s18, 0
      %p122 = por %p120, %p121
      %s124 = sadd.s32 %s123, 1
      %p127 = scmp.eq.s32.totalorder %s12, 5
      %p128 = scmp.ne.s32.totalorder %s123, %s125
      %p129 = scmp.eq.s32.totalorder %s12, 0
      %p130 = por %p128, %p129
      %p131 = scmp.ne.s32.totalorder %s123, %s125
      %p132 = scmp.eq.s32.totalorder %s17, 5
      %p133 = por %p131, %p132
      %p134 = scmp.ne.s32.totalorder %s125, %s126
      %p135 = scmp.eq.s32.totalorder %s17, 0
      %p136 = por %p134, %p135
      %p137 = scmp.ne.s32.totalorder %s125, %s126
      %p138 = scmp.eq.s32.totalorder %s18, 5
      %p139 = por %p137, %p138
      %p141 = scmp.ne.s32.totalorder %s126, %s140
      %p142 = scmp.eq.s32.totalorder %s18, 0
      %p143 = por %p141, %p142
      %s145 = sadd.s32 %s144, 1
      %p148 = scmp.eq.s32.totalorder %s12, 5
      %p149 = scmp.ne.s32.totalorder %s144, %s146
      %p150 = scmp.eq.s32.totalorder %s12, 0
      %p151 = por %p149, %p150
      %p152 = scmp.ne.s32.totalorder %s144, %s146
      %p153 = scmp.eq.s32.totalorder %s17, 5
      %p154 = por %p152, %p153
      %p155 = scmp.ne.s32.totalorder %s146, %s147
      %p156 = scmp.eq.s32.totalorder %s17, 0
      %p157 = por %p155, %p156
      %p158 = scmp.ne.s32.totalorder %s146, %s147
      %p159 = scmp.eq.s32.totalorder %s18, 5
      %p160 = por %p158, %p159
      %p162 = scmp.ne.s32.totalorder %s147, %s161
      %p163 = scmp.eq.s32.totalorder %s18, 0
      %p164 = por %p162, %p163
      %s165 = ssub.s32 %s19, %s31
      %s166 = ssub.s32 %s20, %s27
      %s167 = sor.u32 %s165, %s166
      %p168 = scmp.eq.s32.totalorder %s167, 0
      %s170 = sadd.s32 %s169, 1
      %s171 = scalar_select %p168, %s169, %s170
      %p174 = pneg %p168
      %p175 = scmp.eq.s32.totalorder %s12, 5
      %p176 = por %p174, %p175
      %p177 = scmp.ne.s32.totalorder %s169, %s172
      %p178 = scmp.eq.s32.totalorder %s12, 0
      %p179 = por %p177, %p178
      %p180 = scmp.ne.s32.totalorder %s169, %s172
      %p181 = scmp.eq.s32.totalorder %s17, 5
      %p182 = por %p180, %p181
      %p183 = scmp.ne.s32.totalorder %s172, %s173
      %p184 = scmp.eq.s32.totalorder %s17, 0
      %p185 = por %p183, %p184
      %p186 = scmp.ne.s32.totalorder %s172, %s173
      %p187 = scmp.eq.s32.totalorder %s18, 5
      %p188 = por %p186, %p187
      %p190 = scmp.ne.s32.totalorder %s173, %s189
      %p191 = scmp.eq.s32.totalorder %s18, 0
      %p192 = por %p190, %p191
      %p193 = scmp.le.s32.totalorder 1, %s12
      %p194 = scmp.lt.s32.totalorder %s12, 7
      %p195 = pnand %p193, %p194
      %p196 = pneg %p195
      // Predicated region
      $region9: #{activate_forward.5} parent=5 // pred_check
        _
      $region10: #{activate_forward.5} parent=5 // pred_check_branch
        %198 = sbr.rel (%p195) target = $region12
      $region11: #{activate_forward.5} parent=5 // pred_region
        %s199 = ssub.s32 %s12, 1
        // Predicated region
        $region13: #{activate_forward.5} parent=11 // pred_check
          %p200 = pneg %p73
        $region14: #{activate_forward.5} parent=11 // pred_check_branch
          %202 = sbr.rel (%p200) target = $region16
        $region15: #{activate_forward.5} parent=11 // pred_region
          _
        $region16: #{activate_forward.5} parent=11 // pred_fallthru
          _
        // Predicated region
        $region17: #{activate_forward.5} parent=11 // pred_check
          %p203 = pneg %p94
        $region18: #{activate_forward.5} parent=11 // pred_check_branch
          %205 = sbr.rel (%p203) target = $region20
        $region19: #{activate_forward.5} parent=11 // pred_region
          _
        $region20: #{activate_forward.5} parent=11 // pred_fallthru
          _
        // Predicated region
        $region21: #{activate_forward.5} parent=11 // pred_check
          %p206 = pneg %p115
        $region22: #{activate_forward.5} parent=11 // pred_check_branch
          %208 = sbr.rel (%p206) target = $region24
        $region23: #{activate_forward.5} parent=11 // pred_region
          _
        $region24: #{activate_forward.5} parent=11 // pred_fallthru
          _
        // Predicated region
        $region25: #{activate_forward.5} parent=11 // pred_check
          %p209 = pneg %p136
        $region26: #{activate_forward.5} parent=11 // pred_check_branch
          %211 = sbr.rel (%p209) target = $region28
        $region27: #{activate_forward.5} parent=11 // pred_region
          _
        $region28: #{activate_forward.5} parent=11 // pred_fallthru
          _
        // Predicated region
        $region29: #{activate_forward.5} parent=11 // pred_check
          %p212 = pneg %p157
        $region30: #{activate_forward.5} parent=11 // pred_check_branch
          %214 = sbr.rel (%p212) target = $region32
        $region31: #{activate_forward.5} parent=11 // pred_region
          _
        $region32: #{activate_forward.5} parent=11 // pred_fallthru
          _
      $region12: #{activate_forward.5} parent=5 // pred_fallthru
        _
      %p215 = scmp.lt.s32.totalorder %s12, 6
      // Predicated region
      $region33: #{activate_forward.5} parent=5 // pred_check
        %p216 = pneg %p215
      $region34: #{activate_forward.5} parent=5 // pred_check_branch
        %218 = sbr.rel (%p216) target = $region36
      $region35: #{activate_forward.5} parent=5 // pred_region
        // Predicated region
        $region37: #{activate_forward.5} parent=35 // pred_check
          %p219 = pneg %p46
        $region38: #{activate_forward.5} parent=35 // pred_check_branch
          %221 = sbr.rel (%p219) target = $region40
        $region39: #{activate_forward.5} parent=35 // pred_region
          %s222 = sand.u32 %s36, 1
          %s223 = sand.u32 %s36, 1
          %s224 = smul.addr %s223, 32
          %s225 = scalar_lea.vmem [#allocation2], %s224
          %s226 = smul.addr %s19, 12
          %s227 = sadd.s32 %s20, %s226
          %s228 = smul.addr %s227, 8
          %s229 = scalar_lea.vmem %s0, %s228
          // Predicated region
          $region41: #{activate_forward.5} parent=39 // pred_check
            _
          $region42: #{activate_forward.5} parent=39 // pred_check_branch
            %231 = sbr.rel (0) target = $region44
          $region43: #{activate_forward.5} parent=39 // pred_region
            // Predicated region
            $region45: #{activate_forward.5} parent=43 // pred_check
              _
            $region46: #{activate_forward.5} parent=43 // pred_check_branch
              %233 = sbr.rel (0) target = $region48
            $region47: #{activate_forward.5} parent=43 // pred_region
              // Predicated region
              $region60: #{activate_forward.5} parent=47 // pred_check
                _
              $region61: #{activate_forward.5} parent=47 // pred_check_branch
                %254 = sbr.rel (0) target = $region63
              $region62: #{activate_forward.5} parent=47 // pred_region
                loop: start=0, step=1, limit=1
                $region64: #{activate_forward.5} parent=62 // loop_pre_header
                  _
                $region65: #{activate_forward.5} parent=62 // loop_header
                  %s256 = sphi 0, %s260
                  %p257 = scmp.ge.s32.totalorder %s256, 1
                  %s261 = sphi %s229, %s229
                  %s262 = sphi %s225, %s225
                $region66: #{activate_forward.5} parent=62 // loop_header_branch
                  %259 = sbr.rel (%p257) target = $region70
                $region67: #{activate_forward.5} parent=62 // loop_body
                  %v263 = vld [vmem:[%s261] sm:$0xff]
                  %264 = vst [vmem:[%s262] sm:$0xff] %v263
                  %v265 = vld [vmem:[%s261 + $0x18] sm:$0xff]
                  %266 = vst [vmem:[%s262 + $0x8] sm:$0xff] %v265
                  %v267 = vld [vmem:[%s261 + $0x30] sm:$0xff]
                  %268 = vst [vmem:[%s262 + $0x10] sm:$0xff] %v267
                  %v269 = vld [vmem:[%s261 + $0x48] sm:$0xff]
                  %270 = vst [vmem:[%s262 + $0x18] sm:$0xff] %v269
                $region68: #{activate_forward.5} parent=62 // loop_footer
                  %s260 = sadd.s32 1, %s256
                $region69: #{activate_forward.5} parent=62 // loop_footer_branch
                  %255 = sbr.rel target = $region65
                $region70: #{activate_forward.5} parent=62 // loop_exit
                  _
              $region63: #{activate_forward.5} parent=47 // pred_fallthru
                _
              // Predicated region
              $region71: #{activate_forward.5} parent=47 // pred_check
                _
              $region72: #{activate_forward.5} parent=47 // pred_check_branch
                %272 = sbr.rel target = $region74
              $region73: #{activate_forward.5} parent=47 // pred_region
                _
              $region74: #{activate_forward.5} parent=47 // pred_fallthru
                _
            $region48: #{activate_forward.5} parent=43 // pred_fallthru
              _
            // Predicated region
            $region49: #{activate_forward.5} parent=43 // pred_check
              _
            $region50: #{activate_forward.5} parent=43 // pred_check_branch
              %235 = sbr.rel target = $region52
            $region51: #{activate_forward.5} parent=43 // pred_region
              loop: start=0, step=1, limit=1
              $region53: #{activate_forward.5} parent=51 // loop_pre_header
                _
              $region54: #{activate_forward.5} parent=51 // loop_header
                %s238 = sphi 0, %s242
                %p239 = scmp.ge.s32.totalorder %s238, 1
                %s243 = sphi %s229, %s229
                %s244 = sphi %s225, %s225
              $region55: #{activate_forward.5} parent=51 // loop_header_branch
                %241 = sbr.rel (%p239) target = $region59
              $region56: #{activate_forward.5} parent=51 // loop_body
                %v245 = vld [vmem:[%s243] sm:$0xff]
                %246 = vst [vmem:[%s244] sm:$0xff] %v245
                %v247 = vld [vmem:[%s243 + $0x18] sm:$0xff]
                %248 = vst [vmem:[%s244 + $0x8] sm:$0xff] %v247
                %v249 = vld [vmem:[%s243 + $0x30] sm:$0xff]
                %250 = vst [vmem:[%s244 + $0x10] sm:$0xff] %v249
                %v251 = vld [vmem:[%s243 + $0x48] sm:$0xff]
                %252 = vst [vmem:[%s244 + $0x18] sm:$0xff] %v251
              $region57: #{activate_forward.5} parent=51 // loop_footer
                %s242 = sadd.s32 1, %s238
              $region58: #{activate_forward.5} parent=51 // loop_footer_branch
                %237 = sbr.rel target = $region54
              $region59: #{activate_forward.5} parent=51 // loop_exit
                _
            $region52: #{activate_forward.5} parent=43 // pred_fallthru
              _
          $region44: #{activate_forward.5} parent=39 // pred_fallthru
            _
          %273 = vnop
        $region40: #{activate_forward.5} parent=35 // pred_fallthru
          _
      $region36: #{activate_forward.5} parent=5 // pred_fallthru
        _
      %p274 = scmp.le.s32.totalorder 1, %s12
      %p275 = scmp.lt.s32.totalorder %s12, 7
      %p276 = pnand %p274, %p275
      %p277 = pneg %p276
      // Predicated region
      $region75: #{activate_forward.5} parent=5 // pred_check
        _
      $region76: #{activate_forward.5} parent=5 // pred_check_branch
        %279 = sbr.rel (%p276) target = $region78
      $region77: #{activate_forward.5} parent=5 // pred_region
        %s280 = ssub.s32 %s12, 1
        %s281 = sand.u32 %s39, 1
        %s282 = sand.u32 %s39, 1
        %s283 = smul.addr %s282, 32
        %s284 = scalar_lea.vmem [#allocation2], %s283
        // Predicated region
        $region79: #{activate_forward.5} parent=77 // pred_check
          %p285 = pneg %p52
        $region80: #{activate_forward.5} parent=77 // pred_check_branch
          %287 = sbr.rel (%p285) target = $region82
        $region81: #{activate_forward.5} parent=77 // pred_region
          _
        $region82: #{activate_forward.5} parent=77 // pred_fallthru
          _
        %s288 = sand.u32 %s39, 1
        %s289 = sand.u32 %s39, 1
        %s290 = smul.addr %s289, 32
        %s291 = scalar_lea.vmem [#allocation2], %s290
        %p292 = pneg %p52
        %p293 = pneg %p49
        %p294 = pneg %p73
        %p295 = pneg %p70
        %p296 = pneg %p94
        %p297 = pneg %p91
        %p298 = pneg %p115
        %p299 = pneg %p112
        %p300 = pneg %p136
        %p301 = pneg %p133
        %p302 = pneg %p157
        %p303 = pneg %p154
        %p304 = pneg %p185
        %p305 = pneg %p182
        %s306 = sand.u32 %s172, 1
        %s307 = sand.u32 %s172, 1
        %s308 = smul.addr %s307, 16
        %s309 = scalar_lea.vmem [#allocation3], %s308
        %v310 = vld [vmem:[%s284] sm:$0xff]
        %v311 = vld [vmem:[%s284 + $0x8] sm:$0xff]
        %v312 = vld [vmem:[%s284 + $0x10] sm:$0xff]
        %v313 = vld [vmem:[%s284 + $0x18] sm:$0xff]
        %v314 = vld [vmem:[%s1] sm:$0xff]
        %v315 = vld [vmem:[%s1 + $0x8] sm:$0xff]
        %v316 = vld [vmem:[%s1 + $0x10] sm:$0xff]
        %v317 = vld [vmem:[%s1 + $0x18] sm:$0xff]
        %v318 = vld [vmem:[%s3] sm:$0xff]
        %v319 = vld [vmem:[%s3 + $0x8] sm:$0xff]
        %v320 = vld [vmem:[%s3 + $0x10] sm:$0xff]
        %v321 = vld [vmem:[%s3 + $0x18] sm:$0xff]
        %323 = vset.pattern.permute.xlu0 0
        %324 = vperm.xlu0 %323, %v318
        %v325 = vpop.permute.xlu0 %324
        %328 = vset.pattern.permute.xlu0 0
        %329 = vperm.xlu0 %328, %v319
        %v330 = vpop.permute.xlu0 %329
        %333 = vset.pattern.permute.xlu0 0
        %334 = vperm.xlu0 %333, %v320
        %v335 = vpop.permute.xlu0 %334
        %338 = vset.pattern.permute.xlu0 0
        %339 = vperm.xlu0 %338, %v321
        %v340 = vpop.permute.xlu0 %339
        %vm342 = vcmask 261120
        %v344 = vsel %vm342, %v314, 0
        %v347 = vsel %vm342, %v315, 0
        %v350 = vsel %vm342, %v316, 0
        %v353 = vsel %vm342, %v317, 0
        %355 = vmatprep.subr.mxu0 0.0
        %356 = vmatpush1.msra.mxu0 %v310
        %357 = vmatprep.subr.mxu0 0.0
        %358 = vmatpush1.msra.mxu0 %v311
        %359 = vmatprep.subr.mxu0 0.0
        %360 = vmatpush1.msra.mxu0 %v312
        %361 = vmatprep.subr.mxu0 0.0
        %362 = vmatpush1.msra.mxu0 %v313
        %363 = vmatprep.subr.mxu0 0.0
        %364 = vmatpush1.msra.mxu0 0.0
        %365 = vmatprep.subr.mxu0 0.0
        %366 = vmatpush1.msra.mxu0 0.0
        %367 = vmatprep.subr.mxu0 0.0
        %368 = vmatpush1.msra.mxu0 0.0
        %369 = vmatprep.subr.mxu0 0.0
        %370 = vmatpush1.msra.mxu0 0.0
        %371 = vmatprep.subr.mxu0 0.0
        %372 = vmatpush1.msra.mxu0 0.0
        %373 = vmatprep.subr.mxu0 0.0
        %374 = vmatpush1.msra.mxu0 0.0
        %375 = vmatprep.subr.mxu0 0.0
        %376 = vmatpush1.msra.mxu0 0.0
        %377 = vmatprep.subr.mxu0 0.0
        %378 = vmatpush1.msra.mxu0 0.0
        %379 = vmatprep.subr.mxu0 0.0
        %380 = vmatpush1.msra.mxu0 0.0
        %381 = vmatprep.subr.mxu0 0.0
        %382 = vmatpush1.msra.mxu0 0.0
        %383 = vmatprep.subr.mxu0 0.0
        %384 = vmatpush1.msra.mxu0 0.0
        %385 = vmatprep.subr.mxu0 0.0
        %386 = vmatpush1.msra.mxu0 0.0
        %387 = vmatprep.subr.mxu0 0.0
        %388 = vmatpush1.msra.mxu0 0.0
        %389 = vmatprep.subr.mxu0 0.0
        %390 = vmatpush1.msra.mxu0 0.0
        %391 = vmatprep.subr.mxu0 0.0
        %392 = vmatpush1.msra.mxu0 0.0
        %393 = vmatprep.subr.mxu0 0.0
        %394 = vmatpush1.msra.mxu0 0.0
        %395 = vmatprep.subr.mxu0 0.0
        %396 = vmatpush1.msra.mxu0 0.0
        %397 = vmatprep.subr.mxu0 0.0
        %398 = vmatpush1.msra.mxu0 0.0
        %399 = vmatprep.subr.mxu0 0.0
        %400 = vmatpush1.msra.mxu0 0.0
        %401 = vmatprep.subr.mxu0 0.0
        %402 = vmatpush1.msra.mxu0 0.0
        %403 = vmatprep.subr.mxu0 0.0
        %404 = vmatpush1.msra.mxu0 0.0
        %405 = vmatprep.subr.mxu0 0.0
        %406 = vmatpush1.msra.mxu0 0.0
        %407 = vmatprep.subr.mxu0 0.0
        %408 = vmatpush1.msra.mxu0 0.0
        %409 = vmatprep.subr.mxu0 0.0
        %410 = vmatpush1.msra.mxu0 0.0
        %411 = vmatprep.subr.mxu0 0.0
        %412 = vmatpush1.msra.mxu0 0.0
        %413 = vmatprep.subr.mxu0 0.0
        %414 = vmatpush1.msra.mxu0 0.0
        %415 = vmatprep.subr.mxu0 0.0
        %416 = vmatpush1.msra.mxu0 0.0
        %417 = vmatprep.subr.mxu0 0.0
        %418 = vmatpush1.msra.mxu0 0.0
        %419 = vmatprep.mubr.f32.mxu0 0.0
        %420 = vmatmul.mubr.f32.gmra.mrb[0].mxu0 %v344
        %v421 = vpop.f32.mrb[0].mxu0
        %v422 = vadd.f32 %v325, %v421
        %v423 = vpop.f32.mrb[0].mxu0
        %424 = vmatprep.mubr.f32.mxu0 0.0
        %425 = vmatmul.mubr.f32.gmra.mrb[0].mxu0 %v347
        %v426 = vpop.f32.mrb[0].mxu0
        %v427 = vadd.f32 %v330, %v426
        %v428 = vpop.f32.mrb[0].mxu0
        %429 = vmatprep.mubr.f32.mxu0 0.0
        %430 = vmatmul.mubr.f32.gmra.mrb[0].mxu0 %v350
        %v431 = vpop.f32.mrb[0].mxu0
        %v432 = vadd.f32 %v335, %v431
        %v433 = vpop.f32.mrb[0].mxu0
        %434 = vmatprep.mubr.f32.mxu0 0.0
        %435 = vmatmul.mubr.f32.gmra.mrb[0].mxu0 %v353
        %v436 = vpop.f32.mrb[0].mxu0
        %v437 = vadd.f32 %v340, %v436
        %v438 = vpop.f32.mrb[0].mxu0
        %439 = vdwg.mxu0
        %v440 = vmin.f32 %v422, 20.0
        %v441 = vmin.f32 %v427, 20.0
        %v442 = vmin.f32 %v432, 20.0
        %v443 = vmin.f32 %v437, 20.0
        %v444 = vmul.f32 %v440, 1.442695
        %v445 = vpow.pop %v444
        %v446 = vmul.f32 %v441, 1.442695
        %v447 = vpow.pop %v446
        %v448 = vmul.f32 %v442, 1.442695
        %v449 = vpow.pop %v448
        %v450 = vmul.f32 %v443, 1.442695
        %v451 = vpow.pop %v450
        %v452 = vadd.f32 %v445, 1.0
        %v453 = vlog2.pop %v452
        %v454 = vmul.f32 %v453, 0.6931472
        %v455 = vmul.f32 -0.5, %v445
        %v456 = vadd.f32 %v455, 1.0
        %v457 = vmul.f32 %v456, %v445
        %v458 = vand.u32 2147483647, %v445
        %vm459 = vcmp.lt.f32.partialorder %v458, 0.0004427343
        %v460 = vsel %vm459, %v457, %v454
        %v461 = vadd.f32 %v447, 1.0
        %v462 = vlog2.pop %v461
        %v463 = vmul.f32 %v462, 0.6931472
        %v464 = vmul.f32 -0.5, %v447
        %v465 = vadd.f32 %v464, 1.0
        %v466 = vmul.f32 %v465, %v447
        %v467 = vand.u32 2147483647, %v447
        %vm468 = vcmp.lt.f32.partialorder %v467, 0.0004427343
        %v469 = vsel %vm468, %v466, %v463
        %v470 = vadd.f32 %v449, 1.0
        %v471 = vlog2.pop %v470
        %v472 = vmul.f32 %v471, 0.6931472
        %v473 = vmul.f32 -0.5, %v449
        %v474 = vadd.f32 %v473, 1.0
        %v475 = vmul.f32 %v474, %v449
        %v476 = vand.u32 2147483647, %v449
        %vm477 = vcmp.lt.f32.partialorder %v476, 0.0004427343
        %v478 = vsel %vm477, %v475, %v472
        %v479 = vadd.f32 %v451, 1.0
        %v480 = vlog2.pop %v479
        %v481 = vmul.f32 %v480, 0.6931472
        %v482 = vmul.f32 -0.5, %v451
        %v483 = vadd.f32 %v482, 1.0
        %v484 = vmul.f32 %v483, %v451
        %v485 = vand.u32 2147483647, %v451
        %vm486 = vcmp.lt.f32.partialorder %v485, 0.0004427343
        %v487 = vsel %vm486, %v484, %v481
        %vm488 = vcmp.gt.f32.partialorder %v422, 20.0
        %vm489 = vcmp.gt.f32.partialorder %v427, 20.0
        %vm490 = vcmp.gt.f32.partialorder %v432, 20.0
        %vm491 = vcmp.gt.f32.partialorder %v437, 20.0
        %v492 = vsel %vm488, %v422, %v460
        %v493 = vsel %vm489, %v427, %v469
        %v494 = vsel %vm490, %v432, %v478
        %v495 = vsel %vm491, %v437, %v487
        %s496 = scalar_lea.vmem %s1, 32
        %v497 = vld [vmem:[%s496] sm:$0xff]
        %v498 = vld [vmem:[%s496 + $0x8] sm:$0xff]
        %v499 = vld [vmem:[%s496 + $0x10] sm:$0xff]
        %v500 = vld [vmem:[%s496 + $0x18] sm:$0xff]
        %s501 = scalar_lea.vmem %s3, 32
        %v502 = vld [vmem:[%s501] sm:$0xff]
        %v503 = vld [vmem:[%s501 + $0x8] sm:$0xff]
        %v504 = vld [vmem:[%s501 + $0x10] sm:$0xff]
        %v505 = vld [vmem:[%s501 + $0x18] sm:$0xff]
        %507 = vset.pattern.permute.xlu0 0
        %508 = vperm.xlu0 %507, %v502
        %v509 = vpop.permute.xlu0 %508
        %512 = vset.pattern.permute.xlu0 0
        %513 = vperm.xlu0 %512, %v503
        %v514 = vpop.permute.xlu0 %513
        %517 = vset.pattern.permute.xlu0 0
        %518 = vperm.xlu0 %517, %v504
        %v519 = vpop.permute.xlu0 %518
        %522 = vset.pattern.permute.xlu0 0
        %523 = vperm.xlu0 %522, %v505
        %v524 = vpop.permute.xlu0 %523
        %v527 = vsel %vm342, %v497, 0
        %v530 = vsel %vm342, %v498, 0
        %v533 = vsel %vm342, %v499, 0
        %v536 = vsel %vm342, %v500, 0
        %538 = vmatprep.subr.mxu0 0.0
        %539 = vmatpush1.msra.mxu0 %v310
        %540 = vmatprep.subr.mxu0 0.0
        %541 = vmatpush1.msra.mxu0 %v311
        %542 = vmatprep.subr.mxu0 0.0
        %543 = vmatpush1.msra.mxu0 %v312
        %544 = vmatprep.subr.mxu0 0.0
        %545 = vmatpush1.msra.mxu0 %v313
        %546 = vmatprep.subr.mxu0 0.0
        %547 = vmatpush1.msra.mxu0 0.0
        %548 = vmatprep.subr.mxu0 0.0
        %549 = vmatpush1.msra.mxu0 0.0
        %550 = vmatprep.subr.mxu0 0.0
        %551 = vmatpush1.msra.mxu0 0.0
        %552 = vmatprep.subr.mxu0 0.0
        %553 = vmatpush1.msra.mxu0 0.0
        %554 = vmatprep.subr.mxu0 0.0
        %555 = vmatpush1.msra.mxu0 0.0
        %556 = vmatprep.subr.mxu0 0.0
        %557 = vmatpush1.msra.mxu0 0.0
        %558 = vmatprep.subr.mxu0 0.0
        %559 = vmatpush1.msra.mxu0 0.0
        %560 = vmatprep.subr.mxu0 0.0
        %561 = vmatpush1.msra.mxu0 0.0
        %562 = vmatprep.subr.mxu0 0.0
        %563 = vmatpush1.msra.mxu0 0.0
        %564 = vmatprep.subr.mxu0 0.0
        %565 = vmatpush1.msra.mxu0 0.0
        %566 = vmatprep.subr.mxu0 0.0
        %567 = vmatpush1.msra.mxu0 0.0
        %568 = vmatprep.subr.mxu0 0.0
        %569 = vmatpush1.msra.mxu0 0.0
        %570 = vmatprep.subr.mxu0 0.0
        %571 = vmatpush1.msra.mxu0 0.0
        %572 = vmatprep.subr.mxu0 0.0
        %573 = vmatpush1.msra.mxu0 0.0
        %574 = vmatprep.subr.mxu0 0.0
        %575 = vmatpush1.msra.mxu0 0.0
        %576 = vmatprep.subr.mxu0 0.0
        %577 = vmatpush1.msra.mxu0 0.0
        %578 = vmatprep.subr.mxu0 0.0
        %579 = vmatpush1.msra.mxu0 0.0
        %580 = vmatprep.subr.mxu0 0.0
        %581 = vmatpush1.msra.mxu0 0.0
        %582 = vmatprep.subr.mxu0 0.0
        %583 = vmatpush1.msra.mxu0 0.0
        %584 = vmatprep.subr.mxu0 0.0
        %585 = vmatpush1.msra.mxu0 0.0
        %586 = vmatprep.subr.mxu0 0.0
        %587 = vmatpush1.msra.mxu0 0.0
        %588 = vmatprep.subr.mxu0 0.0
        %589 = vmatpush1.msra.mxu0 0.0
        %590 = vmatprep.subr.mxu0 0.0
        %591 = vmatpush1.msra.mxu0 0.0
        %592 = vmatprep.subr.mxu0 0.0
        %593 = vmatpush1.msra.mxu0 0.0
        %594 = vmatprep.subr.mxu0 0.0
        %595 = vmatpush1.msra.mxu0 0.0
        %596 = vmatprep.subr.mxu0 0.0
        %597 = vmatpush1.msra.mxu0 0.0
        %598 = vmatprep.subr.mxu0 0.0
        %599 = vmatpush1.msra.mxu0 0.0
        %600 = vmatprep.subr.mxu0 0.0
        %601 = vmatpush1.msra.mxu0 0.0
        %602 = vmatprep.mubr.f32.mxu0 0.0
        %603 = vmatmul.mubr.f32.gmra.mrb[0].mxu0 %v527
        %v604 = vpop.f32.mrb[0].mxu0
        %v605 = vadd.f32 %v509, %v604
        %v606 = vpop.f32.mrb[0].mxu0
        %607 = vmatprep.mubr.f32.mxu0 0.0
        %608 = vmatmul.mubr.f32.gmra.mrb[0].mxu0 %v530
        %v609 = vpop.f32.mrb[0].mxu0
        %v610 = vadd.f32 %v514, %v609
        %v611 = vpop.f32.mrb[0].mxu0
        %612 = vmatprep.mubr.f32.mxu0 0.0
        %613 = vmatmul.mubr.f32.gmra.mrb[0].mxu0 %v533
        %v614 = vpop.f32.mrb[0].mxu0
        %v615 = vadd.f32 %v519, %v614
        %v616 = vpop.f32.mrb[0].mxu0
        %617 = vmatprep.mubr.f32.mxu0 0.0
        %618 = vmatmul.mubr.f32.gmra.mrb[0].mxu0 %v536
        %v619 = vpop.f32.mrb[0].mxu0
        %v620 = vadd.f32 %v524, %v619
        %v621 = vpop.f32.mrb[0].mxu0
        %622 = vdwg.mxu0
        %v623 = vmin.f32 %v605, 20.0
        %v624 = vmin.f32 %v610, 20.0
        %v625 = vmin.f32 %v615, 20.0
        %v626 = vmin.f32 %v620, 20.0
        %v627 = vmul.f32 %v623, 1.442695
        %v628 = vpow.pop %v627
        %v629 = vmul.f32 %v624, 1.442695
        %v630 = vpow.pop %v629
        %v631 = vmul.f32 %v625, 1.442695
        %v632 = vpow.pop %v631
        %v633 = vmul.f32 %v626, 1.442695
        %v634 = vpow.pop %v633
        %v635 = vadd.f32 %v628, 1.0
        %v636 = vlog2.pop %v635
        %v637 = vmul.f32 %v636, 0.6931472
        %v638 = vmul.f32 -0.5, %v628
        %v639 = vadd.f32 %v638, 1.0
        %v640 = vmul.f32 %v639, %v628
        %v641 = vand.u32 2147483647, %v628
        %vm642 = vcmp.lt.f32.partialorder %v641, 0.0004427343
        %v643 = vsel %vm642, %v640, %v637
        %v644 = vadd.f32 %v630, 1.0
        %v645 = vlog2.pop %v644
        %v646 = vmul.f32 %v645, 0.6931472
        %v647 = vmul.f32 -0.5, %v630
        %v648 = vadd.f32 %v647, 1.0
        %v649 = vmul.f32 %v648, %v630
        %v650 = vand.u32 2147483647, %v630
        %vm651 = vcmp.lt.f32.partialorder %v650, 0.0004427343
        %v652 = vsel %vm651, %v649, %v646
        %v653 = vadd.f32 %v632, 1.0
        %v654 = vlog2.pop %v653
        %v655 = vmul.f32 %v654, 0.6931472
        %v656 = vmul.f32 -0.5, %v632
        %v657 = vadd.f32 %v656, 1.0
        %v658 = vmul.f32 %v657, %v632
        %v659 = vand.u32 2147483647, %v632
        %vm660 = vcmp.lt.f32.partialorder %v659, 0.0004427343
        %v661 = vsel %vm660, %v658, %v655
        %v662 = vadd.f32 %v634, 1.0
        %v663 = vlog2.pop %v662
        %v664 = vmul.f32 %v663, 0.6931472
        %v665 = vmul.f32 -0.5, %v634
        %v666 = vadd.f32 %v665, 1.0
        %v667 = vmul.f32 %v666, %v634
        %v668 = vand.u32 2147483647, %v634
        %vm669 = vcmp.lt.f32.partialorder %v668, 0.0004427343
        %v670 = vsel %vm669, %v667, %v664
        %vm671 = vcmp.gt.f32.partialorder %v605, 20.0
        %vm672 = vcmp.gt.f32.partialorder %v610, 20.0
        %vm673 = vcmp.gt.f32.partialorder %v615, 20.0
        %vm674 = vcmp.gt.f32.partialorder %v620, 20.0
        %v675 = vsel %vm671, %v605, %v643
        %v676 = vsel %vm672, %v610, %v652
        %v677 = vsel %vm673, %v615, %v661
        %v678 = vsel %vm674, %v620, %v670
        %v679 = vld [vmem:[%s2] sm:$0xff]
        %v680 = vld [vmem:[%s2 + $0x8] sm:$0xff]
        %v681 = vld [vmem:[%s2 + $0x10] sm:$0xff]
        %v682 = vld [vmem:[%s2 + $0x18] sm:$0xff]
        %683 = vset.pattern.permute.xlu0 1
        %684 = vperm.xlu0 %683, %v318
        %v685 = vpop.permute.xlu0 %684
        %687 = vset.pattern.permute.xlu0 1
        %688 = vperm.xlu0 %687, %v319
        %v689 = vpop.permute.xlu0 %688
        %691 = vset.pattern.permute.xlu0 1
        %692 = vperm.xlu0 %691, %v320
        %v693 = vpop.permute.xlu0 %692
        %695 = vset.pattern.permute.xlu0 1
        %696 = vperm.xlu0 %695, %v321
        %v697 = vpop.permute.xlu0 %696
        %v700 = vsel %vm342, %v679, 0
        %v703 = vsel %vm342, %v680, 0
        %v706 = vsel %vm342, %v681, 0
        %v709 = vsel %vm342, %v682, 0
        %711 = vmatprep.subr.mxu0 0.0
        %712 = vmatpush1.msra.mxu0 %v492
        %713 = vmatprep.subr.mxu0 0.0
        %714 = vmatpush1.msra.mxu0 %v493
        %715 = vmatprep.subr.mxu0 0.0
        %716 = vmatpush1.msra.mxu0 %v494
        %717 = vmatprep.subr.mxu0 0.0
        %718 = vmatpush1.msra.mxu0 %v495
        %719 = vmatprep.subr.mxu0 0.0
        %720 = vmatpush1.msra.mxu0 0.0
        %721 = vmatprep.subr.mxu0 0.0
        %722 = vmatpush1.msra.mxu0 0.0
        %723 = vmatprep.subr.mxu0 0.0
        %724 = vmatpush1.msra.mxu0 0.0
        %725 = vmatprep.subr.mxu0 0.0
        %726 = vmatpush1.msra.mxu0 0.0
        %727 = vmatprep.subr.mxu0 0.0
        %728 = vmatpush1.msra.mxu0 0.0
        %729 = vmatprep.subr.mxu0 0.0
        %730 = vmatpush1.msra.mxu0 0.0
        %731 = vmatprep.subr.mxu0 0.0
        %732 = vmatpush1.msra.mxu0 0.0
        %733 = vmatprep.subr.mxu0 0.0
        %734 = vmatpush1.msra.mxu0 0.0
        %735 = vmatprep.subr.mxu0 0.0
        %736 = vmatpush1.msra.mxu0 0.0
        %737 = vmatprep.subr.mxu0 0.0
        %738 = vmatpush1.msra.mxu0 0.0
        %739 = vmatprep.subr.mxu0 0.0
        %740 = vmatpush1.msra.mxu0 0.0
        %741 = vmatprep.subr.mxu0 0.0
        %742 = vmatpush1.msra.mxu0 0.0
        %743 = vmatprep.subr.mxu0 0.0
        %744 = vmatpush1.msra.mxu0 0.0
        %745 = vmatprep.subr.mxu0 0.0
        %746 = vmatpush1.msra.mxu0 0.0
        %747 = vmatprep.subr.mxu0 0.0
        %748 = vmatpush1.msra.mxu0 0.0
        %749 = vmatprep.subr.mxu0 0.0
        %750 = vmatpush1.msra.mxu0 0.0
        %751 = vmatprep.subr.mxu0 0.0
        %752 = vmatpush1.msra.mxu0 0.0
        %753 = vmatprep.subr.mxu0 0.0
        %754 = vmatpush1.msra.mxu0 0.0
        %755 = vmatprep.subr.mxu0 0.0
        %756 = vmatpush1.msra.mxu0 0.0
        %757 = vmatprep.subr.mxu0 0.0
        %758 = vmatpush1.msra.mxu0 0.0
        %759 = vmatprep.subr.mxu0 0.0
        %760 = vmatpush1.msra.mxu0 0.0
        %761 = vmatprep.subr.mxu0 0.0
        %762 = vmatpush1.msra.mxu0 0.0
        %763 = vmatprep.subr.mxu0 0.0
        %764 = vmatpush1.msra.mxu0 0.0
        %765 = vmatprep.subr.mxu0 0.0
        %766 = vmatpush1.msra.mxu0 0.0
        %767 = vmatprep.subr.mxu0 0.0
        %768 = vmatpush1.msra.mxu0 0.0
        %769 = vmatprep.subr.mxu0 0.0
        %770 = vmatpush1.msra.mxu0 0.0
        %771 = vmatprep.subr.mxu0 0.0
        %772 = vmatpush1.msra.mxu0 0.0
        %773 = vmatprep.subr.mxu0 0.0
        %774 = vmatpush1.msra.mxu0 0.0
        %775 = vmatprep.mubr.f32.mxu0 0.0
        %776 = vmatmul.mubr.f32.gmra.mrb[0].mxu0 %v700
        %v777 = vpop.f32.mrb[0].mxu0
        %v778 = vadd.f32 %v685, %v777
        %v779 = vpop.f32.mrb[0].mxu0
        %780 = vmatprep.mubr.f32.mxu0 0.0
        %781 = vmatmul.mubr.f32.gmra.mrb[0].mxu0 %v703
        %v782 = vpop.f32.mrb[0].mxu0
        %v783 = vadd.f32 %v689, %v782
        %v784 = vpop.f32.mrb[0].mxu0
        %785 = vmatprep.mubr.f32.mxu0 0.0
        %786 = vmatmul.mubr.f32.gmra.mrb[0].mxu0 %v706
        %v787 = vpop.f32.mrb[0].mxu0
        %v788 = vadd.f32 %v693, %v787
        %v789 = vpop.f32.mrb[0].mxu0
        %790 = vmatprep.mubr.f32.mxu0 0.0
        %791 = vmatmul.mubr.f32.gmra.mrb[0].mxu0 %v709
        %v792 = vpop.f32.mrb[0].mxu0
        %v793 = vadd.f32 %v697, %v792
        %v794 = vpop.f32.mrb[0].mxu0
        %795 = vdwg.mxu0
        %v796 = vmin.f32 %v778, 20.0
        %v797 = vmin.f32 %v783, 20.0
        %v798 = vmin.f32 %v788, 20.0
        %v799 = vmin.f32 %v793, 20.0
        %v800 = vmul.f32 %v796, 1.442695
        %v801 = vpow.pop %v800
        %v802 = vmul.f32 %v797, 1.442695
        %v803 = vpow.pop %v802
        %v804 = vmul.f32 %v798, 1.442695
        %v805 = vpow.pop %v804
        %v806 = vmul.f32 %v799, 1.442695
        %v807 = vpow.pop %v806
        %v808 = vadd.f32 %v801, 1.0
        %v809 = vlog2.pop %v808
        %v810 = vmul.f32 %v809, 0.6931472
        %v811 = vmul.f32 -0.5, %v801
        %v812 = vadd.f32 %v811, 1.0
        %v813 = vmul.f32 %v812, %v801
        %v814 = vand.u32 2147483647, %v801
        %vm815 = vcmp.lt.f32.partialorder %v814, 0.0004427343
        %v816 = vsel %vm815, %v813, %v810
        %v817 = vadd.f32 %v803, 1.0
        %v818 = vlog2.pop %v817
        %v819 = vmul.f32 %v818, 0.6931472
        %v820 = vmul.f32 -0.5, %v803
        %v821 = vadd.f32 %v820, 1.0
        %v822 = vmul.f32 %v821, %v803
        %v823 = vand.u32 2147483647, %v803
        %vm824 = vcmp.lt.f32.partialorder %v823, 0.0004427343
        %v825 = vsel %vm824, %v822, %v819
        %v826 = vadd.f32 %v805, 1.0
        %v827 = vlog2.pop %v826
        %v828 = vmul.f32 %v827, 0.6931472
        %v829 = vmul.f32 -0.5, %v805
        %v830 = vadd.f32 %v829, 1.0
        %v831 = vmul.f32 %v830, %v805
        %v832 = vand.u32 2147483647, %v805
        %vm833 = vcmp.lt.f32.partialorder %v832, 0.0004427343
        %v834 = vsel %vm833, %v831, %v828
        %v835 = vadd.f32 %v807, 1.0
        %v836 = vlog2.pop %v835
        %v837 = vmul.f32 %v836, 0.6931472
        %v838 = vmul.f32 -0.5, %v807
        %v839 = vadd.f32 %v838, 1.0
        %v840 = vmul.f32 %v839, %v807
        %v841 = vand.u32 2147483647, %v807
        %vm842 = vcmp.lt.f32.partialorder %v841, 0.0004427343
        %v843 = vsel %vm842, %v840, %v837
        %vm844 = vcmp.gt.f32.partialorder %v778, 20.0
        %vm845 = vcmp.gt.f32.partialorder %v783, 20.0
        %vm846 = vcmp.gt.f32.partialorder %v788, 20.0
        %vm847 = vcmp.gt.f32.partialorder %v793, 20.0
        %v848 = vsel %vm844, %v778, %v816
        %v849 = vsel %vm845, %v783, %v825
        %v850 = vsel %vm846, %v788, %v834
        %v851 = vsel %vm847, %v793, %v843
        %s852 = scalar_lea.vmem %s2, 32
        %v853 = vld [vmem:[%s852] sm:$0xff]
        %v854 = vld [vmem:[%s852 + $0x8] sm:$0xff]
        %v855 = vld [vmem:[%s852 + $0x10] sm:$0xff]
        %v856 = vld [vmem:[%s852 + $0x18] sm:$0xff]
        %857 = vset.pattern.permute.xlu0 1
        %858 = vperm.xlu0 %857, %v502
        %v859 = vpop.permute.xlu0 %858
        %861 = vset.pattern.permute.xlu0 1
        %862 = vperm.xlu0 %861, %v503
        %v863 = vpop.permute.xlu0 %862
        %865 = vset.pattern.permute.xlu0 1
        %866 = vperm.xlu0 %865, %v504
        %v867 = vpop.permute.xlu0 %866
        %869 = vset.pattern.permute.xlu0 1
        %870 = vperm.xlu0 %869, %v505
        %v871 = vpop.permute.xlu0 %870
        %v874 = vsel %vm342, %v853, 0
        %v877 = vsel %vm342, %v854, 0
        %v880 = vsel %vm342, %v855, 0
        %v883 = vsel %vm342, %v856, 0
        %885 = vmatprep.subr.mxu0 0.0
        %886 = vmatpush1.msra.mxu0 %v675
        %887 = vmatprep.subr.mxu0 0.0
        %888 = vmatpush1.msra.mxu0 %v676
        %889 = vmatprep.subr.mxu0 0.0
        %890 = vmatpush1.msra.mxu0 %v677
        %891 = vmatprep.subr.mxu0 0.0
        %892 = vmatpush1.msra.mxu0 %v678
        %893 = vmatprep.subr.mxu0 0.0
        %894 = vmatpush1.msra.mxu0 0.0
        %895 = vmatprep.subr.mxu0 0.0
        %896 = vmatpush1.msra.mxu0 0.0
        %897 = vmatprep.subr.mxu0 0.0
        %898 = vmatpush1.msra.mxu0 0.0
        %899 = vmatprep.subr.mxu0 0.0
        %900 = vmatpush1.msra.mxu0 0.0
        %901 = vmatprep.subr.mxu0 0.0
        %902 = vmatpush1.msra.mxu0 0.0
        %903 = vmatprep.subr.mxu0 0.0
        %904 = vmatpush1.msra.mxu0 0.0
        %905 = vmatprep.subr.mxu0 0.0
        %906 = vmatpush1.msra.mxu0 0.0
        %907 = vmatprep.subr.mxu0 0.0
        %908 = vmatpush1.msra.mxu0 0.0
        %909 = vmatprep.subr.mxu0 0.0
        %910 = vmatpush1.msra.mxu0 0.0
        %911 = vmatprep.subr.mxu0 0.0
        %912 = vmatpush1.msra.mxu0 0.0
        %913 = vmatprep.subr.mxu0 0.0
        %914 = vmatpush1.msra.mxu0 0.0
        %915 = vmatprep.subr.mxu0 0.0
        %916 = vmatpush1.msra.mxu0 0.0
        %917 = vmatprep.subr.mxu0 0.0
        %918 = vmatpush1.msra.mxu0 0.0
        %919 = vmatprep.subr.mxu0 0.0
        %920 = vmatpush1.msra.mxu0 0.0
        %921 = vmatprep.subr.mxu0 0.0
        %922 = vmatpush1.msra.mxu0 0.0
        %923 = vmatprep.subr.mxu0 0.0
        %924 = vmatpush1.msra.mxu0 0.0
        %925 = vmatprep.subr.mxu0 0.0
        %926 = vmatpush1.msra.mxu0 0.0
        %927 = vmatprep.subr.mxu0 0.0
        %928 = vmatpush1.msra.mxu0 0.0
        %929 = vmatprep.subr.mxu0 0.0
        %930 = vmatpush1.msra.mxu0 0.0
        %931 = vmatprep.subr.mxu0 0.0
        %932 = vmatpush1.msra.mxu0 0.0
        %933 = vmatprep.subr.mxu0 0.0
        %934 = vmatpush1.msra.mxu0 0.0
        %935 = vmatprep.subr.mxu0 0.0
        %936 = vmatpush1.msra.mxu0 0.0
        %937 = vmatprep.subr.mxu0 0.0
        %938 = vmatpush1.msra.mxu0 0.0
        %939 = vmatprep.subr.mxu0 0.0
        %940 = vmatpush1.msra.mxu0 0.0
        %941 = vmatprep.subr.mxu0 0.0
        %942 = vmatpush1.msra.mxu0 0.0
        %943 = vmatprep.subr.mxu0 0.0
        %944 = vmatpush1.msra.mxu0 0.0
        %945 = vmatprep.subr.mxu0 0.0
        %946 = vmatpush1.msra.mxu0 0.0
        %947 = vmatprep.subr.mxu0 0.0
        %948 = vmatpush1.msra.mxu0 0.0
        %949 = vmatprep.mubr.f32.mxu0 0.0
        %950 = vmatmul.mubr.f32.gmra.mrb[0].mxu0 %v874
        %v951 = vpop.f32.mrb[0].mxu0
        %v952 = vadd.f32 %v859, %v951
        %v953 = vpop.f32.mrb[0].mxu0
        %954 = vmatprep.mubr.f32.mxu0 0.0
        %955 = vmatmul.mubr.f32.gmra.mrb[0].mxu0 %v877
        %v956 = vpop.f32.mrb[0].mxu0
        %v957 = vadd.f32 %v863, %v956
        %v958 = vpop.f32.mrb[0].mxu0
        %959 = vmatprep.mubr.f32.mxu0 0.0
        %960 = vmatmul.mubr.f32.gmra.mrb[0].mxu0 %v880
        %v961 = vpop.f32.mrb[0].mxu0
        %v962 = vadd.f32 %v867, %v961
        %v963 = vpop.f32.mrb[0].mxu0
        %964 = vmatprep.mubr.f32.mxu0 0.0
        %965 = vmatmul.mubr.f32.gmra.mrb[0].mxu0 %v883
        %v966 = vpop.f32.mrb[0].mxu0
        %v967 = vadd.f32 %v871, %v966
        %v968 = vpop.f32.mrb[0].mxu0
        %969 = vdwg.mxu0
        %v970 = vmin.f32 %v952, 20.0
        %v971 = vmin.f32 %v957, 20.0
        %v972 = vmin.f32 %v962, 20.0
        %v973 = vmin.f32 %v967, 20.0
        %v974 = vmul.f32 %v970, 1.442695
        %v975 = vpow.pop %v974
        %v976 = vmul.f32 %v971, 1.442695
        %v977 = vpow.pop %v976
        %v978 = vmul.f32 %v972, 1.442695
        %v979 = vpow.pop %v978
        %v980 = vmul.f32 %v973, 1.442695
        %v981 = vpow.pop %v980
        %v982 = vadd.f32 %v975, 1.0
        %v983 = vlog2.pop %v982
        %v984 = vmul.f32 %v983, 0.6931472
        %v985 = vmul.f32 -0.5, %v975
        %v986 = vadd.f32 %v985, 1.0
        %v987 = vmul.f32 %v986, %v975
        %v988 = vand.u32 2147483647, %v975
        %vm989 = vcmp.lt.f32.partialorder %v988, 0.0004427343
        %v990 = vsel %vm989, %v987, %v984
        %v991 = vadd.f32 %v977, 1.0
        %v992 = vlog2.pop %v991
        %v993 = vmul.f32 %v992, 0.6931472
        %v994 = vmul.f32 -0.5, %v977
        %v995 = vadd.f32 %v994, 1.0
        %v996 = vmul.f32 %v995, %v977
        %v997 = vand.u32 2147483647, %v977
        %vm998 = vcmp.lt.f32.partialorder %v997, 0.0004427343
        %v999 = vsel %vm998, %v996, %v993
        %v1000 = vadd.f32 %v979, 1.0
        %v1001 = vlog2.pop %v1000
        %v1002 = vmul.f32 %v1001, 0.6931472
        %v1003 = vmul.f32 -0.5, %v979
        %v1004 = vadd.f32 %v1003, 1.0
        %v1005 = vmul.f32 %v1004, %v979
        %v1006 = vand.u32 2147483647, %v979
        %vm1007 = vcmp.lt.f32.partialorder %v1006, 0.0004427343
        %v1008 = vsel %vm1007, %v1005, %v1002
        %v1009 = vadd.f32 %v981, 1.0
        %v1010 = vlog2.pop %v1009
        %v1011 = vmul.f32 %v1010, 0.6931472
        %v1012 = vmul.f32 -0.5, %v981
        %v1013 = vadd.f32 %v1012, 1.0
        %v1014 = vmul.f32 %v1013, %v981
        %v1015 = vand.u32 2147483647, %v981
        %vm1016 = vcmp.lt.f32.partialorder %v1015, 0.0004427343
        %v1017 = vsel %vm1016, %v1014, %v1011
        %vm1018 = vcmp.gt.f32.partialorder %v952, 20.0
        %vm1019 = vcmp.gt.f32.partialorder %v957, 20.0
        %vm1020 = vcmp.gt.f32.partialorder %v962, 20.0
        %vm1021 = vcmp.gt.f32.partialorder %v967, 20.0
        %v1022 = vsel %vm1018, %v952, %v990
        %v1023 = vsel %vm1019, %v957, %v999
        %v1024 = vsel %vm1020, %v962, %v1008
        %v1025 = vsel %vm1021, %v967, %v1017
        %v1026 = vld [vmem:[%s4] sm:$0xff]
        %v1027 = vld [vmem:[%s4 + $0x8] sm:$0x3f]
        %s1028 = scalar_lea.vmem %s4, 16
        %v1029 = vld [vmem:[%s1028] sm:$0xff]
        %v1030 = vld [vmem:[%s1028 + $0x8] sm:$0x3f]
        %v1032 = vsel %vm342, %v1029, 0
        %v1035 = vsel %vm342, %v1030, 0
        %1037 = vmatprep.subr.mxu0 0.0
        %1038 = vmatpush1.msra.mxu0 %v1022
        %1039 = vmatprep.subr.mxu0 0.0
        %1040 = vmatpush1.msra.mxu0 %v1023
        %1041 = vmatprep.subr.mxu0 0.0
        %1042 = vmatpush1.msra.mxu0 %v1024
        %1043 = vmatprep.subr.mxu0 0.0
        %1044 = vmatpush1.msra.mxu0 %v1025
        %1045 = vmatprep.subr.mxu0 0.0
        %1046 = vmatpush1.msra.mxu0 0.0
        %1047 = vmatprep.subr.mxu0 0.0
        %1048 = vmatpush1.msra.mxu0 0.0
        %1049 = vmatprep.subr.mxu0 0.0
        %1050 = vmatpush1.msra.mxu0 0.0
        %1051 = vmatprep.subr.mxu0 0.0
        %1052 = vmatpush1.msra.mxu0 0.0
        %1053 = vmatprep.subr.mxu0 0.0
        %1054 = vmatpush1.msra.mxu0 0.0
        %1055 = vmatprep.subr.mxu0 0.0
        %1056 = vmatpush1.msra.mxu0 0.0
        %1057 = vmatprep.subr.mxu0 0.0
        %1058 = vmatpush1.msra.mxu0 0.0
        %1059 = vmatprep.subr.mxu0 0.0
        %1060 = vmatpush1.msra.mxu0 0.0
        %1061 = vmatprep.subr.mxu0 0.0
        %1062 = vmatpush1.msra.mxu0 0.0
        %1063 = vmatprep.subr.mxu0 0.0
        %1064 = vmatpush1.msra.mxu0 0.0
        %1065 = vmatprep.subr.mxu0 0.0
        %1066 = vmatpush1.msra.mxu0 0.0
        %1067 = vmatprep.subr.mxu0 0.0
        %1068 = vmatpush1.msra.mxu0 0.0
        %1069 = vmatprep.subr.mxu0 0.0
        %1070 = vmatpush1.msra.mxu0 0.0
        %1071 = vmatprep.subr.mxu0 0.0
        %1072 = vmatpush1.msra.mxu0 0.0
        %1073 = vmatprep.subr.mxu0 0.0
        %1074 = vmatpush1.msra.mxu0 0.0
        %1075 = vmatprep.subr.mxu0 0.0
        %1076 = vmatpush1.msra.mxu0 0.0
        %1077 = vmatprep.subr.mxu0 0.0
        %1078 = vmatpush1.msra.mxu0 0.0
        %1079 = vmatprep.subr.mxu0 0.0
        %1080 = vmatpush1.msra.mxu0 0.0
        %1081 = vmatprep.subr.mxu0 0.0
        %1082 = vmatpush1.msra.mxu0 0.0
        %1083 = vmatprep.subr.mxu0 0.0
        %1084 = vmatpush1.msra.mxu0 0.0
        %1085 = vmatprep.subr.mxu0 0.0
        %1086 = vmatpush1.msra.mxu0 0.0
        %1087 = vmatprep.subr.mxu0 0.0
        %1088 = vmatpush1.msra.mxu0 0.0
        %1089 = vmatprep.subr.mxu0 0.0
        %1090 = vmatpush1.msra.mxu0 0.0
        %1091 = vmatprep.subr.mxu0 0.0
        %1092 = vmatpush1.msra.mxu0 0.0
        %1093 = vmatprep.subr.mxu0 0.0
        %1094 = vmatpush1.msra.mxu0 0.0
        %1095 = vmatprep.subr.mxu0 0.0
        %1096 = vmatpush1.msra.mxu0 0.0
        %1097 = vmatprep.subr.mxu0 0.0
        %1098 = vmatpush1.msra.mxu0 0.0
        %1099 = vmatprep.subr.mxu0 0.0
        %1100 = vmatpush1.msra.mxu0 0.0
        %1101 = vmatprep.mubr.f32.mxu0 0.0
        %1102 = vmatmul.mubr.f32.gmra.mrb[0].mxu0 %v1032
        %v1103 = vpop.f32.mrb[0].mxu0
        %v1104 = vadd.f32 0.0, %v1103
        %v1105 = vpop.f32.mrb[0].mxu0
        %1106 = vmatprep.mubr.f32.mxu0 0.0
        %1107 = vmatmul.mubr.f32.gmra.mrb[0].mxu0 %v1035
        %v1108 = vpop.f32.mrb[0].mxu0
        %v1109 = vadd.f32 0.0, %v1108
        %v1110 = vpop.f32.mrb[0].mxu0
        %1111 = vdwg.mxu0
        %v1113 = vsel %vm342, %v1026, 0
        %v1116 = vsel %vm342, %v1027, 0
        %1118 = vmatprep.subr.mxu0 0.0
        %1119 = vmatpush1.msra.mxu0 %v848
        %1120 = vmatprep.subr.mxu0 0.0
        %1121 = vmatpush1.msra.mxu0 %v849
        %1122 = vmatprep.subr.mxu0 0.0
        %1123 = vmatpush1.msra.mxu0 %v850
        %1124 = vmatprep.subr.mxu0 0.0
        %1125 = vmatpush1.msra.mxu0 %v851
        %1126 = vmatprep.subr.mxu0 0.0
        %1127 = vmatpush1.msra.mxu0 0.0
        %1128 = vmatprep.subr.mxu0 0.0
        %1129 = vmatpush1.msra.mxu0 0.0
        %1130 = vmatprep.subr.mxu0 0.0
        %1131 = vmatpush1.msra.mxu0 0.0
        %1132 = vmatprep.subr.mxu0 0.0
        %1133 = vmatpush1.msra.mxu0 0.0
        %1134 = vmatprep.subr.mxu0 0.0
        %1135 = vmatpush1.msra.mxu0 0.0
        %1136 = vmatprep.subr.mxu0 0.0
        %1137 = vmatpush1.msra.mxu0 0.0
        %1138 = vmatprep.subr.mxu0 0.0
        %1139 = vmatpush1.msra.mxu0 0.0
        %1140 = vmatprep.subr.mxu0 0.0
        %1141 = vmatpush1.msra.mxu0 0.0
        %1142 = vmatprep.subr.mxu0 0.0
        %1143 = vmatpush1.msra.mxu0 0.0
        %1144 = vmatprep.subr.mxu0 0.0
        %1145 = vmatpush1.msra.mxu0 0.0
        %1146 = vmatprep.subr.mxu0 0.0
        %1147 = vmatpush1.msra.mxu0 0.0
        %1148 = vmatprep.subr.mxu0 0.0
        %1149 = vmatpush1.msra.mxu0 0.0
        %1150 = vmatprep.subr.mxu0 0.0
        %1151 = vmatpush1.msra.mxu0 0.0
        %1152 = vmatprep.subr.mxu0 0.0
        %1153 = vmatpush1.msra.mxu0 0.0
        %1154 = vmatprep.subr.mxu0 0.0
        %1155 = vmatpush1.msra.mxu0 0.0
        %1156 = vmatprep.subr.mxu0 0.0
        %1157 = vmatpush1.msra.mxu0 0.0
        %1158 = vmatprep.subr.mxu0 0.0
        %1159 = vmatpush1.msra.mxu0 0.0
        %1160 = vmatprep.subr.mxu0 0.0
        %1161 = vmatpush1.msra.mxu0 0.0
        %1162 = vmatprep.subr.mxu0 0.0
        %1163 = vmatpush1.msra.mxu0 0.0
        %1164 = vmatprep.subr.mxu0 0.0
        %1165 = vmatpush1.msra.mxu0 0.0
        %1166 = vmatprep.subr.mxu0 0.0
        %1167 = vmatpush1.msra.mxu0 0.0
        %1168 = vmatprep.subr.mxu0 0.0
        %1169 = vmatpush1.msra.mxu0 0.0
        %1170 = vmatprep.subr.mxu0 0.0
        %1171 = vmatpush1.msra.mxu0 0.0
        %1172 = vmatprep.subr.mxu0 0.0
        %1173 = vmatpush1.msra.mxu0 0.0
        %1174 = vmatprep.subr.mxu0 0.0
        %1175 = vmatpush1.msra.mxu0 0.0
        %1176 = vmatprep.subr.mxu0 0.0
        %1177 = vmatpush1.msra.mxu0 0.0
        %1178 = vmatprep.subr.mxu0 0.0
        %1179 = vmatpush1.msra.mxu0 0.0
        %1180 = vmatprep.subr.mxu0 0.0
        %1181 = vmatpush1.msra.mxu0 0.0
        %1182 = vmatprep.mubr.f32.mxu0 0.0
        %1183 = vmatmul.mubr.f32.gmra.mrb[0].mxu0 %v1113
        %v1184 = vpop.f32.mrb[0].mxu0
        %v1185 = vadd.f32 %v1104, %v1184
        %v1186 = vpop.f32.mrb[0].mxu0
        %1187 = vmatprep.mubr.f32.mxu0 0.0
        %1188 = vmatmul.mubr.f32.gmra.mrb[0].mxu0 %v1116
        %v1189 = vpop.f32.mrb[0].mxu0
        %v1190 = vadd.f32 %v1109, %v1189
        %v1191 = vpop.f32.mrb[0].mxu0
        %1192 = vdwg.mxu0
        %v1193 = vld [vmem:[%s5] sm:$0xff]
        %v1194 = vld [vmem:[%s5 + $0x8] sm:$0x3f]
        %1196 = vset.pattern.permute.xlu0 0
        %1197 = vperm.xlu0 %1196, %v1193
        %v1198 = vpop.permute.xlu0 %1197
        %1201 = vset.pattern.permute.xlu0 0
        %1202 = vperm.xlu0 %1201, %v1194
        %v1203 = vpop.permute.xlu0 %1202
        %v1205 = vadd.f32 %v1185, %v1198
        %v1206 = vadd.f32 %v1190, %v1203
        %v1207 = vlaneseq
        %v1208 = vshrl.u32 %v1207, 7
        %v1209 = vadd.s32 %v1208, 8
        %vm1210 = vcmp.ge.s32.totalorder %v1208, 7
        %vm1211 = vcmp.ge.s32.totalorder %v1209, 7
        %v1212 = vsub.f32 0.0, %v1205
        %v1213 = vsub.f32 0.0, %v1206
        %v1214 = vmul.f32 %v1212, 1.442695
        %v1215 = vpow.pop %v1214
        %v1216 = vmul.f32 %v1213, 1.442695
        %v1217 = vpow.pop %v1216
        %v1218 = vadd.f32 %v1215, 1.0
        %v1219 = vadd.f32 %v1217, 1.0
        %v1220 = vrcp.pop %v1218
        %v1221 = vmul.f32 1.0, %v1220
        %v1222 = vrcp.pop %v1219
        %v1223 = vmul.f32 1.0, %v1222
        %v1224 = vsel %vm1210, %v1221, %v1205
        %v1225 = vsel %vm1211, %v1223, %v1206
        %1226 = vst [vmem:[%s309] sm:$0xff] %v1224
        %1227 = vst [vmem:[%s309 + $0x8] sm:$0x3f] %v1225
        %s1228 = sand.u32 %s172, 1
        %s1229 = sand.u32 %s172, 1
        %s1230 = smul.addr %s1229, 16
        %s1231 = scalar_lea.vmem [#allocation3], %s1230
        // Predicated region
        $region83: #{activate_forward.5} parent=77 // pred_check
          %p1232 = pneg %p182
        $region84: #{activate_forward.5} parent=77 // pred_check_branch
          %1234 = sbr.rel (%p1232) target = $region86
        $region85: #{activate_forward.5} parent=77 // pred_region
          %s1235 = smul.addr %s21, 6
          %s1236 = sadd.s32 %s22, %s1235
          %s1237 = smul.addr %s1236, 8
          %s1238 = scalar_lea.vmem %s6, %s1237
          // Predicated region
          $region87: #{activate_forward.5} parent=85 // pred_check
            _
          $region88: #{activate_forward.5} parent=85 // pred_check_branch
            %1240 = sbr.rel (0) target = $region90
          $region89: #{activate_forward.5} parent=85 // pred_region
            // Predicated region
            $region91: #{activate_forward.5} parent=89 // pred_check
              _
            $region92: #{activate_forward.5} parent=89 // pred_check_branch
              %1242 = sbr.rel (0) target = $region94
            $region93: #{activate_forward.5} parent=89 // pred_region
              // Predicated region
              $region106: #{activate_forward.5} parent=93 // pred_check
                _
              $region107: #{activate_forward.5} parent=93 // pred_check_branch
                %1259 = sbr.rel (0) target = $region109
              $region108: #{activate_forward.5} parent=93 // pred_region
                loop: start=0, step=1, limit=1
                $region110: #{activate_forward.5} parent=108 // loop_pre_header
                  _
                $region111: #{activate_forward.5} parent=108 // loop_header
                  %s1261 = sphi 0, %s1265
                  %p1262 = scmp.ge.s32.totalorder %s1261, 1
                  %s1266 = sphi %s1231, %s1231
                  %s1267 = sphi %s1238, %s1238
                $region112: #{activate_forward.5} parent=108 // loop_header_branch
                  %1264 = sbr.rel (%p1262) target = $region116
                $region113: #{activate_forward.5} parent=108 // loop_body
                  %v1268 = vld [vmem:[%s1266] sm:$0xff]
                  %1269 = vst [vmem:[%s1267] sm:$0xff] %v1268
                  %v1270 = vld [vmem:[%s1266 + $0x8] sm:$0xff]
                  %1271 = vst [vmem:[%s1267 + $0x18] sm:$0xff] %v1270
                $region114: #{activate_forward.5} parent=108 // loop_footer
                  %s1265 = sadd.s32 1, %s1261
                $region115: #{activate_forward.5} parent=108 // loop_footer_branch
                  %1260 = sbr.rel target = $region111
                $region116: #{activate_forward.5} parent=108 // loop_exit
                  _
              $region109: #{activate_forward.5} parent=93 // pred_fallthru
                _
              // Predicated region
              $region117: #{activate_forward.5} parent=93 // pred_check
                _
              $region118: #{activate_forward.5} parent=93 // pred_check_branch
                %1273 = sbr.rel target = $region120
              $region119: #{activate_forward.5} parent=93 // pred_region
                _
              $region120: #{activate_forward.5} parent=93 // pred_fallthru
                _
            $region94: #{activate_forward.5} parent=89 // pred_fallthru
              _
            // Predicated region
            $region95: #{activate_forward.5} parent=89 // pred_check
              _
            $region96: #{activate_forward.5} parent=89 // pred_check_branch
              %1244 = sbr.rel target = $region98
            $region97: #{activate_forward.5} parent=89 // pred_region
              loop: start=0, step=1, limit=1
              $region99: #{activate_forward.5} parent=97 // loop_pre_header
                _
              $region100: #{activate_forward.5} parent=97 // loop_header
                %s1247 = sphi 0, %s1251
                %p1248 = scmp.ge.s32.totalorder %s1247, 1
                %s1252 = sphi %s1231, %s1231
                %s1253 = sphi %s1238, %s1238
              $region101: #{activate_forward.5} parent=97 // loop_header_branch
                %1250 = sbr.rel (%p1248) target = $region105
              $region102: #{activate_forward.5} parent=97 // loop_body
                %v1254 = vld [vmem:[%s1252] sm:$0xff]
                %1255 = vst [vmem:[%s1253] sm:$0xff] %v1254
                %v1256 = vld [vmem:[%s1252 + $0x8] sm:$0xff]
                %1257 = vst [vmem:[%s1253 + $0x18] sm:$0xff] %v1256
              $region103: #{activate_forward.5} parent=97 // loop_footer
                %s1251 = sadd.s32 1, %s1247
              $region104: #{activate_forward.5} parent=97 // loop_footer_branch
                %1246 = sbr.rel target = $region100
              $region105: #{activate_forward.5} parent=97 // loop_exit
                _
            $region98: #{activate_forward.5} parent=89 // pred_fallthru
              _
          $region90: #{activate_forward.5} parent=85 // pred_fallthru
            _
          %1274 = vnop
        $region86: #{activate_forward.5} parent=77 // pred_fallthru
          _
      $region78: #{activate_forward.5} parent=5 // pred_fallthru
        _
      %p1275 = scmp.le.s32.totalorder 2, %s12
      // Predicated region
      $region121: #{activate_forward.5} parent=5 // pred_check
        %p1276 = pneg %p1275
      $region122: #{activate_forward.5} parent=5 // pred_check_branch
        %1278 = sbr.rel (%p1276) target = $region124
      $region123: #{activate_forward.5} parent=5 // pred_region
        %s1279 = ssub.s32 %s12, 2
        // Predicated region
        $region125: #{activate_forward.5} parent=123 // pred_check
          %p1280 = pneg %p188
        $region126: #{activate_forward.5} parent=123 // pred_check_branch
          %1282 = sbr.rel (%p1280) target = $region128
        $region127: #{activate_forward.5} parent=123 // pred_region
          %s1283 = sand.u32 %s173, 1
          %s1284 = sand.u32 %s173, 1
          %s1285 = smul.addr %s1284, 16
          %s1286 = scalar_lea.vmem [#allocation3], %s1285
        $region128: #{activate_forward.5} parent=123 // pred_fallthru
          _
      $region124: #{activate_forward.5} parent=5 // pred_fallthru
        _
    $region6: #{activate_forward.5} parent=1 // loop_footer
      %s16 = sadd.s32 1, %s12
    $region7: #{activate_forward.5} parent=1 // loop_footer_branch
      %11 = sbr.rel target = $region3
    $region8: #{activate_forward.5} parent=1 // loop_exit
      _

</llo_original>
